<compile_context>
chip_gen: v5e
topology: v5e:2x2
jax: 0.10.0
libtpu: 0.0.40
codegen_flags: <defaults>
</compile_context>

<pallas_src>
import functools

import jax
import jax.numpy as jnp
from jax.experimental import pallas as pl
from jax.experimental.pallas import tpu as pltpu

_VMEM_LIMIT_BYTES = 32 * 1024 * 1024   # safe on v5e/v6e (128 MiB) and v7x (64 MiB physical)
_MM_DTYPE = jnp.bfloat16               # MXU-native operand dtype; accumulation stays f32
_LN_EPS = 1e-5                         # matches torch.nn.LayerNorm(eps=1e-05)


# ---------------------------- in-kernel helpers ----------------------------

def _layernorm(x, g_ref, b_ref, eps=_LN_EPS):
    # x: (rows, E) f32 ; g/b refs: (1, E)
    g = g_ref[...].astype(jnp.float32)
    b = b_ref[...].astype(jnp.float32)
    mu = jnp.mean(x, axis=-1, keepdims=True)
    var = jnp.mean(jnp.square(x - mu), axis=-1, keepdims=True)
    return (x - mu) * jax.lax.rsqrt(var + eps) * g + b


def _mha(q_in, kv_in, wqkv_ref, bqkv_ref, wo_ref, bo_ref, bblk, tq, tk, nhead):
    """Multi-head attention with per-head weight slabs (no lane slicing, no concat).

    q_in : (bblk*tq, E) f32   (already layer-normalized queries)
    kv_in: (bblk*tk, E) f32   (key/value source: q_in for self-attn, raw memory for cross)
    wqkv_ref: (3*nhead, E, hd) bf16  -- slabs [q_h..., k_h..., v_h...] (scale folded into q)
    bqkv_ref: (3*nhead, 1, hd) f32
    wo_ref  : (nhead, hd, E) bf16    -- out-projection accumulated per head
    bo_ref  : (1, E) f32
    returns : (bblk*tq, E) f32
    """
    hd = wo_ref.shape[1]
    e_out = wo_ref.shape[2]
    rows_q = bblk * tq

    q_mm = q_in.astype(_MM_DTYPE)
    kv_mm = q_mm if kv_in is q_in else kv_in.astype(_MM_DTYPE)

    acc = jnp.zeros((rows_q, e_out), jnp.float32)
    for h in range(nhead):                                   # static unroll (nhead small)
        qh = (jnp.dot(q_mm, wqkv_ref[h], preferred_element_type=jnp.float32)
              + bqkv_ref[h].astype(jnp.float32))
        kh = (jnp.dot(kv_mm, wqkv_ref[nhead + h], preferred_element_type=jnp.float32)
              + bqkv_ref[nhead + h].astype(jnp.float32))
        vh = (jnp.dot(kv_mm, wqkv_ref[2 * nhead + h], preferred_element_type=jnp.float32)
              + bqkv_ref[2 * nhead + h].astype(jnp.float32))

        qh = qh.reshape(bblk, tq, hd)                        # row-split only: free reshape
        kh = kh.reshape(bblk, tk, hd)
        vh = vh.reshape(bblk, tk, hd)

        s = jnp.einsum('bqd,bkd->bqk', qh.astype(_MM_DTYPE), kh.astype(_MM_DTYPE),
                       preferred_element_type=jnp.float32)   # per-example batched scores
        m = jnp.max(s, axis=-1, keepdims=True)
        ex = jnp.exp(s - m)
        p = ex / jnp.sum(ex, axis=-1, keepdims=True)         # exact f32 normalization

        oh = jnp.einsum('bqk,bkd->bqd', p.astype(_MM_DTYPE), vh.astype(_MM_DTYPE),
                        preferred_element_type=jnp.float32)
        acc += jnp.dot(oh.reshape(rows_q, hd).astype(_MM_DTYPE), wo_ref[h],
                       preferred_element_type=jnp.float32)   # per-head out-proj, no concat
    return acc + bo_ref[...].astype(jnp.float32)


# ---------------------------- fused layer kernel ----------------------------

def _fused_layer_kernel(x_ref, mem_ref,
                        ln1_g_ref, ln1_b_ref, sa_wqkv_ref, sa_bqkv_ref, sa_wo_ref, sa_bo_ref,
                        ln2_g_ref, ln2_b_ref, ca_wqkv_ref, ca_bqkv_ref, ca_wo_ref, ca_bo_ref,
                        ln3_g_ref, ln3_b_ref, ff_w1_ref, ff_b1_ref, ff_w2_ref, ff_b2_ref,
                        o_ref, *, nhead):
    bblk, t, e = x_ref.shape
    s_len = mem_ref.shape[1]

    x = x_ref[...].astype(jnp.float32).reshape(bblk * t, e)          # rows = Bblk*T
    mem = mem_ref[...].astype(jnp.float32).reshape(bblk * s_len, e)  # rows = Bblk*S

    # --- self-attention block (pre-norm) ---
    xn = _layernorm(x, ln1_g_ref, ln1_b_ref)
    x = x + _mha(xn, xn, sa_wqkv_ref, sa_bqkv_ref, sa_wo_ref, sa_bo_ref,
                 bblk, t, t, nhead)

    # --- cross-attention block: q from LN2(x), k/v from RAW memory (as in the module) ---
    xn = _layernorm(x, ln2_g_ref, ln2_b_ref)
    x = x + _mha(xn, mem, ca_wqkv_ref, ca_bqkv_ref, ca_wo_ref, ca_bo_ref,
                 bblk, t, s_len, nhead)

    # --- feed-forward block (intermediate (rows, F) never leaves VMEM) ---
    xn = _layernorm(x, ln3_g_ref, ln3_b_ref)
    hmid = (jnp.dot(xn.astype(_MM_DTYPE), ff_w1_ref[...], preferred_element_type=jnp.float32)
            + ff_b1_ref[...].astype(jnp.float32))
    hmid = jnp.maximum(hmid, 0.0)
    x = x + (jnp.dot(hmid.astype(_MM_DTYPE), ff_w2_ref[...], preferred_element_type=jnp.float32)
             + ff_b2_ref[...].astype(jnp.float32))

    o_ref[...] = x.reshape(bblk, t, e).astype(o_ref.dtype)


# ---------------------------- pallas_call wrapper ----------------------------

def _pspec(shape):
    # Constant index_map: block is DMA'd once and stays resident across the whole grid.
    n = len(shape)
    return pl.BlockSpec(shape, lambda b, _n=n: (0,) * _n)


def _pick_block_b(batch, t):
    """Rows per step ~<=256 (widen M) while keeping >=2 parallel steps when B allows (v7x)."""
    bb = max(1, min(batch, 256 // max(t, 1)))
    if batch >= 2:
        bb = min(bb, max(1, batch // 2))
    while batch % bb:
        bb -= 1
    return bb


def transformer_layer_forward_btc(x_bte, mem_bse, kp, nhead):
    """Core entry point; x: (B, T, E), memory: (B, S, E)."""
    batch, t, e = x_bte.shape
    bm, s_len, em = mem_bse.shape
    assert bm == batch and em == e, "batch / embed dims of tgt and memory must match"
    assert e % nhead == 0, "attention_dim must be divisible by nhead"
    assert e % 128 == 0, "attention_dim must be a multiple of 128 (TPU lane width)"
    assert kp["ff_w1"].shape[1] % 128 == 0, "feedforward_dim must be a multiple of 128"

    bblk = _pick_block_b(batch, t)
    if bblk > 1:
        assert t % 8 == 0 and s_len % 8 == 0, "T and S must be multiples of 8 when Bblk > 1"
    grid = (batch // bblk,)

    kernel = functools.partial(_fused_layer_kernel, nhead=nhead)
    return pl.pallas_call(
        kernel,
        out_shape=jax.ShapeDtypeStruct((batch, t, e), x_bte.dtype),
        grid=grid,
        in_specs=[
            pl.BlockSpec((bblk, t, e), lambda b: (b, 0, 0)),       # x
            pl.BlockSpec((bblk, s_len, e), lambda b: (b, 0, 0)),   # memory
            _pspec(kp["ln1_g"].shape), _pspec(kp["ln1_b"].shape),
            _pspec(kp["sa_wqkv"].shape), _pspec(kp["sa_bqkv"].shape),
            _pspec(kp["sa_wo"].shape), _pspec(kp["sa_bo"].shape),
            _pspec(kp["ln2_g"].shape), _pspec(kp["ln2_b"].shape),
            _pspec(kp["ca_wqkv"].shape), _pspec(kp["ca_bqkv"].shape),
            _pspec(kp["ca_wo"].shape), _pspec(kp["ca_bo"].shape),
            _pspec(kp["ln3_g"].shape), _pspec(kp["ln3_b"].shape),
            _pspec(kp["ff_w1"].shape), _pspec(kp["ff_b1"].shape),
            _pspec(kp["ff_w2"].shape), _pspec(kp["ff_b2"].shape),
        ],
        out_specs=pl.BlockSpec((bblk, t, e), lambda b: (b, 0, 0)),
        compiler_params=pltpu.CompilerParams(
            dimension_semantics=("parallel",),
            vmem_limit_bytes=_VMEM_LIMIT_BYTES),
    )(x_bte, mem_bse,
      kp["ln1_g"], kp["ln1_b"], kp["sa_wqkv"], kp["sa_bqkv"], kp["sa_wo"], kp["sa_bo"],
      kp["ln2_g"], kp["ln2_b"], kp["ca_wqkv"], kp["ca_bqkv"], kp["ca_wo"], kp["ca_bo"],
      kp["ln3_g"], kp["ln3_b"], kp["ff_w1"], kp["ff_b1"], kp["ff_w2"], kp["ff_b2"])


def transformer_layer_forward(tgt_tbe, memory_sbe, kernel_params, nhead):
    """PyTorch-layout adapter: tgt (T, B, E), memory (S, B, E) -> (T, B, E)."""
    x = jnp.transpose(tgt_tbe, (1, 0, 2))
    mem = jnp.transpose(memory_sbe, (1, 0, 2))
    y = transformer_layer_forward_btc(x, mem, kernel_params, nhead)
    return jnp.transpose(y, (1, 0, 2))


# ---------------------------- parameters ----------------------------

def init_params(key, e, ff_dim):
    """PyTorch-layout parameters (as nn.MultiheadAttention / nn.Linear store them)."""
    keys = iter(jax.random.split(key, 24))

    def mat(shape, scale=0.05):
        return scale * jax.random.normal(next(keys), shape, jnp.float32)

    p = {
        "sa_in_w": mat((3 * e, e)), "sa_in_b": mat((3 * e,), 0.02),   # in_proj_weight/bias
        "sa_out_w": mat((e, e)), "sa_out_b": mat((e,), 0.02),         # out_proj
        "ca_in_w": mat((3 * e, e)), "ca_in_b": mat((3 * e,), 0.02),
        "ca_out_w": mat((e, e)), "ca_out_b": mat((e,), 0.02),
        "ff_w1": mat((ff_dim, e)), "ff_b1": mat((ff_dim,), 0.02),     # linear1.weight/bias
        "ff_w2": mat((e, ff_dim)), "ff_b2": mat((e,), 0.02),          # linear2.weight/bias
    }
    for i in (1, 2, 3):
        p[f"ln{i}_g"] = 1.0 + 0.1 * jax.random.normal(next(keys), (e,), jnp.float32)
        p[f"ln{i}_b"] = 0.1 * jax.random.normal(next(keys), (e,), jnp.float32)
    return p


def prepare_params(p, e, nhead, mm_dtype=_MM_DTYPE):
    """Offline rearrangement into kernel layout: per-head weight slabs, scale folded into Q,
    matmul weights in bf16, biases / LN params in f32."""
    hd = e // nhead
    scale = float(hd) ** -0.5

    def qkv_heads(in_w, in_b):
        w = jnp.transpose(in_w)                               # (E_in, 3E_out)
        w = w.reshape(e, 3, nhead, hd)
        w = jnp.transpose(w, (1, 2, 0, 3)).reshape(3 * nhead, e, hd)
        b = in_b.reshape(3 * nhead, 1, hd)
        qscale = jnp.concatenate([jnp.full((nhead,), scale, jnp.float32),
                                  jnp.ones((2 * nhead,), jnp.float32)])
        w = w * qscale[:, None, None]                         # fold 1/sqrt(hd) into Q proj
        b = b * qscale[:, None, None]
        return w.astype(mm_dtype), b.astype(jnp.float32)

    def out_heads(out_w, out_b):
        wo = jnp.transpose(out_w).reshape(nhead, hd, e)       # per-head rows of W_out^T
        return wo.astype(mm_dtype), out_b.reshape(1, e).astype(jnp.float32)

    kp = {}
    kp["sa_wqkv"], kp["sa_bqkv"] = qkv_heads(p["sa_in_w"], p["sa_in_b"])
    kp["sa_wo"], kp["sa_bo"] = out_heads(p["sa_out_w"], p["sa_out_b"])
    kp["ca_wqkv"], kp["ca_bqkv"] = qkv_heads(p["ca_in_w"], p["ca_in_b"])
    kp["ca_wo"], kp["ca_bo"] = out_heads(p["ca_out_w"], p["ca_out_b"])
    kp["ff_w1"] = jnp.transpose(p["ff_w1"]).astype(mm_dtype)              # (E, F)
    kp["ff_b1"] = p["ff_b1"].reshape(1, -1).astype(jnp.float32)
    kp["ff_w2"] = jnp.transpose(p["ff_w2"]).astype(mm_dtype)              # (F, E)
    kp["ff_b2"] = p["ff_b2"].reshape(1, -1).astype(jnp.float32)
    for i in (1, 2, 3):
        kp[f"ln{i}_g"] = p[f"ln{i}_g"].reshape(1, e).astype(jnp.float32)
        kp[f"ln{i}_b"] = p[f"ln{i}_b"].reshape(1, e).astype(jnp.float32)
    return kp


if __name__ == "__main__":
    # Small, module-consistent shapes: attention_dim=128, nhead=4 (head_dim=32),
    # feedforward_dim=256, tgt_len=8, mem_len=16, batch=2.
    E, NHEAD, FF_DIM = 128, 4, 256
    T, S, B = 8, 16, 2

    key = jax.random.PRNGKey(0)
    k_tgt, k_mem, k_par = jax.random.split(key, 3)
    tgt = jax.random.normal(k_tgt, (T, B, E), jnp.float32)
    memory = jax.random.normal(k_mem, (S, B, E), jnp.float32)

    params = init_params(k_par, E, FF_DIM)
    kparams = prepare_params(params, E, NHEAD)

    fwd = jax.jit(functools.partial(transformer_layer_forward, nhead=NHEAD))
    out = fwd(tgt, memory, kparams)
    jax.block_until_ready(out)

    assert out.shape == (T, B, E) and out.dtype == jnp.float32
    assert bool(jnp.all(jnp.isfinite(out)))
    print("KERNEL_OK")
</pallas_src>

<mosaic_0001>
module attributes {stable_mosaic.version = 11 : i64} {
  func.func @_fused_layer_kernel(%arg0: i32, %arg1: memref<1x8x128xf32, #tpu.memory_space<vmem>>, %arg2: memref<1x16x128xf32, #tpu.memory_space<vmem>>, %arg3: memref<1x128xf32, #tpu.memory_space<vmem>>, %arg4: memref<1x128xf32, #tpu.memory_space<vmem>>, %arg5: memref<12x128x32xbf16, #tpu.memory_space<vmem>>, %arg6: memref<12x1x32xf32, #tpu.memory_space<vmem>>, %arg7: memref<4x32x128xbf16, #tpu.memory_space<vmem>>, %arg8: memref<1x128xf32, #tpu.memory_space<vmem>>, %arg9: memref<1x128xf32, #tpu.memory_space<vmem>>, %arg10: memref<1x128xf32, #tpu.memory_space<vmem>>, %arg11: memref<12x128x32xbf16, #tpu.memory_space<vmem>>, %arg12: memref<12x1x32xf32, #tpu.memory_space<vmem>>, %arg13: memref<4x32x128xbf16, #tpu.memory_space<vmem>>, %arg14: memref<1x128xf32, #tpu.memory_space<vmem>>, %arg15: memref<1x128xf32, #tpu.memory_space<vmem>>, %arg16: memref<1x128xf32, #tpu.memory_space<vmem>>, %arg17: memref<128x256xbf16, #tpu.memory_space<vmem>>, %arg18: memref<1x256xf32, #tpu.memory_space<vmem>>, %arg19: memref<256x128xbf16, #tpu.memory_space<vmem>>, %arg20: memref<1x128xf32, #tpu.memory_space<vmem>>, %arg21: memref<1x8x128xf32, #tpu.memory_space<vmem>>) attributes {dimension_semantics = [#tpu.dimension_semantics<parallel>], iteration_bounds = array<i64: 2>, scalar_prefetch = 0 : i64, scratch_operands = 0 : i64, tpu.core_type = #tpu.core_type<tc>, window_params = [{transform_indices = @transform_0, window_bounds = array<i64: 1, 8, 128>}, {transform_indices = @transform_1, window_bounds = array<i64: 1, 16, 128>}, {pipeline_mode = #tpu.pipeline_mode<synchronous>, transform_indices = @transform_2, window_bounds = array<i64: 1, 128>}, {pipeline_mode = #tpu.pipeline_mode<synchronous>, transform_indices = @transform_3, window_bounds = array<i64: 1, 128>}, {pipeline_mode = #tpu.pipeline_mode<synchronous>, transform_indices = @transform_4, window_bounds = array<i64: 12, 128, 32>}, {pipeline_mode = #tpu.pipeline_mode<synchronous>, transform_indices = @transform_5, window_bounds = array<i64: 12, 1, 32>}, {pipeline_mode = #tpu.pipeline_mode<synchronous>, transform_indices = @transform_6, window_bounds = array<i64: 4, 32, 128>}, {pipeline_mode = #tpu.pipeline_mode<synchronous>, transform_indices = @transform_7, window_bounds = array<i64: 1, 128>}, {pipeline_mode = #tpu.pipeline_mode<synchronous>, transform_indices = @transform_8, window_bounds = array<i64: 1, 128>}, {pipeline_mode = #tpu.pipeline_mode<synchronous>, transform_indices = @transform_9, window_bounds = array<i64: 1, 128>}, {pipeline_mode = #tpu.pipeline_mode<synchronous>, transform_indices = @transform_10, window_bounds = array<i64: 12, 128, 32>}, {pipeline_mode = #tpu.pipeline_mode<synchronous>, transform_indices = @transform_11, window_bounds = array<i64: 12, 1, 32>}, {pipeline_mode = #tpu.pipeline_mode<synchronous>, transform_indices = @transform_12, window_bounds = array<i64: 4, 32, 128>}, {pipeline_mode = #tpu.pipeline_mode<synchronous>, transform_indices = @transform_13, window_bounds = array<i64: 1, 128>}, {pipeline_mode = #tpu.pipeline_mode<synchronous>, transform_indices = @transform_14, window_bounds = array<i64: 1, 128>}, {pipeline_mode = #tpu.pipeline_mode<synchronous>, transform_indices = @transform_15, window_bounds = array<i64: 1, 128>}, {pipeline_mode = #tpu.pipeline_mode<synchronous>, transform_indices = @transform_16, window_bounds = array<i64: 128, 256>}, {pipeline_mode = #tpu.pipeline_mode<synchronous>, transform_indices = @transform_17, window_bounds = array<i64: 1, 256>}, {pipeline_mode = #tpu.pipeline_mode<synchronous>, transform_indices = @transform_18, window_bounds = array<i64: 256, 128>}, {pipeline_mode = #tpu.pipeline_mode<synchronous>, transform_indices = @transform_19, window_bounds = array<i64: 1, 128>}, {transform_indices = @transform_20, window_bounds = array<i64: 1, 8, 128>}]} {
    %c0 = arith.constant 0 : index
    %c0_0 = arith.constant 0 : index
    %c0_1 = arith.constant 0 : index
    %0 = vector.load %arg1[%c0, %c0_0, %c0_1] : memref<1x8x128xf32, #tpu.memory_space<vmem>>, vector<1x8x128xf32>
    %1 = vector.shape_cast %0 : vector<1x8x128xf32> to vector<8x128xf32>
    %c0_2 = arith.constant 0 : index
    %c0_3 = arith.constant 0 : index
    %c0_4 = arith.constant 0 : index
    %2 = vector.load %arg2[%c0_2, %c0_3, %c0_4] : memref<1x16x128xf32, #tpu.memory_space<vmem>>, vector<1x16x128xf32>
    %3 = vector.shape_cast %2 : vector<1x16x128xf32> to vector<16x128xf32>
    %c0_5 = arith.constant 0 : index
    %c0_6 = arith.constant 0 : index
    %4 = vector.load %arg3[%c0_5, %c0_6] : memref<1x128xf32, #tpu.memory_space<vmem>>, vector<1x128xf32>
    %c0_7 = arith.constant 0 : index
    %c0_8 = arith.constant 0 : index
    %5 = vector.load %arg4[%c0_7, %c0_8] : memref<1x128xf32, #tpu.memory_space<vmem>>, vector<1x128xf32>
    %cst = arith.constant dense<0.000000e+00> : vector<8xf32>
    %6 = vector.multi_reduction <add>, %1, %cst [1] : vector<8x128xf32> to vector<8xf32>
    %7 = vector.shape_cast %6 : vector<8xf32> to vector<8x1xf32>
    %cst_9 = arith.constant 1.280000e+02 : f32
    %8 = vector.broadcast %cst_9 : f32 to vector<8x1xf32>
    %9 = arith.divf %7, %8 : vector<8x1xf32>
    %10 = vector.broadcast %9 : vector<8x1xf32> to vector<8x128xf32>
    %11 = arith.subf %1, %10 : vector<8x128xf32>
    %12 = arith.mulf %11, %11 : vector<8x128xf32>
    %cst_10 = arith.constant dense<0.000000e+00> : vector<8xf32>
    %13 = vector.multi_reduction <add>, %12, %cst_10 [1] : vector<8x128xf32> to vector<8xf32>
    %14 = vector.shape_cast %13 : vector<8xf32> to vector<8x1xf32>
    %cst_11 = arith.constant 1.280000e+02 : f32
    %15 = vector.broadcast %cst_11 : f32 to vector<8x1xf32>
    %16 = arith.divf %14, %15 : vector<8x1xf32>
    %17 = vector.broadcast %9 : vector<8x1xf32> to vector<8x128xf32>
    %18 = arith.subf %1, %17 : vector<8x128xf32>
    %cst_12 = arith.constant 9.99999974E-6 : f32
    %19 = vector.broadcast %cst_12 : f32 to vector<8x1xf32>
    %20 = arith.addf %16, %19 : vector<8x1xf32>
    %21 = math.rsqrt %20 : vector<8x1xf32>
    %22 = vector.broadcast %21 : vector<8x1xf32> to vector<8x128xf32>
    %23 = arith.mulf %18, %22 : vector<8x128xf32>
    %24 = vector.broadcast %4 : vector<1x128xf32> to vector<8x128xf32>
    %25 = arith.mulf %23, %24 : vector<8x128xf32>
    %26 = vector.broadcast %5 : vector<1x128xf32> to vector<8x128xf32>
    %27 = arith.addf %25, %26 : vector<8x128xf32>
    %28 = arith.truncf %27 : vector<8x128xf32> to vector<8x128xbf16>
    %cst_13 = arith.constant 0.000000e+00 : f32
    %29 = vector.broadcast %cst_13 : f32 to vector<8x128xf32>
    %c0_14 = arith.constant 0 : index
    %c0_15 = arith.constant 0 : index
    %c0_16 = arith.constant 0 : index
    %30 = vector.load %arg5[%c0_14, %c0_15, %c0_16] : memref<12x128x32xbf16, #tpu.memory_space<vmem>>, vector<1x128x32xbf16>
    %31 = vector.shape_cast %30 : vector<1x128x32xbf16> to vector<128x32xbf16>
    %cst_17 = arith.constant dense<0.000000e+00> : vector<8x32xf32>
    %32 = tpu.matmul %28, %31, %cst_17 {dimension_numbers = #tpu.dot_dimension_numbers<[1], [0], [0], [1], [0, 0, 1, 1], [], []>} : vector<8x128xbf16>, vector<128x32xbf16>, vector<8x32xf32> -> vector<8x32xf32>
    %c0_18 = arith.constant 0 : index
    %c0_19 = arith.constant 0 : index
    %c0_20 = arith.constant 0 : index
    %33 = vector.load %arg6[%c0_18, %c0_19, %c0_20] : memref<12x1x32xf32, #tpu.memory_space<vmem>>, vector<1x1x32xf32>
    %34 = vector.shape_cast %33 : vector<1x1x32xf32> to vector<1x32xf32>
    %35 = vector.broadcast %34 : vector<1x32xf32> to vector<8x32xf32>
    %36 = arith.addf %32, %35 : vector<8x32xf32>
    %c4 = arith.constant 4 : index
    %c0_21 = arith.constant 0 : index
    %c0_22 = arith.constant 0 : index
    %37 = vector.load %arg5[%c4, %c0_21, %c0_22] : memref<12x128x32xbf16, #tpu.memory_space<vmem>>, vector<1x128x32xbf16>
    %38 = vector.shape_cast %37 : vector<1x128x32xbf16> to vector<128x32xbf16>
    %cst_23 = arith.constant dense<0.000000e+00> : vector<8x32xf32>
    %39 = tpu.matmul %28, %38, %cst_23 {dimension_numbers = #tpu.dot_dimension_numbers<[1], [0], [0], [1], [0, 0, 1, 1], [], []>} : vector<8x128xbf16>, vector<128x32xbf16>, vector<8x32xf32> -> vector<8x32xf32>
    %c4_24 = arith.constant 4 : index
    %c0_25 = arith.constant 0 : index
    %c0_26 = arith.constant 0 : index
    %40 = vector.load %arg6[%c4_24, %c0_25, %c0_26] : memref<12x1x32xf32, #tpu.memory_space<vmem>>, vector<1x1x32xf32>
    %41 = vector.shape_cast %40 : vector<1x1x32xf32> to vector<1x32xf32>
    %42 = vector.broadcast %41 : vector<1x32xf32> to vector<8x32xf32>
    %43 = arith.addf %39, %42 : vector<8x32xf32>
    %c8 = arith.constant 8 : index
    %c0_27 = arith.constant 0 : index
    %c0_28 = arith.constant 0 : index
    %44 = vector.load %arg5[%c8, %c0_27, %c0_28] : memref<12x128x32xbf16, #tpu.memory_space<vmem>>, vector<1x128x32xbf16>
    %45 = vector.shape_cast %44 : vector<1x128x32xbf16> to vector<128x32xbf16>
    %cst_29 = arith.constant dense<0.000000e+00> : vector<8x32xf32>
    %46 = tpu.matmul %28, %45, %cst_29 {dimension_numbers = #tpu.dot_dimension_numbers<[1], [0], [0], [1], [0, 0, 1, 1], [], []>} : vector<8x128xbf16>, vector<128x32xbf16>, vector<8x32xf32> -> vector<8x32xf32>
    %c8_30 = arith.constant 8 : index
    %c0_31 = arith.constant 0 : index
    %c0_32 = arith.constant 0 : index
    %47 = vector.load %arg6[%c8_30, %c0_31, %c0_32] : memref<12x1x32xf32, #tpu.memory_space<vmem>>, vector<1x1x32xf32>
    %48 = vector.shape_cast %47 : vector<1x1x32xf32> to vector<1x32xf32>
    %49 = vector.broadcast %48 : vector<1x32xf32> to vector<8x32xf32>
    %50 = arith.addf %46, %49 : vector<8x32xf32>
    %51 = vector.shape_cast %36 : vector<8x32xf32> to vector<1x8x32xf32>
    %52 = vector.shape_cast %43 : vector<8x32xf32> to vector<1x8x32xf32>
    %53 = vector.shape_cast %50 : vector<8x32xf32> to vector<1x8x32xf32>
    %54 = arith.truncf %51 : vector<1x8x32xf32> to vector<1x8x32xbf16>
    %55 = arith.truncf %52 : vector<1x8x32xf32> to vector<1x8x32xbf16>
    "tpu.trace_start"() <{level = 10 : i32, message = "bqd,bkd->bqk"}> : () -> ()
    %cst_33 = arith.constant dense<0.000000e+00> : vector<1x8x8xf32>
    %56 = tpu.matmul %54, %55, %cst_33 {dimension_numbers = #tpu.dot_dimension_numbers<[2], [2], [1], [1], [0, 0, 0, 1, 1, 1], [0], [0]>} : vector<1x8x32xbf16>, vector<1x8x32xbf16>, vector<1x8x8xf32> -> vector<1x8x8xf32>
    "tpu.trace_stop"() : () -> ()
    %cst_34 = arith.constant dense<0xFF800000> : vector<1x8xf32>
    %57 = vector.multi_reduction <maximumf>, %56, %cst_34 [2] : vector<1x8x8xf32> to vector<1x8xf32>
    %58 = vector.shape_cast %57 : vector<1x8xf32> to vector<1x8x1xf32>
    %59 = vector.broadcast %58 : vector<1x8x1xf32> to vector<1x8x8xf32>
    %60 = arith.subf %56, %59 : vector<1x8x8xf32>
    %61 = math.exp %60 : vector<1x8x8xf32>
    %cst_35 = arith.constant dense<0.000000e+00> : vector<1x8xf32>
    %62 = vector.multi_reduction <add>, %61, %cst_35 [2] : vector<1x8x8xf32> to vector<1x8xf32>
    %63 = vector.shape_cast %62 : vector<1x8xf32> to vector<1x8x1xf32>
    %64 = vector.broadcast %63 : vector<1x8x1xf32> to vector<1x8x8xf32>
    %65 = arith.divf %61, %64 : vector<1x8x8xf32>
    %66 = arith.truncf %65 : vector<1x8x8xf32> to vector<1x8x8xbf16>
    %67 = arith.truncf %53 : vector<1x8x32xf32> to vector<1x8x32xbf16>
    "tpu.trace_start"() <{level = 10 : i32, message = "bqk,bkd->bqd"}> : () -> ()
    %cst_36 = arith.constant dense<0.000000e+00> : vector<1x8x32xf32>
    %68 = tpu.matmul %66, %67, %cst_36 {dimension_numbers = #tpu.dot_dimension_numbers<[2], [1], [1], [2], [0, 0, 0, 1, 1, 2], [0], [0]>} : vector<1x8x8xbf16>, vector<1x8x32xbf16>, vector<1x8x32xf32> -> vector<1x8x32xf32>
    "tpu.trace_stop"() : () -> ()
    %69 = vector.shape_cast %68 : vector<1x8x32xf32> to vector<8x32xf32>
    %70 = arith.truncf %69 : vector<8x32xf32> to vector<8x32xbf16>
    %c0_37 = arith.constant 0 : index
    %c0_38 = arith.constant 0 : index
    %c0_39 = arith.constant 0 : index
    %71 = vector.load %arg7[%c0_37, %c0_38, %c0_39] : memref<4x32x128xbf16, #tpu.memory_space<vmem>>, vector<1x32x128xbf16>
    %72 = vector.shape_cast %71 : vector<1x32x128xbf16> to vector<32x128xbf16>
    %cst_40 = arith.constant dense<0.000000e+00> : vector<8x128xf32>
    %73 = tpu.matmul %70, %72, %cst_40 {dimension_numbers = #tpu.dot_dimension_numbers<[1], [0], [0], [1], [0, 0, 1, 1], [], []>} : vector<8x32xbf16>, vector<32x128xbf16>, vector<8x128xf32> -> vector<8x128xf32>
    %74 = arith.addf %29, %73 : vector<8x128xf32>
    %c1 = arith.constant 1 : index
    %c0_41 = arith.constant 0 : index
    %c0_42 = arith.constant 0 : index
    %75 = vector.load %arg5[%c1, %c0_41, %c0_42] : memref<12x128x32xbf16, #tpu.memory_space<vmem>>, vector<1x128x32xbf16>
    %76 = vector.shape_cast %75 : vector<1x128x32xbf16> to vector<128x32xbf16>
    %cst_43 = arith.constant dense<0.000000e+00> : vector<8x32xf32>
    %77 = tpu.matmul %28, %76, %cst_43 {dimension_numbers = #tpu.dot_dimension_numbers<[1], [0], [0], [1], [0, 0, 1, 1], [], []>} : vector<8x128xbf16>, vector<128x32xbf16>, vector<8x32xf32> -> vector<8x32xf32>
    %c1_44 = arith.constant 1 : index
    %c0_45 = arith.constant 0 : index
    %c0_46 = arith.constant 0 : index
    %78 = vector.load %arg6[%c1_44, %c0_45, %c0_46] : memref<12x1x32xf32, #tpu.memory_space<vmem>>, vector<1x1x32xf32>
    %79 = vector.shape_cast %78 : vector<1x1x32xf32> to vector<1x32xf32>
    %80 = vector.broadcast %79 : vector<1x32xf32> to vector<8x32xf32>
    %81 = arith.addf %77, %80 : vector<8x32xf32>
    %c5 = arith.constant 5 : index
    %c0_47 = arith.constant 0 : index
    %c0_48 = arith.constant 0 : index
    %82 = vector.load %arg5[%c5, %c0_47, %c0_48] : memref<12x128x32xbf16, #tpu.memory_space<vmem>>, vector<1x128x32xbf16>
    %83 = vector.shape_cast %82 : vector<1x128x32xbf16> to vector<128x32xbf16>
    %cst_49 = arith.constant dense<0.000000e+00> : vector<8x32xf32>
    %84 = tpu.matmul %28, %83, %cst_49 {dimension_numbers = #tpu.dot_dimension_numbers<[1], [0], [0], [1], [0, 0, 1, 1], [], []>} : vector<8x128xbf16>, vector<128x32xbf16>, vector<8x32xf32> -> vector<8x32xf32>
    %c5_50 = arith.constant 5 : index
    %c0_51 = arith.constant 0 : index
    %c0_52 = arith.constant 0 : index
    %85 = vector.load %arg6[%c5_50, %c0_51, %c0_52] : memref<12x1x32xf32, #tpu.memory_space<vmem>>, vector<1x1x32xf32>
    %86 = vector.shape_cast %85 : vector<1x1x32xf32> to vector<1x32xf32>
    %87 = vector.broadcast %86 : vector<1x32xf32> to vector<8x32xf32>
    %88 = arith.addf %84, %87 : vector<8x32xf32>
    %c9 = arith.constant 9 : index
    %c0_53 = arith.constant 0 : index
    %c0_54 = arith.constant 0 : index
    %89 = vector.load %arg5[%c9, %c0_53, %c0_54] : memref<12x128x32xbf16, #tpu.memory_space<vmem>>, vector<1x128x32xbf16>
    %90 = vector.shape_cast %89 : vector<1x128x32xbf16> to vector<128x32xbf16>
    %cst_55 = arith.constant dense<0.000000e+00> : vector<8x32xf32>
    %91 = tpu.matmul %28, %90, %cst_55 {dimension_numbers = #tpu.dot_dimension_numbers<[1], [0], [0], [1], [0, 0, 1, 1], [], []>} : vector<8x128xbf16>, vector<128x32xbf16>, vector<8x32xf32> -> vector<8x32xf32>
    %c9_56 = arith.constant 9 : index
    %c0_57 = arith.constant 0 : index
    %c0_58 = arith.constant 0 : index
    %92 = vector.load %arg6[%c9_56, %c0_57, %c0_58] : memref<12x1x32xf32, #tpu.memory_space<vmem>>, vector<1x1x32xf32>
    %93 = vector.shape_cast %92 : vector<1x1x32xf32> to vector<1x32xf32>
    %94 = vector.broadcast %93 : vector<1x32xf32> to vector<8x32xf32>
    %95 = arith.addf %91, %94 : vector<8x32xf32>
    %96 = vector.shape_cast %81 : vector<8x32xf32> to vector<1x8x32xf32>
    %97 = vector.shape_cast %88 : vector<8x32xf32> to vector<1x8x32xf32>
    %98 = vector.shape_cast %95 : vector<8x32xf32> to vector<1x8x32xf32>
    %99 = arith.truncf %96 : vector<1x8x32xf32> to vector<1x8x32xbf16>
    %100 = arith.truncf %97 : vector<1x8x32xf32> to vector<1x8x32xbf16>
    "tpu.trace_start"() <{level = 10 : i32, message = "bqd,bkd->bqk"}> : () -> ()
    %cst_59 = arith.constant dense<0.000000e+00> : vector<1x8x8xf32>
    %101 = tpu.matmul %99, %100, %cst_59 {dimension_numbers = #tpu.dot_dimension_numbers<[2], [2], [1], [1], [0, 0, 0, 1, 1, 1], [0], [0]>} : vector<1x8x32xbf16>, vector<1x8x32xbf16>, vector<1x8x8xf32> -> vector<1x8x8xf32>
    "tpu.trace_stop"() : () -> ()
    %cst_60 = arith.constant dense<0xFF800000> : vector<1x8xf32>
    %102 = vector.multi_reduction <maximumf>, %101, %cst_60 [2] : vector<1x8x8xf32> to vector<1x8xf32>
    %103 = vector.shape_cast %102 : vector<1x8xf32> to vector<1x8x1xf32>
    %104 = vector.broadcast %103 : vector<1x8x1xf32> to vector<1x8x8xf32>
    %105 = arith.subf %101, %104 : vector<1x8x8xf32>
    %106 = math.exp %105 : vector<1x8x8xf32>
    %cst_61 = arith.constant dense<0.000000e+00> : vector<1x8xf32>
    %107 = vector.multi_reduction <add>, %106, %cst_61 [2] : vector<1x8x8xf32> to vector<1x8xf32>
    %108 = vector.shape_cast %107 : vector<1x8xf32> to vector<1x8x1xf32>
    %109 = vector.broadcast %108 : vector<1x8x1xf32> to vector<1x8x8xf32>
    %110 = arith.divf %106, %109 : vector<1x8x8xf32>
    %111 = arith.truncf %110 : vector<1x8x8xf32> to vector<1x8x8xbf16>
    %112 = arith.truncf %98 : vector<1x8x32xf32> to vector<1x8x32xbf16>
    "tpu.trace_start"() <{level = 10 : i32, message = "bqk,bkd->bqd"}> : () -> ()
    %cst_62 = arith.constant dense<0.000000e+00> : vector<1x8x32xf32>
    %113 = tpu.matmul %111, %112, %cst_62 {dimension_numbers = #tpu.dot_dimension_numbers<[2], [1], [1], [2], [0, 0, 0, 1, 1, 2], [0], [0]>} : vector<1x8x8xbf16>, vector<1x8x32xbf16>, vector<1x8x32xf32> -> vector<1x8x32xf32>
    "tpu.trace_stop"() : () -> ()
    %114 = vector.shape_cast %113 : vector<1x8x32xf32> to vector<8x32xf32>
    %115 = arith.truncf %114 : vector<8x32xf32> to vector<8x32xbf16>
    %c1_63 = arith.constant 1 : index
    %c0_64 = arith.constant 0 : index
    %c0_65 = arith.constant 0 : index
    %116 = vector.load %arg7[%c1_63, %c0_64, %c0_65] : memref<4x32x128xbf16, #tpu.memory_space<vmem>>, vector<1x32x128xbf16>
    %117 = vector.shape_cast %116 : vector<1x32x128xbf16> to vector<32x128xbf16>
    %cst_66 = arith.constant dense<0.000000e+00> : vector<8x128xf32>
    %118 = tpu.matmul %115, %117, %cst_66 {dimension_numbers = #tpu.dot_dimension_numbers<[1], [0], [0], [1], [0, 0, 1, 1], [], []>} : vector<8x32xbf16>, vector<32x128xbf16>, vector<8x128xf32> -> vector<8x128xf32>
    %119 = arith.addf %74, %118 : vector<8x128xf32>
    %c2 = arith.constant 2 : index
    %c0_67 = arith.constant 0 : index
    %c0_68 = arith.constant 0 : index
    %120 = vector.load %arg5[%c2, %c0_67, %c0_68] : memref<12x128x32xbf16, #tpu.memory_space<vmem>>, vector<1x128x32xbf16>
    %121 = vector.shape_cast %120 : vector<1x128x32xbf16> to vector<128x32xbf16>
    %cst_69 = arith.constant dense<0.000000e+00> : vector<8x32xf32>
    %122 = tpu.matmul %28, %121, %cst_69 {dimension_numbers = #tpu.dot_dimension_numbers<[1], [0], [0], [1], [0, 0, 1, 1], [], []>} : vector<8x128xbf16>, vector<128x32xbf16>, vector<8x32xf32> -> vector<8x32xf32>
    %c2_70 = arith.constant 2 : index
    %c0_71 = arith.constant 0 : index
    %c0_72 = arith.constant 0 : index
    %123 = vector.load %arg6[%c2_70, %c0_71, %c0_72] : memref<12x1x32xf32, #tpu.memory_space<vmem>>, vector<1x1x32xf32>
    %124 = vector.shape_cast %123 : vector<1x1x32xf32> to vector<1x32xf32>
    %125 = vector.broadcast %124 : vector<1x32xf32> to vector<8x32xf32>
    %126 = arith.addf %122, %125 : vector<8x32xf32>
    %c6 = arith.constant 6 : index
    %c0_73 = arith.constant 0 : index
    %c0_74 = arith.constant 0 : index
    %127 = vector.load %arg5[%c6, %c0_73, %c0_74] : memref<12x128x32xbf16, #tpu.memory_space<vmem>>, vector<1x128x32xbf16>
    %128 = vector.shape_cast %127 : vector<1x128x32xbf16> to vector<128x32xbf16>
    %cst_75 = arith.constant dense<0.000000e+00> : vector<8x32xf32>
    %129 = tpu.matmul %28, %128, %cst_75 {dimension_numbers = #tpu.dot_dimension_numbers<[1], [0], [0], [1], [0, 0, 1, 1], [], []>} : vector<8x128xbf16>, vector<128x32xbf16>, vector<8x32xf32> -> vector<8x32xf32>
    %c6_76 = arith.constant 6 : index
    %c0_77 = arith.constant 0 : index
    %c0_78 = arith.constant 0 : index
    %130 = vector.load %arg6[%c6_76, %c0_77, %c0_78] : memref<12x1x32xf32, #tpu.memory_space<vmem>>, vector<1x1x32xf32>
    %131 = vector.shape_cast %130 : vector<1x1x32xf32> to vector<1x32xf32>
    %132 = vector.broadcast %131 : vector<1x32xf32> to vector<8x32xf32>
    %133 = arith.addf %129, %132 : vector<8x32xf32>
    %c10 = arith.constant 10 : index
    %c0_79 = arith.constant 0 : index
    %c0_80 = arith.constant 0 : index
    %134 = vector.load %arg5[%c10, %c0_79, %c0_80] : memref<12x128x32xbf16, #tpu.memory_space<vmem>>, vector<1x128x32xbf16>
    %135 = vector.shape_cast %134 : vector<1x128x32xbf16> to vector<128x32xbf16>
    %cst_81 = arith.constant dense<0.000000e+00> : vector<8x32xf32>
    %136 = tpu.matmul %28, %135, %cst_81 {dimension_numbers = #tpu.dot_dimension_numbers<[1], [0], [0], [1], [0, 0, 1, 1], [], []>} : vector<8x128xbf16>, vector<128x32xbf16>, vector<8x32xf32> -> vector<8x32xf32>
    %c10_82 = arith.constant 10 : index
    %c0_83 = arith.constant 0 : index
    %c0_84 = arith.constant 0 : index
    %137 = vector.load %arg6[%c10_82, %c0_83, %c0_84] : memref<12x1x32xf32, #tpu.memory_space<vmem>>, vector<1x1x32xf32>
    %138 = vector.shape_cast %137 : vector<1x1x32xf32> to vector<1x32xf32>
    %139 = vector.broadcast %138 : vector<1x32xf32> to vector<8x32xf32>
    %140 = arith.addf %136, %139 : vector<8x32xf32>
    %141 = vector.shape_cast %126 : vector<8x32xf32> to vector<1x8x32xf32>
    %142 = vector.shape_cast %133 : vector<8x32xf32> to vector<1x8x32xf32>
    %143 = vector.shape_cast %140 : vector<8x32xf32> to vector<1x8x32xf32>
    %144 = arith.truncf %141 : vector<1x8x32xf32> to vector<1x8x32xbf16>
    %145 = arith.truncf %142 : vector<1x8x32xf32> to vector<1x8x32xbf16>
    "tpu.trace_start"() <{level = 10 : i32, message = "bqd,bkd->bqk"}> : () -> ()
    %cst_85 = arith.constant dense<0.000000e+00> : vector<1x8x8xf32>
    %146 = tpu.matmul %144, %145, %cst_85 {dimension_numbers = #tpu.dot_dimension_numbers<[2], [2], [1], [1], [0, 0, 0, 1, 1, 1], [0], [0]>} : vector<1x8x32xbf16>, vector<1x8x32xbf16>, vector<1x8x8xf32> -> vector<1x8x8xf32>
    "tpu.trace_stop"() : () -> ()
    %cst_86 = arith.constant dense<0xFF800000> : vector<1x8xf32>
    %147 = vector.multi_reduction <maximumf>, %146, %cst_86 [2] : vector<1x8x8xf32> to vector<1x8xf32>
    %148 = vector.shape_cast %147 : vector<1x8xf32> to vector<1x8x1xf32>
    %149 = vector.broadcast %148 : vector<1x8x1xf32> to vector<1x8x8xf32>
    %150 = arith.subf %146, %149 : vector<1x8x8xf32>
    %151 = math.exp %150 : vector<1x8x8xf32>
    %cst_87 = arith.constant dense<0.000000e+00> : vector<1x8xf32>
    %152 = vector.multi_reduction <add>, %151, %cst_87 [2] : vector<1x8x8xf32> to vector<1x8xf32>
    %153 = vector.shape_cast %152 : vector<1x8xf32> to vector<1x8x1xf32>
    %154 = vector.broadcast %153 : vector<1x8x1xf32> to vector<1x8x8xf32>
    %155 = arith.divf %151, %154 : vector<1x8x8xf32>
    %156 = arith.truncf %155 : vector<1x8x8xf32> to vector<1x8x8xbf16>
    %157 = arith.truncf %143 : vector<1x8x32xf32> to vector<1x8x32xbf16>
    "tpu.trace_start"() <{level = 10 : i32, message = "bqk,bkd->bqd"}> : () -> ()
    %cst_88 = arith.constant dense<0.000000e+00> : vector<1x8x32xf32>
    %158 = tpu.matmul %156, %157, %cst_88 {dimension_numbers = #tpu.dot_dimension_numbers<[2], [1], [1], [2], [0, 0, 0, 1, 1, 2], [0], [0]>} : vector<1x8x8xbf16>, vector<1x8x32xbf16>, vector<1x8x32xf32> -> vector<1x8x32xf32>
    "tpu.trace_stop"() : () -> ()
    %159 = vector.shape_cast %158 : vector<1x8x32xf32> to vector<8x32xf32>
    %160 = arith.truncf %159 : vector<8x32xf32> to vector<8x32xbf16>
    %c2_89 = arith.constant 2 : index
    %c0_90 = arith.constant 0 : index
    %c0_91 = arith.constant 0 : index
    %161 = vector.load %arg7[%c2_89, %c0_90, %c0_91] : memref<4x32x128xbf16, #tpu.memory_space<vmem>>, vector<1x32x128xbf16>
    %162 = vector.shape_cast %161 : vector<1x32x128xbf16> to vector<32x128xbf16>
    %cst_92 = arith.constant dense<0.000000e+00> : vector<8x128xf32>
    %163 = tpu.matmul %160, %162, %cst_92 {dimension_numbers = #tpu.dot_dimension_numbers<[1], [0], [0], [1], [0, 0, 1, 1], [], []>} : vector<8x32xbf16>, vector<32x128xbf16>, vector<8x128xf32> -> vector<8x128xf32>
    %164 = arith.addf %119, %163 : vector<8x128xf32>
    %c3 = arith.constant 3 : index
    %c0_93 = arith.constant 0 : index
    %c0_94 = arith.constant 0 : index
    %165 = vector.load %arg5[%c3, %c0_93, %c0_94] : memref<12x128x32xbf16, #tpu.memory_space<vmem>>, vector<1x128x32xbf16>
    %166 = vector.shape_cast %165 : vector<1x128x32xbf16> to vector<128x32xbf16>
    %cst_95 = arith.constant dense<0.000000e+00> : vector<8x32xf32>
    %167 = tpu.matmul %28, %166, %cst_95 {dimension_numbers = #tpu.dot_dimension_numbers<[1], [0], [0], [1], [0, 0, 1, 1], [], []>} : vector<8x128xbf16>, vector<128x32xbf16>, vector<8x32xf32> -> vector<8x32xf32>
    %c3_96 = arith.constant 3 : index
    %c0_97 = arith.constant 0 : index
    %c0_98 = arith.constant 0 : index
    %168 = vector.load %arg6[%c3_96, %c0_97, %c0_98] : memref<12x1x32xf32, #tpu.memory_space<vmem>>, vector<1x1x32xf32>
    %169 = vector.shape_cast %168 : vector<1x1x32xf32> to vector<1x32xf32>
    %170 = vector.broadcast %169 : vector<1x32xf32> to vector<8x32xf32>
    %171 = arith.addf %167, %170 : vector<8x32xf32>
    %c7 = arith.constant 7 : index
    %c0_99 = arith.constant 0 : index
    %c0_100 = arith.constant 0 : index
    %172 = vector.load %arg5[%c7, %c0_99, %c0_100] : memref<12x128x32xbf16, #tpu.memory_space<vmem>>, vector<1x128x32xbf16>
    %173 = vector.shape_cast %172 : vector<1x128x32xbf16> to vector<128x32xbf16>
    %cst_101 = arith.constant dense<0.000000e+00> : vector<8x32xf32>
    %174 = tpu.matmul %28, %173, %cst_101 {dimension_numbers = #tpu.dot_dimension_numbers<[1], [0], [0], [1], [0, 0, 1, 1], [], []>} : vector<8x128xbf16>, vector<128x32xbf16>, vector<8x32xf32> -> vector<8x32xf32>
    %c7_102 = arith.constant 7 : index
    %c0_103 = arith.constant 0 : index
    %c0_104 = arith.constant 0 : index
    %175 = vector.load %arg6[%c7_102, %c0_103, %c0_104] : memref<12x1x32xf32, #tpu.memory_space<vmem>>, vector<1x1x32xf32>
    %176 = vector.shape_cast %175 : vector<1x1x32xf32> to vector<1x32xf32>
    %177 = vector.broadcast %176 : vector<1x32xf32> to vector<8x32xf32>
    %178 = arith.addf %174, %177 : vector<8x32xf32>
    %c11 = arith.constant 11 : index
    %c0_105 = arith.constant 0 : index
    %c0_106 = arith.constant 0 : index
    %179 = vector.load %arg5[%c11, %c0_105, %c0_106] : memref<12x128x32xbf16, #tpu.memory_space<vmem>>, vector<1x128x32xbf16>
    %180 = vector.shape_cast %179 : vector<1x128x32xbf16> to vector<128x32xbf16>
    %cst_107 = arith.constant dense<0.000000e+00> : vector<8x32xf32>
    %181 = tpu.matmul %28, %180, %cst_107 {dimension_numbers = #tpu.dot_dimension_numbers<[1], [0], [0], [1], [0, 0, 1, 1], [], []>} : vector<8x128xbf16>, vector<128x32xbf16>, vector<8x32xf32> -> vector<8x32xf32>
    %c11_108 = arith.constant 11 : index
    %c0_109 = arith.constant 0 : index
    %c0_110 = arith.constant 0 : index
    %182 = vector.load %arg6[%c11_108, %c0_109, %c0_110] : memref<12x1x32xf32, #tpu.memory_space<vmem>>, vector<1x1x32xf32>
    %183 = vector.shape_cast %182 : vector<1x1x32xf32> to vector<1x32xf32>
    %184 = vector.broadcast %183 : vector<1x32xf32> to vector<8x32xf32>
    %185 = arith.addf %181, %184 : vector<8x32xf32>
    %186 = vector.shape_cast %171 : vector<8x32xf32> to vector<1x8x32xf32>
    %187 = vector.shape_cast %178 : vector<8x32xf32> to vector<1x8x32xf32>
    %188 = vector.shape_cast %185 : vector<8x32xf32> to vector<1x8x32xf32>
    %189 = arith.truncf %186 : vector<1x8x32xf32> to vector<1x8x32xbf16>
    %190 = arith.truncf %187 : vector<1x8x32xf32> to vector<1x8x32xbf16>
    "tpu.trace_start"() <{level = 10 : i32, message = "bqd,bkd->bqk"}> : () -> ()
    %cst_111 = arith.constant dense<0.000000e+00> : vector<1x8x8xf32>
    %191 = tpu.matmul %189, %190, %cst_111 {dimension_numbers = #tpu.dot_dimension_numbers<[2], [2], [1], [1], [0, 0, 0, 1, 1, 1], [0], [0]>} : vector<1x8x32xbf16>, vector<1x8x32xbf16>, vector<1x8x8xf32> -> vector<1x8x8xf32>
    "tpu.trace_stop"() : () -> ()
    %cst_112 = arith.constant dense<0xFF800000> : vector<1x8xf32>
    %192 = vector.multi_reduction <maximumf>, %191, %cst_112 [2] : vector<1x8x8xf32> to vector<1x8xf32>
    %193 = vector.shape_cast %192 : vector<1x8xf32> to vector<1x8x1xf32>
    %194 = vector.broadcast %193 : vector<1x8x1xf32> to vector<1x8x8xf32>
    %195 = arith.subf %191, %194 : vector<1x8x8xf32>
    %196 = math.exp %195 : vector<1x8x8xf32>
    %cst_113 = arith.constant dense<0.000000e+00> : vector<1x8xf32>
    %197 = vector.multi_reduction <add>, %196, %cst_113 [2] : vector<1x8x8xf32> to vector<1x8xf32>
    %198 = vector.shape_cast %197 : vector<1x8xf32> to vector<1x8x1xf32>
    %199 = vector.broadcast %198 : vector<1x8x1xf32> to vector<1x8x8xf32>
    %200 = arith.divf %196, %199 : vector<1x8x8xf32>
    %201 = arith.truncf %200 : vector<1x8x8xf32> to vector<1x8x8xbf16>
    %202 = arith.truncf %188 : vector<1x8x32xf32> to vector<1x8x32xbf16>
    "tpu.trace_start"() <{level = 10 : i32, message = "bqk,bkd->bqd"}> : () -> ()
    %cst_114 = arith.constant dense<0.000000e+00> : vector<1x8x32xf32>
    %203 = tpu.matmul %201, %202, %cst_114 {dimension_numbers = #tpu.dot_dimension_numbers<[2], [1], [1], [2], [0, 0, 0, 1, 1, 2], [0], [0]>} : vector<1x8x8xbf16>, vector<1x8x32xbf16>, vector<1x8x32xf32> -> vector<1x8x32xf32>
    "tpu.trace_stop"() : () -> ()
    %204 = vector.shape_cast %203 : vector<1x8x32xf32> to vector<8x32xf32>
    %205 = arith.truncf %204 : vector<8x32xf32> to vector<8x32xbf16>
    %c3_115 = arith.constant 3 : index
    %c0_116 = arith.constant 0 : index
    %c0_117 = arith.constant 0 : index
    %206 = vector.load %arg7[%c3_115, %c0_116, %c0_117] : memref<4x32x128xbf16, #tpu.memory_space<vmem>>, vector<1x32x128xbf16>
    %207 = vector.shape_cast %206 : vector<1x32x128xbf16> to vector<32x128xbf16>
    %cst_118 = arith.constant dense<0.000000e+00> : vector<8x128xf32>
    %208 = tpu.matmul %205, %207, %cst_118 {dimension_numbers = #tpu.dot_dimension_numbers<[1], [0], [0], [1], [0, 0, 1, 1], [], []>} : vector<8x32xbf16>, vector<32x128xbf16>, vector<8x128xf32> -> vector<8x128xf32>
    %209 = arith.addf %164, %208 : vector<8x128xf32>
    %c0_119 = arith.constant 0 : index
    %c0_120 = arith.constant 0 : index
    %210 = vector.load %arg8[%c0_119, %c0_120] : memref<1x128xf32, #tpu.memory_space<vmem>>, vector<1x128xf32>
    %211 = vector.broadcast %210 : vector<1x128xf32> to vector<8x128xf32>
    %212 = arith.addf %209, %211 : vector<8x128xf32>
    %213 = arith.addf %1, %212 : vector<8x128xf32>
    %c0_121 = arith.constant 0 : index
    %c0_122 = arith.constant 0 : index
    %214 = vector.load %arg9[%c0_121, %c0_122] : memref<1x128xf32, #tpu.memory_space<vmem>>, vector<1x128xf32>
    %c0_123 = arith.constant 0 : index
    %c0_124 = arith.constant 0 : index
    %215 = vector.load %arg10[%c0_123, %c0_124] : memref<1x128xf32, #tpu.memory_space<vmem>>, vector<1x128xf32>
    %cst_125 = arith.constant dense<0.000000e+00> : vector<8xf32>
    %216 = vector.multi_reduction <add>, %213, %cst_125 [1] : vector<8x128xf32> to vector<8xf32>
    %217 = vector.shape_cast %216 : vector<8xf32> to vector<8x1xf32>
    %cst_126 = arith.constant 1.280000e+02 : f32
    %218 = vector.broadcast %cst_126 : f32 to vector<8x1xf32>
    %219 = arith.divf %217, %218 : vector<8x1xf32>
    %220 = vector.broadcast %219 : vector<8x1xf32> to vector<8x128xf32>
    %221 = arith.subf %213, %220 : vector<8x128xf32>
    %222 = arith.mulf %221, %221 : vector<8x128xf32>
    %cst_127 = arith.constant dense<0.000000e+00> : vector<8xf32>
    %223 = vector.multi_reduction <add>, %222, %cst_127 [1] : vector<8x128xf32> to vector<8xf32>
    %224 = vector.shape_cast %223 : vector<8xf32> to vector<8x1xf32>
    %cst_128 = arith.constant 1.280000e+02 : f32
    %225 = vector.broadcast %cst_128 : f32 to vector<8x1xf32>
    %226 = arith.divf %224, %225 : vector<8x1xf32>
    %227 = vector.broadcast %219 : vector<8x1xf32> to vector<8x128xf32>
    %228 = arith.subf %213, %227 : vector<8x128xf32>
    %cst_129 = arith.constant 9.99999974E-6 : f32
    %229 = vector.broadcast %cst_129 : f32 to vector<8x1xf32>
    %230 = arith.addf %226, %229 : vector<8x1xf32>
    %231 = math.rsqrt %230 : vector<8x1xf32>
    %232 = vector.broadcast %231 : vector<8x1xf32> to vector<8x128xf32>
    %233 = arith.mulf %228, %232 : vector<8x128xf32>
    %234 = vector.broadcast %214 : vector<1x128xf32> to vector<8x128xf32>
    %235 = arith.mulf %233, %234 : vector<8x128xf32>
    %236 = vector.broadcast %215 : vector<1x128xf32> to vector<8x128xf32>
    %237 = arith.addf %235, %236 : vector<8x128xf32>
    %238 = arith.truncf %237 : vector<8x128xf32> to vector<8x128xbf16>
    %239 = arith.truncf %3 : vector<16x128xf32> to vector<16x128xbf16>
    %cst_130 = arith.constant 0.000000e+00 : f32
    %240 = vector.broadcast %cst_130 : f32 to vector<8x128xf32>
    %c0_131 = arith.constant 0 : index
    %c0_132 = arith.constant 0 : index
    %c0_133 = arith.constant 0 : index
    %241 = vector.load %arg11[%c0_131, %c0_132, %c0_133] : memref<12x128x32xbf16, #tpu.memory_space<vmem>>, vector<1x128x32xbf16>
    %242 = vector.shape_cast %241 : vector<1x128x32xbf16> to vector<128x32xbf16>
    %cst_134 = arith.constant dense<0.000000e+00> : vector<8x32xf32>
    %243 = tpu.matmul %238, %242, %cst_134 {dimension_numbers = #tpu.dot_dimension_numbers<[1], [0], [0], [1], [0, 0, 1, 1], [], []>} : vector<8x128xbf16>, vector<128x32xbf16>, vector<8x32xf32> -> vector<8x32xf32>
    %c0_135 = arith.constant 0 : index
    %c0_136 = arith.constant 0 : index
    %c0_137 = arith.constant 0 : index
    %244 = vector.load %arg12[%c0_135, %c0_136, %c0_137] : memref<12x1x32xf32, #tpu.memory_space<vmem>>, vector<1x1x32xf32>
    %245 = vector.shape_cast %244 : vector<1x1x32xf32> to vector<1x32xf32>
    %246 = vector.broadcast %245 : vector<1x32xf32> to vector<8x32xf32>
    %247 = arith.addf %243, %246 : vector<8x32xf32>
    %c4_138 = arith.constant 4 : index
    %c0_139 = arith.constant 0 : index
    %c0_140 = arith.constant 0 : index
    %248 = vector.load %arg11[%c4_138, %c0_139, %c0_140] : memref<12x128x32xbf16, #tpu.memory_space<vmem>>, vector<1x128x32xbf16>
    %249 = vector.shape_cast %248 : vector<1x128x32xbf16> to vector<128x32xbf16>
    %cst_141 = arith.constant dense<0.000000e+00> : vector<16x32xf32>
    %250 = tpu.matmul %239, %249, %cst_141 {dimension_numbers = #tpu.dot_dimension_numbers<[1], [0], [0], [1], [0, 0, 1, 1], [], []>} : vector<16x128xbf16>, vector<128x32xbf16>, vector<16x32xf32> -> vector<16x32xf32>
    %c4_142 = arith.constant 4 : index
    %c0_143 = arith.constant 0 : index
    %c0_144 = arith.constant 0 : index
    %251 = vector.load %arg12[%c4_142, %c0_143, %c0_144] : memref<12x1x32xf32, #tpu.memory_space<vmem>>, vector<1x1x32xf32>
    %252 = vector.shape_cast %251 : vector<1x1x32xf32> to vector<1x32xf32>
    %253 = vector.broadcast %252 : vector<1x32xf32> to vector<16x32xf32>
    %254 = arith.addf %250, %253 : vector<16x32xf32>
    %c8_145 = arith.constant 8 : index
    %c0_146 = arith.constant 0 : index
    %c0_147 = arith.constant 0 : index
    %255 = vector.load %arg11[%c8_145, %c0_146, %c0_147] : memref<12x128x32xbf16, #tpu.memory_space<vmem>>, vector<1x128x32xbf16>
    %256 = vector.shape_cast %255 : vector<1x128x32xbf16> to vector<128x32xbf16>
    %cst_148 = arith.constant dense<0.000000e+00> : vector<16x32xf32>
    %257 = tpu.matmul %239, %256, %cst_148 {dimension_numbers = #tpu.dot_dimension_numbers<[1], [0], [0], [1], [0, 0, 1, 1], [], []>} : vector<16x128xbf16>, vector<128x32xbf16>, vector<16x32xf32> -> vector<16x32xf32>
    %c8_149 = arith.constant 8 : index
    %c0_150 = arith.constant 0 : index
    %c0_151 = arith.constant 0 : index
    %258 = vector.load %arg12[%c8_149, %c0_150, %c0_151] : memref<12x1x32xf32, #tpu.memory_space<vmem>>, vector<1x1x32xf32>
    %259 = vector.shape_cast %258 : vector<1x1x32xf32> to vector<1x32xf32>
    %260 = vector.broadcast %259 : vector<1x32xf32> to vector<16x32xf32>
    %261 = arith.addf %257, %260 : vector<16x32xf32>
    %262 = vector.shape_cast %247 : vector<8x32xf32> to vector<1x8x32xf32>
    %263 = vector.shape_cast %254 : vector<16x32xf32> to vector<1x16x32xf32>
    %264 = vector.shape_cast %261 : vector<16x32xf32> to vector<1x16x32xf32>
    %265 = arith.truncf %262 : vector<1x8x32xf32> to vector<1x8x32xbf16>
    %266 = arith.truncf %263 : vector<1x16x32xf32> to vector<1x16x32xbf16>
    "tpu.trace_start"() <{level = 10 : i32, message = "bqd,bkd->bqk"}> : () -> ()
    %cst_152 = arith.constant dense<0.000000e+00> : vector<1x8x16xf32>
    %267 = tpu.matmul %265, %266, %cst_152 {dimension_numbers = #tpu.dot_dimension_numbers<[2], [2], [1], [1], [0, 0, 0, 1, 1, 1], [0], [0]>} : vector<1x8x32xbf16>, vector<1x16x32xbf16>, vector<1x8x16xf32> -> vector<1x8x16xf32>
    "tpu.trace_stop"() : () -> ()
    %cst_153 = arith.constant dense<0xFF800000> : vector<1x8xf32>
    %268 = vector.multi_reduction <maximumf>, %267, %cst_153 [2] : vector<1x8x16xf32> to vector<1x8xf32>
    %269 = vector.shape_cast %268 : vector<1x8xf32> to vector<1x8x1xf32>
    %270 = vector.broadcast %269 : vector<1x8x1xf32> to vector<1x8x16xf32>
    %271 = arith.subf %267, %270 : vector<1x8x16xf32>
    %272 = math.exp %271 : vector<1x8x16xf32>
    %cst_154 = arith.constant dense<0.000000e+00> : vector<1x8xf32>
    %273 = vector.multi_reduction <add>, %272, %cst_154 [2] : vector<1x8x16xf32> to vector<1x8xf32>
    %274 = vector.shape_cast %273 : vector<1x8xf32> to vector<1x8x1xf32>
    %275 = vector.broadcast %274 : vector<1x8x1xf32> to vector<1x8x16xf32>
    %276 = arith.divf %272, %275 : vector<1x8x16xf32>
    %277 = arith.truncf %276 : vector<1x8x16xf32> to vector<1x8x16xbf16>
    %278 = arith.truncf %264 : vector<1x16x32xf32> to vector<1x16x32xbf16>
    "tpu.trace_start"() <{level = 10 : i32, message = "bqk,bkd->bqd"}> : () -> ()
    %cst_155 = arith.constant dense<0.000000e+00> : vector<1x8x32xf32>
    %279 = tpu.matmul %277, %278, %cst_155 {dimension_numbers = #tpu.dot_dimension_numbers<[2], [1], [1], [2], [0, 0, 0, 1, 1, 2], [0], [0]>} : vector<1x8x16xbf16>, vector<1x16x32xbf16>, vector<1x8x32xf32> -> vector<1x8x32xf32>
    "tpu.trace_stop"() : () -> ()
    %280 = vector.shape_cast %279 : vector<1x8x32xf32> to vector<8x32xf32>
    %281 = arith.truncf %280 : vector<8x32xf32> to vector<8x32xbf16>
    %c0_156 = arith.constant 0 : index
    %c0_157 = arith.constant 0 : index
    %c0_158 = arith.constant 0 : index
    %282 = vector.load %arg13[%c0_156, %c0_157, %c0_158] : memref<4x32x128xbf16, #tpu.memory_space<vmem>>, vector<1x32x128xbf16>
    %283 = vector.shape_cast %282 : vector<1x32x128xbf16> to vector<32x128xbf16>
    %cst_159 = arith.constant dense<0.000000e+00> : vector<8x128xf32>
    %284 = tpu.matmul %281, %283, %cst_159 {dimension_numbers = #tpu.dot_dimension_numbers<[1], [0], [0], [1], [0, 0, 1, 1], [], []>} : vector<8x32xbf16>, vector<32x128xbf16>, vector<8x128xf32> -> vector<8x128xf32>
    %285 = arith.addf %240, %284 : vector<8x128xf32>
    %c1_160 = arith.constant 1 : index
    %c0_161 = arith.constant 0 : index
    %c0_162 = arith.constant 0 : index
    %286 = vector.load %arg11[%c1_160, %c0_161, %c0_162] : memref<12x128x32xbf16, #tpu.memory_space<vmem>>, vector<1x128x32xbf16>
    %287 = vector.shape_cast %286 : vector<1x128x32xbf16> to vector<128x32xbf16>
    %cst_163 = arith.constant dense<0.000000e+00> : vector<8x32xf32>
    %288 = tpu.matmul %238, %287, %cst_163 {dimension_numbers = #tpu.dot_dimension_numbers<[1], [0], [0], [1], [0, 0, 1, 1], [], []>} : vector<8x128xbf16>, vector<128x32xbf16>, vector<8x32xf32> -> vector<8x32xf32>
    %c1_164 = arith.constant 1 : index
    %c0_165 = arith.constant 0 : index
    %c0_166 = arith.constant 0 : index
    %289 = vector.load %arg12[%c1_164, %c0_165, %c0_166] : memref<12x1x32xf32, #tpu.memory_space<vmem>>, vector<1x1x32xf32>
    %290 = vector.shape_cast %289 : vector<1x1x32xf32> to vector<1x32xf32>
    %291 = vector.broadcast %290 : vector<1x32xf32> to vector<8x32xf32>
    %292 = arith.addf %288, %291 : vector<8x32xf32>
    %c5_167 = arith.constant 5 : index
    %c0_168 = arith.constant 0 : index
    %c0_169 = arith.constant 0 : index
    %293 = vector.load %arg11[%c5_167, %c0_168, %c0_169] : memref<12x128x32xbf16, #tpu.memory_space<vmem>>, vector<1x128x32xbf16>
    %294 = vector.shape_cast %293 : vector<1x128x32xbf16> to vector<128x32xbf16>
    %cst_170 = arith.constant dense<0.000000e+00> : vector<16x32xf32>
    %295 = tpu.matmul %239, %294, %cst_170 {dimension_numbers = #tpu.dot_dimension_numbers<[1], [0], [0], [1], [0, 0, 1, 1], [], []>} : vector<16x128xbf16>, vector<128x32xbf16>, vector<16x32xf32> -> vector<16x32xf32>
    %c5_171 = arith.constant 5 : index
    %c0_172 = arith.constant 0 : index
    %c0_173 = arith.constant 0 : index
    %296 = vector.load %arg12[%c5_171, %c0_172, %c0_173] : memref<12x1x32xf32, #tpu.memory_space<vmem>>, vector<1x1x32xf32>
    %297 = vector.shape_cast %296 : vector<1x1x32xf32> to vector<1x32xf32>
    %298 = vector.broadcast %297 : vector<1x32xf32> to vector<16x32xf32>
    %299 = arith.addf %295, %298 : vector<16x32xf32>
    %c9_174 = arith.constant 9 : index
    %c0_175 = arith.constant 0 : index
    %c0_176 = arith.constant 0 : index
    %300 = vector.load %arg11[%c9_174, %c0_175, %c0_176] : memref<12x128x32xbf16, #tpu.memory_space<vmem>>, vector<1x128x32xbf16>
    %301 = vector.shape_cast %300 : vector<1x128x32xbf16> to vector<128x32xbf16>
    %cst_177 = arith.constant dense<0.000000e+00> : vector<16x32xf32>
    %302 = tpu.matmul %239, %301, %cst_177 {dimension_numbers = #tpu.dot_dimension_numbers<[1], [0], [0], [1], [0, 0, 1, 1], [], []>} : vector<16x128xbf16>, vector<128x32xbf16>, vector<16x32xf32> -> vector<16x32xf32>
    %c9_178 = arith.constant 9 : index
    %c0_179 = arith.constant 0 : index
    %c0_180 = arith.constant 0 : index
    %303 = vector.load %arg12[%c9_178, %c0_179, %c0_180] : memref<12x1x32xf32, #tpu.memory_space<vmem>>, vector<1x1x32xf32>
    %304 = vector.shape_cast %303 : vector<1x1x32xf32> to vector<1x32xf32>
    %305 = vector.broadcast %304 : vector<1x32xf32> to vector<16x32xf32>
    %306 = arith.addf %302, %305 : vector<16x32xf32>
    %307 = vector.shape_cast %292 : vector<8x32xf32> to vector<1x8x32xf32>
    %308 = vector.shape_cast %299 : vector<16x32xf32> to vector<1x16x32xf32>
    %309 = vector.shape_cast %306 : vector<16x32xf32> to vector<1x16x32xf32>
    %310 = arith.truncf %307 : vector<1x8x32xf32> to vector<1x8x32xbf16>
    %311 = arith.truncf %308 : vector<1x16x32xf32> to vector<1x16x32xbf16>
    "tpu.trace_start"() <{level = 10 : i32, message = "bqd,bkd->bqk"}> : () -> ()
    %cst_181 = arith.constant dense<0.000000e+00> : vector<1x8x16xf32>
    %312 = tpu.matmul %310, %311, %cst_181 {dimension_numbers = #tpu.dot_dimension_numbers<[2], [2], [1], [1], [0, 0, 0, 1, 1, 1], [0], [0]>} : vector<1x8x32xbf16>, vector<1x16x32xbf16>, vector<1x8x16xf32> -> vector<1x8x16xf32>
    "tpu.trace_stop"() : () -> ()
    %cst_182 = arith.constant dense<0xFF800000> : vector<1x8xf32>
    %313 = vector.multi_reduction <maximumf>, %312, %cst_182 [2] : vector<1x8x16xf32> to vector<1x8xf32>
    %314 = vector.shape_cast %313 : vector<1x8xf32> to vector<1x8x1xf32>
    %315 = vector.broadcast %314 : vector<1x8x1xf32> to vector<1x8x16xf32>
    %316 = arith.subf %312, %315 : vector<1x8x16xf32>
    %317 = math.exp %316 : vector<1x8x16xf32>
    %cst_183 = arith.constant dense<0.000000e+00> : vector<1x8xf32>
    %318 = vector.multi_reduction <add>, %317, %cst_183 [2] : vector<1x8x16xf32> to vector<1x8xf32>
    %319 = vector.shape_cast %318 : vector<1x8xf32> to vector<1x8x1xf32>
    %320 = vector.broadcast %319 : vector<1x8x1xf32> to vector<1x8x16xf32>
    %321 = arith.divf %317, %320 : vector<1x8x16xf32>
    %322 = arith.truncf %321 : vector<1x8x16xf32> to vector<1x8x16xbf16>
    %323 = arith.truncf %309 : vector<1x16x32xf32> to vector<1x16x32xbf16>
    "tpu.trace_start"() <{level = 10 : i32, message = "bqk,bkd->bqd"}> : () -> ()
    %cst_184 = arith.constant dense<0.000000e+00> : vector<1x8x32xf32>
    %324 = tpu.matmul %322, %323, %cst_184 {dimension_numbers = #tpu.dot_dimension_numbers<[2], [1], [1], [2], [0, 0, 0, 1, 1, 2], [0], [0]>} : vector<1x8x16xbf16>, vector<1x16x32xbf16>, vector<1x8x32xf32> -> vector<1x8x32xf32>
    "tpu.trace_stop"() : () -> ()
    %325 = vector.shape_cast %324 : vector<1x8x32xf32> to vector<8x32xf32>
    %326 = arith.truncf %325 : vector<8x32xf32> to vector<8x32xbf16>
    %c1_185 = arith.constant 1 : index
    %c0_186 = arith.constant 0 : index
    %c0_187 = arith.constant 0 : index
    %327 = vector.load %arg13[%c1_185, %c0_186, %c0_187] : memref<4x32x128xbf16, #tpu.memory_space<vmem>>, vector<1x32x128xbf16>
    %328 = vector.shape_cast %327 : vector<1x32x128xbf16> to vector<32x128xbf16>
    %cst_188 = arith.constant dense<0.000000e+00> : vector<8x128xf32>
    %329 = tpu.matmul %326, %328, %cst_188 {dimension_numbers = #tpu.dot_dimension_numbers<[1], [0], [0], [1], [0, 0, 1, 1], [], []>} : vector<8x32xbf16>, vector<32x128xbf16>, vector<8x128xf32> -> vector<8x128xf32>
    %330 = arith.addf %285, %329 : vector<8x128xf32>
    %c2_189 = arith.constant 2 : index
    %c0_190 = arith.constant 0 : index
    %c0_191 = arith.constant 0 : index
    %331 = vector.load %arg11[%c2_189, %c0_190, %c0_191] : memref<12x128x32xbf16, #tpu.memory_space<vmem>>, vector<1x128x32xbf16>
    %332 = vector.shape_cast %331 : vector<1x128x32xbf16> to vector<128x32xbf16>
    %cst_192 = arith.constant dense<0.000000e+00> : vector<8x32xf32>
    %333 = tpu.matmul %238, %332, %cst_192 {dimension_numbers = #tpu.dot_dimension_numbers<[1], [0], [0], [1], [0, 0, 1, 1], [], []>} : vector<8x128xbf16>, vector<128x32xbf16>, vector<8x32xf32> -> vector<8x32xf32>
    %c2_193 = arith.constant 2 : index
    %c0_194 = arith.constant 0 : index
    %c0_195 = arith.constant 0 : index
    %334 = vector.load %arg12[%c2_193, %c0_194, %c0_195] : memref<12x1x32xf32, #tpu.memory_space<vmem>>, vector<1x1x32xf32>
    %335 = vector.shape_cast %334 : vector<1x1x32xf32> to vector<1x32xf32>
    %336 = vector.broadcast %335 : vector<1x32xf32> to vector<8x32xf32>
    %337 = arith.addf %333, %336 : vector<8x32xf32>
    %c6_196 = arith.constant 6 : index
    %c0_197 = arith.constant 0 : index
    %c0_198 = arith.constant 0 : index
    %338 = vector.load %arg11[%c6_196, %c0_197, %c0_198] : memref<12x128x32xbf16, #tpu.memory_space<vmem>>, vector<1x128x32xbf16>
    %339 = vector.shape_cast %338 : vector<1x128x32xbf16> to vector<128x32xbf16>
    %cst_199 = arith.constant dense<0.000000e+00> : vector<16x32xf32>
    %340 = tpu.matmul %239, %339, %cst_199 {dimension_numbers = #tpu.dot_dimension_numbers<[1], [0], [0], [1], [0, 0, 1, 1], [], []>} : vector<16x128xbf16>, vector<128x32xbf16>, vector<16x32xf32> -> vector<16x32xf32>
    %c6_200 = arith.constant 6 : index
    %c0_201 = arith.constant 0 : index
    %c0_202 = arith.constant 0 : index
    %341 = vector.load %arg12[%c6_200, %c0_201, %c0_202] : memref<12x1x32xf32, #tpu.memory_space<vmem>>, vector<1x1x32xf32>
    %342 = vector.shape_cast %341 : vector<1x1x32xf32> to vector<1x32xf32>
    %343 = vector.broadcast %342 : vector<1x32xf32> to vector<16x32xf32>
    %344 = arith.addf %340, %343 : vector<16x32xf32>
    %c10_203 = arith.constant 10 : index
    %c0_204 = arith.constant 0 : index
    %c0_205 = arith.constant 0 : index
    %345 = vector.load %arg11[%c10_203, %c0_204, %c0_205] : memref<12x128x32xbf16, #tpu.memory_space<vmem>>, vector<1x128x32xbf16>
    %346 = vector.shape_cast %345 : vector<1x128x32xbf16> to vector<128x32xbf16>
    %cst_206 = arith.constant dense<0.000000e+00> : vector<16x32xf32>
    %347 = tpu.matmul %239, %346, %cst_206 {dimension_numbers = #tpu.dot_dimension_numbers<[1], [0], [0], [1], [0, 0, 1, 1], [], []>} : vector<16x128xbf16>, vector<128x32xbf16>, vector<16x32xf32> -> vector<16x32xf32>
    %c10_207 = arith.constant 10 : index
    %c0_208 = arith.constant 0 : index
    %c0_209 = arith.constant 0 : index
    %348 = vector.load %arg12[%c10_207, %c0_208, %c0_209] : memref<12x1x32xf32, #tpu.memory_space<vmem>>, vector<1x1x32xf32>
    %349 = vector.shape_cast %348 : vector<1x1x32xf32> to vector<1x32xf32>
    %350 = vector.broadcast %349 : vector<1x32xf32> to vector<16x32xf32>
    %351 = arith.addf %347, %350 : vector<16x32xf32>
    %352 = vector.shape_cast %337 : vector<8x32xf32> to vector<1x8x32xf32>
    %353 = vector.shape_cast %344 : vector<16x32xf32> to vector<1x16x32xf32>
    %354 = vector.shape_cast %351 : vector<16x32xf32> to vector<1x16x32xf32>
    %355 = arith.truncf %352 : vector<1x8x32xf32> to vector<1x8x32xbf16>
    %356 = arith.truncf %353 : vector<1x16x32xf32> to vector<1x16x32xbf16>
    "tpu.trace_start"() <{level = 10 : i32, message = "bqd,bkd->bqk"}> : () -> ()
    %cst_210 = arith.constant dense<0.000000e+00> : vector<1x8x16xf32>
    %357 = tpu.matmul %355, %356, %cst_210 {dimension_numbers = #tpu.dot_dimension_numbers<[2], [2], [1], [1], [0, 0, 0, 1, 1, 1], [0], [0]>} : vector<1x8x32xbf16>, vector<1x16x32xbf16>, vector<1x8x16xf32> -> vector<1x8x16xf32>
    "tpu.trace_stop"() : () -> ()
    %cst_211 = arith.constant dense<0xFF800000> : vector<1x8xf32>
    %358 = vector.multi_reduction <maximumf>, %357, %cst_211 [2] : vector<1x8x16xf32> to vector<1x8xf32>
    %359 = vector.shape_cast %358 : vector<1x8xf32> to vector<1x8x1xf32>
    %360 = vector.broadcast %359 : vector<1x8x1xf32> to vector<1x8x16xf32>
    %361 = arith.subf %357, %360 : vector<1x8x16xf32>
    %362 = math.exp %361 : vector<1x8x16xf32>
    %cst_212 = arith.constant dense<0.000000e+00> : vector<1x8xf32>
    %363 = vector.multi_reduction <add>, %362, %cst_212 [2] : vector<1x8x16xf32> to vector<1x8xf32>
    %364 = vector.shape_cast %363 : vector<1x8xf32> to vector<1x8x1xf32>
    %365 = vector.broadcast %364 : vector<1x8x1xf32> to vector<1x8x16xf32>
    %366 = arith.divf %362, %365 : vector<1x8x16xf32>
    %367 = arith.truncf %366 : vector<1x8x16xf32> to vector<1x8x16xbf16>
    %368 = arith.truncf %354 : vector<1x16x32xf32> to vector<1x16x32xbf16>
    "tpu.trace_start"() <{level = 10 : i32, message = "bqk,bkd->bqd"}> : () -> ()
    %cst_213 = arith.constant dense<0.000000e+00> : vector<1x8x32xf32>
    %369 = tpu.matmul %367, %368, %cst_213 {dimension_numbers = #tpu.dot_dimension_numbers<[2], [1], [1], [2], [0, 0, 0, 1, 1, 2], [0], [0]>} : vector<1x8x16xbf16>, vector<1x16x32xbf16>, vector<1x8x32xf32> -> vector<1x8x32xf32>
    "tpu.trace_stop"() : () -> ()
    %370 = vector.shape_cast %369 : vector<1x8x32xf32> to vector<8x32xf32>
    %371 = arith.truncf %370 : vector<8x32xf32> to vector<8x32xbf16>
    %c2_214 = arith.constant 2 : index
    %c0_215 = arith.constant 0 : index
    %c0_216 = arith.constant 0 : index
    %372 = vector.load %arg13[%c2_214, %c0_215, %c0_216] : memref<4x32x128xbf16, #tpu.memory_space<vmem>>, vector<1x32x128xbf16>
    %373 = vector.shape_cast %372 : vector<1x32x128xbf16> to vector<32x128xbf16>
    %cst_217 = arith.constant dense<0.000000e+00> : vector<8x128xf32>
    %374 = tpu.matmul %371, %373, %cst_217 {dimension_numbers = #tpu.dot_dimension_numbers<[1], [0], [0], [1], [0, 0, 1, 1], [], []>} : vector<8x32xbf16>, vector<32x128xbf16>, vector<8x128xf32> -> vector<8x128xf32>
    %375 = arith.addf %330, %374 : vector<8x128xf32>
    %c3_218 = arith.constant 3 : index
    %c0_219 = arith.constant 0 : index
    %c0_220 = arith.constant 0 : index
    %376 = vector.load %arg11[%c3_218, %c0_219, %c0_220] : memref<12x128x32xbf16, #tpu.memory_space<vmem>>, vector<1x128x32xbf16>
    %377 = vector.shape_cast %376 : vector<1x128x32xbf16> to vector<128x32xbf16>
    %cst_221 = arith.constant dense<0.000000e+00> : vector<8x32xf32>
    %378 = tpu.matmul %238, %377, %cst_221 {dimension_numbers = #tpu.dot_dimension_numbers<[1], [0], [0], [1], [0, 0, 1, 1], [], []>} : vector<8x128xbf16>, vector<128x32xbf16>, vector<8x32xf32> -> vector<8x32xf32>
    %c3_222 = arith.constant 3 : index
    %c0_223 = arith.constant 0 : index
    %c0_224 = arith.constant 0 : index
    %379 = vector.load %arg12[%c3_222, %c0_223, %c0_224] : memref<12x1x32xf32, #tpu.memory_space<vmem>>, vector<1x1x32xf32>
    %380 = vector.shape_cast %379 : vector<1x1x32xf32> to vector<1x32xf32>
    %381 = vector.broadcast %380 : vector<1x32xf32> to vector<8x32xf32>
    %382 = arith.addf %378, %381 : vector<8x32xf32>
    %c7_225 = arith.constant 7 : index
    %c0_226 = arith.constant 0 : index
    %c0_227 = arith.constant 0 : index
    %383 = vector.load %arg11[%c7_225, %c0_226, %c0_227] : memref<12x128x32xbf16, #tpu.memory_space<vmem>>, vector<1x128x32xbf16>
    %384 = vector.shape_cast %383 : vector<1x128x32xbf16> to vector<128x32xbf16>
    %cst_228 = arith.constant dense<0.000000e+00> : vector<16x32xf32>
    %385 = tpu.matmul %239, %384, %cst_228 {dimension_numbers = #tpu.dot_dimension_numbers<[1], [0], [0], [1], [0, 0, 1, 1], [], []>} : vector<16x128xbf16>, vector<128x32xbf16>, vector<16x32xf32> -> vector<16x32xf32>
    %c7_229 = arith.constant 7 : index
    %c0_230 = arith.constant 0 : index
    %c0_231 = arith.constant 0 : index
    %386 = vector.load %arg12[%c7_229, %c0_230, %c0_231] : memref<12x1x32xf32, #tpu.memory_space<vmem>>, vector<1x1x32xf32>
    %387 = vector.shape_cast %386 : vector<1x1x32xf32> to vector<1x32xf32>
    %388 = vector.broadcast %387 : vector<1x32xf32> to vector<16x32xf32>
    %389 = arith.addf %385, %388 : vector<16x32xf32>
    %c11_232 = arith.constant 11 : index
    %c0_233 = arith.constant 0 : index
    %c0_234 = arith.constant 0 : index
    %390 = vector.load %arg11[%c11_232, %c0_233, %c0_234] : memref<12x128x32xbf16, #tpu.memory_space<vmem>>, vector<1x128x32xbf16>
    %391 = vector.shape_cast %390 : vector<1x128x32xbf16> to vector<128x32xbf16>
    %cst_235 = arith.constant dense<0.000000e+00> : vector<16x32xf32>
    %392 = tpu.matmul %239, %391, %cst_235 {dimension_numbers = #tpu.dot_dimension_numbers<[1], [0], [0], [1], [0, 0, 1, 1], [], []>} : vector<16x128xbf16>, vector<128x32xbf16>, vector<16x32xf32> -> vector<16x32xf32>
    %c11_236 = arith.constant 11 : index
    %c0_237 = arith.constant 0 : index
    %c0_238 = arith.constant 0 : index
    %393 = vector.load %arg12[%c11_236, %c0_237, %c0_238] : memref<12x1x32xf32, #tpu.memory_space<vmem>>, vector<1x1x32xf32>
    %394 = vector.shape_cast %393 : vector<1x1x32xf32> to vector<1x32xf32>
    %395 = vector.broadcast %394 : vector<1x32xf32> to vector<16x32xf32>
    %396 = arith.addf %392, %395 : vector<16x32xf32>
    %397 = vector.shape_cast %382 : vector<8x32xf32> to vector<1x8x32xf32>
    %398 = vector.shape_cast %389 : vector<16x32xf32> to vector<1x16x32xf32>
    %399 = vector.shape_cast %396 : vector<16x32xf32> to vector<1x16x32xf32>
    %400 = arith.truncf %397 : vector<1x8x32xf32> to vector<1x8x32xbf16>
    %401 = arith.truncf %398 : vector<1x16x32xf32> to vector<1x16x32xbf16>
    "tpu.trace_start"() <{level = 10 : i32, message = "bqd,bkd->bqk"}> : () -> ()
    %cst_239 = arith.constant dense<0.000000e+00> : vector<1x8x16xf32>
    %402 = tpu.matmul %400, %401, %cst_239 {dimension_numbers = #tpu.dot_dimension_numbers<[2], [2], [1], [1], [0, 0, 0, 1, 1, 1], [0], [0]>} : vector<1x8x32xbf16>, vector<1x16x32xbf16>, vector<1x8x16xf32> -> vector<1x8x16xf32>
    "tpu.trace_stop"() : () -> ()
    %cst_240 = arith.constant dense<0xFF800000> : vector<1x8xf32>
    %403 = vector.multi_reduction <maximumf>, %402, %cst_240 [2] : vector<1x8x16xf32> to vector<1x8xf32>
    %404 = vector.shape_cast %403 : vector<1x8xf32> to vector<1x8x1xf32>
    %405 = vector.broadcast %404 : vector<1x8x1xf32> to vector<1x8x16xf32>
    %406 = arith.subf %402, %405 : vector<1x8x16xf32>
    %407 = math.exp %406 : vector<1x8x16xf32>
    %cst_241 = arith.constant dense<0.000000e+00> : vector<1x8xf32>
    %408 = vector.multi_reduction <add>, %407, %cst_241 [2] : vector<1x8x16xf32> to vector<1x8xf32>
    %409 = vector.shape_cast %408 : vector<1x8xf32> to vector<1x8x1xf32>
    %410 = vector.broadcast %409 : vector<1x8x1xf32> to vector<1x8x16xf32>
    %411 = arith.divf %407, %410 : vector<1x8x16xf32>
    %412 = arith.truncf %411 : vector<1x8x16xf32> to vector<1x8x16xbf16>
    %413 = arith.truncf %399 : vector<1x16x32xf32> to vector<1x16x32xbf16>
    "tpu.trace_start"() <{level = 10 : i32, message = "bqk,bkd->bqd"}> : () -> ()
    %cst_242 = arith.constant dense<0.000000e+00> : vector<1x8x32xf32>
    %414 = tpu.matmul %412, %413, %cst_242 {dimension_numbers = #tpu.dot_dimension_numbers<[2], [1], [1], [2], [0, 0, 0, 1, 1, 2], [0], [0]>} : vector<1x8x16xbf16>, vector<1x16x32xbf16>, vector<1x8x32xf32> -> vector<1x8x32xf32>
    "tpu.trace_stop"() : () -> ()
    %415 = vector.shape_cast %414 : vector<1x8x32xf32> to vector<8x32xf32>
    %416 = arith.truncf %415 : vector<8x32xf32> to vector<8x32xbf16>
    %c3_243 = arith.constant 3 : index
    %c0_244 = arith.constant 0 : index
    %c0_245 = arith.constant 0 : index
    %417 = vector.load %arg13[%c3_243, %c0_244, %c0_245] : memref<4x32x128xbf16, #tpu.memory_space<vmem>>, vector<1x32x128xbf16>
    %418 = vector.shape_cast %417 : vector<1x32x128xbf16> to vector<32x128xbf16>
    %cst_246 = arith.constant dense<0.000000e+00> : vector<8x128xf32>
    %419 = tpu.matmul %416, %418, %cst_246 {dimension_numbers = #tpu.dot_dimension_numbers<[1], [0], [0], [1], [0, 0, 1, 1], [], []>} : vector<8x32xbf16>, vector<32x128xbf16>, vector<8x128xf32> -> vector<8x128xf32>
    %420 = arith.addf %375, %419 : vector<8x128xf32>
    %c0_247 = arith.constant 0 : index
    %c0_248 = arith.constant 0 : index
    %421 = vector.load %arg14[%c0_247, %c0_248] : memref<1x128xf32, #tpu.memory_space<vmem>>, vector<1x128xf32>
    %422 = vector.broadcast %421 : vector<1x128xf32> to vector<8x128xf32>
    %423 = arith.addf %420, %422 : vector<8x128xf32>
    %424 = arith.addf %213, %423 : vector<8x128xf32>
    %c0_249 = arith.constant 0 : index
    %c0_250 = arith.constant 0 : index
    %425 = vector.load %arg15[%c0_249, %c0_250] : memref<1x128xf32, #tpu.memory_space<vmem>>, vector<1x128xf32>
    %c0_251 = arith.constant 0 : index
    %c0_252 = arith.constant 0 : index
    %426 = vector.load %arg16[%c0_251, %c0_252] : memref<1x128xf32, #tpu.memory_space<vmem>>, vector<1x128xf32>
    %cst_253 = arith.constant dense<0.000000e+00> : vector<8xf32>
    %427 = vector.multi_reduction <add>, %424, %cst_253 [1] : vector<8x128xf32> to vector<8xf32>
    %428 = vector.shape_cast %427 : vector<8xf32> to vector<8x1xf32>
    %cst_254 = arith.constant 1.280000e+02 : f32
    %429 = vector.broadcast %cst_254 : f32 to vector<8x1xf32>
    %430 = arith.divf %428, %429 : vector<8x1xf32>
    %431 = vector.broadcast %430 : vector<8x1xf32> to vector<8x128xf32>
    %432 = arith.subf %424, %431 : vector<8x128xf32>
    %433 = arith.mulf %432, %432 : vector<8x128xf32>
    %cst_255 = arith.constant dense<0.000000e+00> : vector<8xf32>
    %434 = vector.multi_reduction <add>, %433, %cst_255 [1] : vector<8x128xf32> to vector<8xf32>
    %435 = vector.shape_cast %434 : vector<8xf32> to vector<8x1xf32>
    %cst_256 = arith.constant 1.280000e+02 : f32
    %436 = vector.broadcast %cst_256 : f32 to vector<8x1xf32>
    %437 = arith.divf %435, %436 : vector<8x1xf32>
    %438 = vector.broadcast %430 : vector<8x1xf32> to vector<8x128xf32>
    %439 = arith.subf %424, %438 : vector<8x128xf32>
    %cst_257 = arith.constant 9.99999974E-6 : f32
    %440 = vector.broadcast %cst_257 : f32 to vector<8x1xf32>
    %441 = arith.addf %437, %440 : vector<8x1xf32>
    %442 = math.rsqrt %441 : vector<8x1xf32>
    %443 = vector.broadcast %442 : vector<8x1xf32> to vector<8x128xf32>
    %444 = arith.mulf %439, %443 : vector<8x128xf32>
    %445 = vector.broadcast %425 : vector<1x128xf32> to vector<8x128xf32>
    %446 = arith.mulf %444, %445 : vector<8x128xf32>
    %447 = vector.broadcast %426 : vector<1x128xf32> to vector<8x128xf32>
    %448 = arith.addf %446, %447 : vector<8x128xf32>
    %449 = arith.truncf %448 : vector<8x128xf32> to vector<8x128xbf16>
    %c0_258 = arith.constant 0 : index
    %c0_259 = arith.constant 0 : index
    %450 = vector.load %arg17[%c0_258, %c0_259] : memref<128x256xbf16, #tpu.memory_space<vmem>>, vector<128x256xbf16>
    %cst_260 = arith.constant dense<0.000000e+00> : vector<8x256xf32>
    %451 = tpu.matmul %449, %450, %cst_260 {dimension_numbers = #tpu.dot_dimension_numbers<[1], [0], [0], [1], [0, 0, 1, 1], [], []>} : vector<8x128xbf16>, vector<128x256xbf16>, vector<8x256xf32> -> vector<8x256xf32>
    %c0_261 = arith.constant 0 : index
    %c0_262 = arith.constant 0 : index
    %452 = vector.load %arg18[%c0_261, %c0_262] : memref<1x256xf32, #tpu.memory_space<vmem>>, vector<1x256xf32>
    %453 = vector.broadcast %452 : vector<1x256xf32> to vector<8x256xf32>
    %454 = arith.addf %451, %453 : vector<8x256xf32>
    %cst_263 = arith.constant 0.000000e+00 : f32
    %455 = vector.broadcast %cst_263 : f32 to vector<8x256xf32>
    %456 = arith.maximumf %454, %455 : vector<8x256xf32>
    %457 = arith.truncf %456 : vector<8x256xf32> to vector<8x256xbf16>
    %c0_264 = arith.constant 0 : index
    %c0_265 = arith.constant 0 : index
    %458 = vector.load %arg19[%c0_264, %c0_265] : memref<256x128xbf16, #tpu.memory_space<vmem>>, vector<256x128xbf16>
    %cst_266 = arith.constant dense<0.000000e+00> : vector<8x128xf32>
    %459 = tpu.matmul %457, %458, %cst_266 {dimension_numbers = #tpu.dot_dimension_numbers<[1], [0], [0], [1], [0, 0, 1, 1], [], []>} : vector<8x256xbf16>, vector<256x128xbf16>, vector<8x128xf32> -> vector<8x128xf32>
    %c0_267 = arith.constant 0 : index
    %c0_268 = arith.constant 0 : index
    %460 = vector.load %arg20[%c0_267, %c0_268] : memref<1x128xf32, #tpu.memory_space<vmem>>, vector<1x128xf32>
    %461 = vector.broadcast %460 : vector<1x128xf32> to vector<8x128xf32>
    %462 = arith.addf %459, %461 : vector<8x128xf32>
    %463 = arith.addf %424, %462 : vector<8x128xf32>
    %464 = vector.shape_cast %463 : vector<8x128xf32> to vector<1x8x128xf32>
    %c0_269 = arith.constant 0 : index
    %c0_270 = arith.constant 0 : index
    %c0_271 = arith.constant 0 : index
    %465 = vector.load %arg21[%c0_269, %c0_270, %c0_271] : memref<1x8x128xf32, #tpu.memory_space<vmem>>, vector<1x8x128xf32>
    tpu.vector_store %arg21[%c0_269, %c0_270, %c0_271], %464 {strides = array<i32>} : memref<1x8x128xf32, #tpu.memory_space<vmem>>, vector<1x8x128xf32>,
    return
  }
  func.func @transform_0(%arg0: i32) -> (i32, i32, i32) {
    %c0_i32 = arith.constant 0 : i32
    %c0_i32_0 = arith.constant 0 : i32
    %c0_i32_1 = arith.constant 0 : i32
    return %arg0, %c0_i32, %c0_i32_0 : i32, i32, i32
  }
  func.func @transform_1(%arg0: i32) -> (i32, i32, i32) {
    %c0_i32 = arith.constant 0 : i32
    %c0_i32_0 = arith.constant 0 : i32
    %c0_i32_1 = arith.constant 0 : i32
    return %arg0, %c0_i32, %c0_i32_0 : i32, i32, i32
  }
  func.func @transform_2(%arg0: i32) -> (i32, i32) {
    %c0_i32 = arith.constant 0 : i32
    %c0_i32_0 = arith.constant 0 : i32
    %c0_i32_1 = arith.constant 0 : i32
    return %c0_i32, %c0_i32_0 : i32, i32
  }
  func.func @transform_3(%arg0: i32) -> (i32, i32) {
    %c0_i32 = arith.constant 0 : i32
    %c0_i32_0 = arith.constant 0 : i32
    %c0_i32_1 = arith.constant 0 : i32
    return %c0_i32, %c0_i32_0 : i32, i32
  }
  func.func @transform_4(%arg0: i32) -> (i32, i32, i32) {
    %c0_i32 = arith.constant 0 : i32
    %c0_i32_0 = arith.constant 0 : i32
    %c0_i32_1 = arith.constant 0 : i32
    %c0_i32_2 = arith.constant 0 : i32
    return %c0_i32, %c0_i32_0, %c0_i32_1 : i32, i32, i32
  }
  func.func @transform_5(%arg0: i32) -> (i32, i32, i32) {
    %c0_i32 = arith.constant 0 : i32
    %c0_i32_0 = arith.constant 0 : i32
    %c0_i32_1 = arith.constant 0 : i32
    %c0_i32_2 = arith.constant 0 : i32
    return %c0_i32, %c0_i32_0, %c0_i32_1 : i32, i32, i32
  }
  func.func @transform_6(%arg0: i32) -> (i32, i32, i32) {
    %c0_i32 = arith.constant 0 : i32
    %c0_i32_0 = arith.constant 0 : i32
    %c0_i32_1 = arith.constant 0 : i32
    %c0_i32_2 = arith.constant 0 : i32
    return %c0_i32, %c0_i32_0, %c0_i32_1 : i32, i32, i32
  }
  func.func @transform_7(%arg0: i32) -> (i32, i32) {
    %c0_i32 = arith.constant 0 : i32
    %c0_i32_0 = arith.constant 0 : i32
    %c0_i32_1 = arith.constant 0 : i32
    return %c0_i32, %c0_i32_0 : i32, i32
  }
  func.func @transform_8(%arg0: i32) -> (i32, i32) {
    %c0_i32 = arith.constant 0 : i32
    %c0_i32_0 = arith.constant 0 : i32
    %c0_i32_1 = arith.constant 0 : i32
    return %c0_i32, %c0_i32_0 : i32, i32
  }
  func.func @transform_9(%arg0: i32) -> (i32, i32) {
    %c0_i32 = arith.constant 0 : i32
    %c0_i32_0 = arith.constant 0 : i32
    %c0_i32_1 = arith.constant 0 : i32
    return %c0_i32, %c0_i32_0 : i32, i32
  }
  func.func @transform_10(%arg0: i32) -> (i32, i32, i32) {
    %c0_i32 = arith.constant 0 : i32
    %c0_i32_0 = arith.constant 0 : i32
    %c0_i32_1 = arith.constant 0 : i32
    %c0_i32_2 = arith.constant 0 : i32
    return %c0_i32, %c0_i32_0, %c0_i32_1 : i32, i32, i32
  }
  func.func @transform_11(%arg0: i32) -> (i32, i32, i32) {
    %c0_i32 = arith.constant 0 : i32
    %c0_i32_0 = arith.constant 0 : i32
    %c0_i32_1 = arith.constant 0 : i32
    %c0_i32_2 = arith.constant 0 : i32
    return %c0_i32, %c0_i32_0, %c0_i32_1 : i32, i32, i32
  }
  func.func @transform_12(%arg0: i32) -> (i32, i32, i32) {
    %c0_i32 = arith.constant 0 : i32
    %c0_i32_0 = arith.constant 0 : i32
    %c0_i32_1 = arith.constant 0 : i32
    %c0_i32_2 = arith.constant 0 : i32
    return %c0_i32, %c0_i32_0, %c0_i32_1 : i32, i32, i32
  }
  func.func @transform_13(%arg0: i32) -> (i32, i32) {
    %c0_i32 = arith.constant 0 : i32
    %c0_i32_0 = arith.constant 0 : i32
    %c0_i32_1 = arith.constant 0 : i32
    return %c0_i32, %c0_i32_0 : i32, i32
  }
  func.func @transform_14(%arg0: i32) -> (i32, i32) {
    %c0_i32 = arith.constant 0 : i32
    %c0_i32_0 = arith.constant 0 : i32
    %c0_i32_1 = arith.constant 0 : i32
    return %c0_i32, %c0_i32_0 : i32, i32
  }
  func.func @transform_15(%arg0: i32) -> (i32, i32) {
    %c0_i32 = arith.constant 0 : i32
    %c0_i32_0 = arith.constant 0 : i32
    %c0_i32_1 = arith.constant 0 : i32
    return %c0_i32, %c0_i32_0 : i32, i32
  }
  func.func @transform_16(%arg0: i32) -> (i32, i32) {
    %c0_i32 = arith.constant 0 : i32
    %c0_i32_0 = arith.constant 0 : i32
    %c0_i32_1 = arith.constant 0 : i32
    return %c0_i32, %c0_i32_0 : i32, i32
  }
  func.func @transform_17(%arg0: i32) -> (i32, i32) {
    %c0_i32 = arith.constant 0 : i32
    %c0_i32_0 = arith.constant 0 : i32
    %c0_i32_1 = arith.constant 0 : i32
    return %c0_i32, %c0_i32_0 : i32, i32
  }
  func.func @transform_18(%arg0: i32) -> (i32, i32) {
    %c0_i32 = arith.constant 0 : i32
    %c0_i32_0 = arith.constant 0 : i32
    %c0_i32_1 = arith.constant 0 : i32
    return %c0_i32, %c0_i32_0 : i32, i32
  }
  func.func @transform_19(%arg0: i32) -> (i32, i32) {
    %c0_i32 = arith.constant 0 : i32
    %c0_i32_0 = arith.constant 0 : i32
    %c0_i32_1 = arith.constant 0 : i32
    return %c0_i32, %c0_i32_0 : i32, i32
  }
  func.func @transform_20(%arg0: i32) -> (i32, i32, i32) {
    %c0_i32 = arith.constant 0 : i32
    %c0_i32_0 = arith.constant 0 : i32
    %c0_i32_1 = arith.constant 0 : i32
    return %arg0, %c0_i32, %c0_i32_0 : i32, i32, i32
  }
}

</mosaic_0001>

<llo_original>
// kernel: transformer_layer_forward.1
$region0: #{transformer_layer_forward.1}
  #allocation0 [shape = 'u32[]', space=smem, size = 0x4, offset = 0x4, fixed_abs, tag = 'smem constant byte address 0x4 - core index']
  #allocation1 [shape = 'u32[72,128]{1,0:T(1,128)}', space=vmem, size = 0x9000, scoped, tag = 'internal scratch']
  %s0 = inlined_call_operand.vmem [shape: f32[2,8,128], index: 0, kind: input, shape index: {}]
  %s1 = inlined_call_operand.vmem [shape: f32[2,16,128], index: 1, kind: input, shape index: {}]
  %s2 = inlined_call_operand.vmem [shape: f32[1,128], index: 2, kind: input, shape index: {}]
  %s3 = inlined_call_operand.vmem [shape: f32[1,128], index: 3, kind: input, shape index: {}]
  %s4 = inlined_call_operand.vmem [shape: bf16[12,128,32], index: 4, kind: input, shape index: {}]
  %s5 = inlined_call_operand.vmem [shape: f32[12,1,32], index: 5, kind: input, shape index: {}]
  %s6 = inlined_call_operand.vmem [shape: bf16[4,32,128], index: 6, kind: input, shape index: {}]
  %s7 = inlined_call_operand.vmem [shape: f32[1,128], index: 7, kind: input, shape index: {}]
  %s8 = inlined_call_operand.vmem [shape: f32[1,128], index: 8, kind: input, shape index: {}]
  %s9 = inlined_call_operand.vmem [shape: f32[1,128], index: 9, kind: input, shape index: {}]
  %s10 = inlined_call_operand.vmem [shape: bf16[12,128,32], index: 10, kind: input, shape index: {}]
  %s11 = inlined_call_operand.vmem [shape: f32[12,1,32], index: 11, kind: input, shape index: {}]
  %s12 = inlined_call_operand.vmem [shape: bf16[4,32,128], index: 12, kind: input, shape index: {}]
  %s13 = inlined_call_operand.vmem [shape: f32[1,128], index: 13, kind: input, shape index: {}]
  %s14 = inlined_call_operand.vmem [shape: f32[1,128], index: 14, kind: input, shape index: {}]
  %s15 = inlined_call_operand.vmem [shape: f32[1,128], index: 15, kind: input, shape index: {}]
  %s16 = inlined_call_operand.vmem [shape: bf16[128,256], index: 16, kind: input, shape index: {}]
  %s17 = inlined_call_operand.vmem [shape: f32[1,256], index: 17, kind: input, shape index: {}]
  %s18 = inlined_call_operand.vmem [shape: bf16[256,128], index: 18, kind: input, shape index: {}]
  %s19 = inlined_call_operand.vmem [shape: f32[1,128], index: 19, kind: input, shape index: {}]
  %s20 = inlined_call_operand.vmem [shape: f32[2,8,128], index: 20, kind: output, shape index: {}]
  %s21 = sld [smem:[#allocation0]]
  $region113: #{transformer_layer_forward.1} parent=0
    _
  %s23 = ssub.s32 1, %s21
  %s24 = scalar_select 0, %s23, %s21
  loop: start=0, step=1, limit=4
  $region2: #{transformer_layer_forward.1} parent=0 // loop_pre_header
    _
  $region3: #{transformer_layer_forward.1} parent=0 // loop_header
    %s26 = sphi 0, %s30
    %p27 = scmp.ge.s32.totalorder %s26, 4
    %s36 = sphi 0, %s38
    %s39 = sphi 0, %s36
    %s40 = sphi 0, %s39
    %s56 = sphi 0, %s40
    %s62 = sphi 0, %s64
    %s65 = sphi 0, %s62
    %s66 = sphi 0, %s65
    %s82 = sphi 0, %s66
    %s86 = sphi 0, %s86
    %s88 = sphi 0, %s86
    %s89 = sphi 0, %s88
    %s103 = sphi 0, %s89
    %s107 = sphi 0, %s107
    %s109 = sphi 0, %s107
    %s110 = sphi 0, %s109
    %s124 = sphi 0, %s110
    %s128 = sphi 0, %s128
    %s130 = sphi 0, %s128
    %s131 = sphi 0, %s130
    %s145 = sphi 0, %s131
    %s149 = sphi 0, %s149
    %s151 = sphi 0, %s149
    %s152 = sphi 0, %s151
    %s166 = sphi 0, %s152
    %s170 = sphi 0, %s170
    %s172 = sphi 0, %s170
    %s173 = sphi 0, %s172
    %s187 = sphi 0, %s173
    %s191 = sphi 0, %s191
    %s193 = sphi 0, %s191
    %s194 = sphi 0, %s193
    %s208 = sphi 0, %s194
    %s212 = sphi 0, %s212
    %s214 = sphi 0, %s212
    %s215 = sphi 0, %s214
    %s229 = sphi 0, %s215
    %s233 = sphi 0, %s233
    %s235 = sphi 0, %s233
    %s236 = sphi 0, %s235
    %s250 = sphi 0, %s236
    %s254 = sphi 0, %s254
    %s256 = sphi 0, %s254
    %s257 = sphi 0, %s256
    %s271 = sphi 0, %s257
    %s275 = sphi 0, %s275
    %s277 = sphi 0, %s275
    %s278 = sphi 0, %s277
    %s292 = sphi 0, %s278
    %s296 = sphi 0, %s296
    %s298 = sphi 0, %s296
    %s299 = sphi 0, %s298
    %s313 = sphi 0, %s299
    %s317 = sphi 0, %s317
    %s319 = sphi 0, %s317
    %s320 = sphi 0, %s319
    %s334 = sphi 0, %s320
    %s338 = sphi 0, %s338
    %s340 = sphi 0, %s338
    %s341 = sphi 0, %s340
    %s355 = sphi 0, %s341
    %s359 = sphi 0, %s359
    %s361 = sphi 0, %s359
    %s362 = sphi 0, %s361
    %s376 = sphi 0, %s362
    %s380 = sphi 0, %s380
    %s382 = sphi 0, %s380
    %s383 = sphi 0, %s382
    %s397 = sphi 0, %s383
    %s401 = sphi 0, %s401
    %s403 = sphi 0, %s401
    %s404 = sphi 0, %s403
    %s418 = sphi 0, %s404
    %s422 = sphi 0, %s422
    %s424 = sphi 0, %s422
    %s425 = sphi 0, %s424
    %s439 = sphi 0, %s425
    %s443 = sphi 0, %s443
    %s445 = sphi 0, %s443
    %s446 = sphi 0, %s445
    %s460 = sphi 0, %s446
    %s466 = sphi 0, %s468
    %s469 = sphi 0, %s466
    %s470 = sphi 0, %s469
    %s486 = sphi 0, %s470
  $region4: #{transformer_layer_forward.1} parent=0 // loop_header_branch
    %29 = sbr.rel (%p27) target = $region8
  $region5: #{transformer_layer_forward.1} parent=0 // loop_body
    %s31 = ssub.s32 %s26, 1
    %s32 = ssub.s32 %s26, 2
    %s33 = sadd.s32 %s26, 1
    %s34 = ssub.s32 %s26, %s33
    %p35 = scmp.eq.s32.totalorder %s34, 0
    %s37 = sadd.s32 %s36, 1
    %s38 = scalar_select %p35, %s36, %s37
    %p41 = pneg %p35
    %p42 = scmp.eq.s32.totalorder %s26, 1
    %p43 = por %p41, %p42
    %p44 = scmp.ne.s32.totalorder %s36, %s39
    %p45 = scmp.eq.s32.totalorder %s26, 0
    %p46 = por %p44, %p45
    %p47 = scmp.ne.s32.totalorder %s36, %s39
    %p48 = scmp.eq.s32.totalorder %s31, 1
    %p49 = por %p47, %p48
    %p50 = scmp.ne.s32.totalorder %s39, %s40
    %p51 = scmp.eq.s32.totalorder %s31, 0
    %p52 = por %p50, %p51
    %p53 = scmp.ne.s32.totalorder %s39, %s40
    %p54 = scmp.eq.s32.totalorder %s32, 1
    %p55 = por %p53, %p54
    %p57 = scmp.ne.s32.totalorder %s40, %s56
    %p58 = scmp.eq.s32.totalorder %s32, 0
    %p59 = por %p57, %p58
    %s60 = ssub.s32 %s26, %s33
    %p61 = scmp.eq.s32.totalorder %s60, 0
    %s63 = sadd.s32 %s62, 1
    %s64 = scalar_select %p61, %s62, %s63
    %p67 = pneg %p61
    %p68 = scmp.eq.s32.totalorder %s26, 1
    %p69 = por %p67, %p68
    %p70 = scmp.ne.s32.totalorder %s62, %s65
    %p71 = scmp.eq.s32.totalorder %s26, 0
    %p72 = por %p70, %p71
    %p73 = scmp.ne.s32.totalorder %s62, %s65
    %p74 = scmp.eq.s32.totalorder %s31, 1
    %p75 = por %p73, %p74
    %p76 = scmp.ne.s32.totalorder %s65, %s66
    %p77 = scmp.eq.s32.totalorder %s31, 0
    %p78 = por %p76, %p77
    %p79 = scmp.ne.s32.totalorder %s65, %s66
    %p80 = scmp.eq.s32.totalorder %s32, 1
    %p81 = por %p79, %p80
    %p83 = scmp.ne.s32.totalorder %s66, %s82
    %p84 = scmp.eq.s32.totalorder %s32, 0
    %p85 = por %p83, %p84
    %s87 = sadd.s32 %s86, 1
    %p90 = scmp.eq.s32.totalorder %s26, 1
    %p91 = scmp.ne.s32.totalorder %s86, %s88
    %p92 = scmp.eq.s32.totalorder %s26, 0
    %p93 = por %p91, %p92
    %p94 = scmp.ne.s32.totalorder %s86, %s88
    %p95 = scmp.eq.s32.totalorder %s31, 1
    %p96 = por %p94, %p95
    %p97 = scmp.ne.s32.totalorder %s88, %s89
    %p98 = scmp.eq.s32.totalorder %s31, 0
    %p99 = por %p97, %p98
    %p100 = scmp.ne.s32.totalorder %s88, %s89
    %p101 = scmp.eq.s32.totalorder %s32, 1
    %p102 = por %p100, %p101
    %p104 = scmp.ne.s32.totalorder %s89, %s103
    %p105 = scmp.eq.s32.totalorder %s32, 0
    %p106 = por %p104, %p105
    %s108 = sadd.s32 %s107, 1
    %p111 = scmp.eq.s32.totalorder %s26, 1
    %p112 = scmp.ne.s32.totalorder %s107, %s109
    %p113 = scmp.eq.s32.totalorder %s26, 0
    %p114 = por %p112, %p113
    %p115 = scmp.ne.s32.totalorder %s107, %s109
    %p116 = scmp.eq.s32.totalorder %s31, 1
    %p117 = por %p115, %p116
    %p118 = scmp.ne.s32.totalorder %s109, %s110
    %p119 = scmp.eq.s32.totalorder %s31, 0
    %p120 = por %p118, %p119
    %p121 = scmp.ne.s32.totalorder %s109, %s110
    %p122 = scmp.eq.s32.totalorder %s32, 1
    %p123 = por %p121, %p122
    %p125 = scmp.ne.s32.totalorder %s110, %s124
    %p126 = scmp.eq.s32.totalorder %s32, 0
    %p127 = por %p125, %p126
    %s129 = sadd.s32 %s128, 1
    %p132 = scmp.eq.s32.totalorder %s26, 1
    %p133 = scmp.ne.s32.totalorder %s128, %s130
    %p134 = scmp.eq.s32.totalorder %s26, 0
    %p135 = por %p133, %p134
    %p136 = scmp.ne.s32.totalorder %s128, %s130
    %p137 = scmp.eq.s32.totalorder %s31, 1
    %p138 = por %p136, %p137
    %p139 = scmp.ne.s32.totalorder %s130, %s131
    %p140 = scmp.eq.s32.totalorder %s31, 0
    %p141 = por %p139, %p140
    %p142 = scmp.ne.s32.totalorder %s130, %s131
    %p143 = scmp.eq.s32.totalorder %s32, 1
    %p144 = por %p142, %p143
    %p146 = scmp.ne.s32.totalorder %s131, %s145
    %p147 = scmp.eq.s32.totalorder %s32, 0
    %p148 = por %p146, %p147
    %s150 = sadd.s32 %s149, 1
    %p153 = scmp.eq.s32.totalorder %s26, 1
    %p154 = scmp.ne.s32.totalorder %s149, %s151
    %p155 = scmp.eq.s32.totalorder %s26, 0
    %p156 = por %p154, %p155
    %p157 = scmp.ne.s32.totalorder %s149, %s151
    %p158 = scmp.eq.s32.totalorder %s31, 1
    %p159 = por %p157, %p158
    %p160 = scmp.ne.s32.totalorder %s151, %s152
    %p161 = scmp.eq.s32.totalorder %s31, 0
    %p162 = por %p160, %p161
    %p163 = scmp.ne.s32.totalorder %s151, %s152
    %p164 = scmp.eq.s32.totalorder %s32, 1
    %p165 = por %p163, %p164
    %p167 = scmp.ne.s32.totalorder %s152, %s166
    %p168 = scmp.eq.s32.totalorder %s32, 0
    %p169 = por %p167, %p168
    %s171 = sadd.s32 %s170, 1
    %p174 = scmp.eq.s32.totalorder %s26, 1
    %p175 = scmp.ne.s32.totalorder %s170, %s172
    %p176 = scmp.eq.s32.totalorder %s26, 0
    %p177 = por %p175, %p176
    %p178 = scmp.ne.s32.totalorder %s170, %s172
    %p179 = scmp.eq.s32.totalorder %s31, 1
    %p180 = por %p178, %p179
    %p181 = scmp.ne.s32.totalorder %s172, %s173
    %p182 = scmp.eq.s32.totalorder %s31, 0
    %p183 = por %p181, %p182
    %p184 = scmp.ne.s32.totalorder %s172, %s173
    %p185 = scmp.eq.s32.totalorder %s32, 1
    %p186 = por %p184, %p185
    %p188 = scmp.ne.s32.totalorder %s173, %s187
    %p189 = scmp.eq.s32.totalorder %s32, 0
    %p190 = por %p188, %p189
    %s192 = sadd.s32 %s191, 1
    %p195 = scmp.eq.s32.totalorder %s26, 1
    %p196 = scmp.ne.s32.totalorder %s191, %s193
    %p197 = scmp.eq.s32.totalorder %s26, 0
    %p198 = por %p196, %p197
    %p199 = scmp.ne.s32.totalorder %s191, %s193
    %p200 = scmp.eq.s32.totalorder %s31, 1
    %p201 = por %p199, %p200
    %p202 = scmp.ne.s32.totalorder %s193, %s194
    %p203 = scmp.eq.s32.totalorder %s31, 0
    %p204 = por %p202, %p203
    %p205 = scmp.ne.s32.totalorder %s193, %s194
    %p206 = scmp.eq.s32.totalorder %s32, 1
    %p207 = por %p205, %p206
    %p209 = scmp.ne.s32.totalorder %s194, %s208
    %p210 = scmp.eq.s32.totalorder %s32, 0
    %p211 = por %p209, %p210
    %s213 = sadd.s32 %s212, 1
    %p216 = scmp.eq.s32.totalorder %s26, 1
    %p217 = scmp.ne.s32.totalorder %s212, %s214
    %p218 = scmp.eq.s32.totalorder %s26, 0
    %p219 = por %p217, %p218
    %p220 = scmp.ne.s32.totalorder %s212, %s214
    %p221 = scmp.eq.s32.totalorder %s31, 1
    %p222 = por %p220, %p221
    %p223 = scmp.ne.s32.totalorder %s214, %s215
    %p224 = scmp.eq.s32.totalorder %s31, 0
    %p225 = por %p223, %p224
    %p226 = scmp.ne.s32.totalorder %s214, %s215
    %p227 = scmp.eq.s32.totalorder %s32, 1
    %p228 = por %p226, %p227
    %p230 = scmp.ne.s32.totalorder %s215, %s229
    %p231 = scmp.eq.s32.totalorder %s32, 0
    %p232 = por %p230, %p231
    %s234 = sadd.s32 %s233, 1
    %p237 = scmp.eq.s32.totalorder %s26, 1
    %p238 = scmp.ne.s32.totalorder %s233, %s235
    %p239 = scmp.eq.s32.totalorder %s26, 0
    %p240 = por %p238, %p239
    %p241 = scmp.ne.s32.totalorder %s233, %s235
    %p242 = scmp.eq.s32.totalorder %s31, 1
    %p243 = por %p241, %p242
    %p244 = scmp.ne.s32.totalorder %s235, %s236
    %p245 = scmp.eq.s32.totalorder %s31, 0
    %p246 = por %p244, %p245
    %p247 = scmp.ne.s32.totalorder %s235, %s236
    %p248 = scmp.eq.s32.totalorder %s32, 1
    %p249 = por %p247, %p248
    %p251 = scmp.ne.s32.totalorder %s236, %s250
    %p252 = scmp.eq.s32.totalorder %s32, 0
    %p253 = por %p251, %p252
    %s255 = sadd.s32 %s254, 1
    %p258 = scmp.eq.s32.totalorder %s26, 1
    %p259 = scmp.ne.s32.totalorder %s254, %s256
    %p260 = scmp.eq.s32.totalorder %s26, 0
    %p261 = por %p259, %p260
    %p262 = scmp.ne.s32.totalorder %s254, %s256
    %p263 = scmp.eq.s32.totalorder %s31, 1
    %p264 = por %p262, %p263
    %p265 = scmp.ne.s32.totalorder %s256, %s257
    %p266 = scmp.eq.s32.totalorder %s31, 0
    %p267 = por %p265, %p266
    %p268 = scmp.ne.s32.totalorder %s256, %s257
    %p269 = scmp.eq.s32.totalorder %s32, 1
    %p270 = por %p268, %p269
    %p272 = scmp.ne.s32.totalorder %s257, %s271
    %p273 = scmp.eq.s32.totalorder %s32, 0
    %p274 = por %p272, %p273
    %s276 = sadd.s32 %s275, 1
    %p279 = scmp.eq.s32.totalorder %s26, 1
    %p280 = scmp.ne.s32.totalorder %s275, %s277
    %p281 = scmp.eq.s32.totalorder %s26, 0
    %p282 = por %p280, %p281
    %p283 = scmp.ne.s32.totalorder %s275, %s277
    %p284 = scmp.eq.s32.totalorder %s31, 1
    %p285 = por %p283, %p284
    %p286 = scmp.ne.s32.totalorder %s277, %s278
    %p287 = scmp.eq.s32.totalorder %s31, 0
    %p288 = por %p286, %p287
    %p289 = scmp.ne.s32.totalorder %s277, %s278
    %p290 = scmp.eq.s32.totalorder %s32, 1
    %p291 = por %p289, %p290
    %p293 = scmp.ne.s32.totalorder %s278, %s292
    %p294 = scmp.eq.s32.totalorder %s32, 0
    %p295 = por %p293, %p294
    %s297 = sadd.s32 %s296, 1
    %p300 = scmp.eq.s32.totalorder %s26, 1
    %p301 = scmp.ne.s32.totalorder %s296, %s298
    %p302 = scmp.eq.s32.totalorder %s26, 0
    %p303 = por %p301, %p302
    %p304 = scmp.ne.s32.totalorder %s296, %s298
    %p305 = scmp.eq.s32.totalorder %s31, 1
    %p306 = por %p304, %p305
    %p307 = scmp.ne.s32.totalorder %s298, %s299
    %p308 = scmp.eq.s32.totalorder %s31, 0
    %p309 = por %p307, %p308
    %p310 = scmp.ne.s32.totalorder %s298, %s299
    %p311 = scmp.eq.s32.totalorder %s32, 1
    %p312 = por %p310, %p311
    %p314 = scmp.ne.s32.totalorder %s299, %s313
    %p315 = scmp.eq.s32.totalorder %s32, 0
    %p316 = por %p314, %p315
    %s318 = sadd.s32 %s317, 1
    %p321 = scmp.eq.s32.totalorder %s26, 1
    %p322 = scmp.ne.s32.totalorder %s317, %s319
    %p323 = scmp.eq.s32.totalorder %s26, 0
    %p324 = por %p322, %p323
    %p325 = scmp.ne.s32.totalorder %s317, %s319
    %p326 = scmp.eq.s32.totalorder %s31, 1
    %p327 = por %p325, %p326
    %p328 = scmp.ne.s32.totalorder %s319, %s320
    %p329 = scmp.eq.s32.totalorder %s31, 0
    %p330 = por %p328, %p329
    %p331 = scmp.ne.s32.totalorder %s319, %s320
    %p332 = scmp.eq.s32.totalorder %s32, 1
    %p333 = por %p331, %p332
    %p335 = scmp.ne.s32.totalorder %s320, %s334
    %p336 = scmp.eq.s32.totalorder %s32, 0
    %p337 = por %p335, %p336
    %s339 = sadd.s32 %s338, 1
    %p342 = scmp.eq.s32.totalorder %s26, 1
    %p343 = scmp.ne.s32.totalorder %s338, %s340
    %p344 = scmp.eq.s32.totalorder %s26, 0
    %p345 = por %p343, %p344
    %p346 = scmp.ne.s32.totalorder %s338, %s340
    %p347 = scmp.eq.s32.totalorder %s31, 1
    %p348 = por %p346, %p347
    %p349 = scmp.ne.s32.totalorder %s340, %s341
    %p350 = scmp.eq.s32.totalorder %s31, 0
    %p351 = por %p349, %p350
    %p352 = scmp.ne.s32.totalorder %s340, %s341
    %p353 = scmp.eq.s32.totalorder %s32, 1
    %p354 = por %p352, %p353
    %p356 = scmp.ne.s32.totalorder %s341, %s355
    %p357 = scmp.eq.s32.totalorder %s32, 0
    %p358 = por %p356, %p357
    %s360 = sadd.s32 %s359, 1
    %p363 = scmp.eq.s32.totalorder %s26, 1
    %p364 = scmp.ne.s32.totalorder %s359, %s361
    %p365 = scmp.eq.s32.totalorder %s26, 0
    %p366 = por %p364, %p365
    %p367 = scmp.ne.s32.totalorder %s359, %s361
    %p368 = scmp.eq.s32.totalorder %s31, 1
    %p369 = por %p367, %p368
    %p370 = scmp.ne.s32.totalorder %s361, %s362
    %p371 = scmp.eq.s32.totalorder %s31, 0
    %p372 = por %p370, %p371
    %p373 = scmp.ne.s32.totalorder %s361, %s362
    %p374 = scmp.eq.s32.totalorder %s32, 1
    %p375 = por %p373, %p374
    %p377 = scmp.ne.s32.totalorder %s362, %s376
    %p378 = scmp.eq.s32.totalorder %s32, 0
    %p379 = por %p377, %p378
    %s381 = sadd.s32 %s380, 1
    %p384 = scmp.eq.s32.totalorder %s26, 1
    %p385 = scmp.ne.s32.totalorder %s380, %s382
    %p386 = scmp.eq.s32.totalorder %s26, 0
    %p387 = por %p385, %p386
    %p388 = scmp.ne.s32.totalorder %s380, %s382
    %p389 = scmp.eq.s32.totalorder %s31, 1
    %p390 = por %p388, %p389
    %p391 = scmp.ne.s32.totalorder %s382, %s383
    %p392 = scmp.eq.s32.totalorder %s31, 0
    %p393 = por %p391, %p392
    %p394 = scmp.ne.s32.totalorder %s382, %s383
    %p395 = scmp.eq.s32.totalorder %s32, 1
    %p396 = por %p394, %p395
    %p398 = scmp.ne.s32.totalorder %s383, %s397
    %p399 = scmp.eq.s32.totalorder %s32, 0
    %p400 = por %p398, %p399
    %s402 = sadd.s32 %s401, 1
    %p405 = scmp.eq.s32.totalorder %s26, 1
    %p406 = scmp.ne.s32.totalorder %s401, %s403
    %p407 = scmp.eq.s32.totalorder %s26, 0
    %p408 = por %p406, %p407
    %p409 = scmp.ne.s32.totalorder %s401, %s403
    %p410 = scmp.eq.s32.totalorder %s31, 1
    %p411 = por %p409, %p410
    %p412 = scmp.ne.s32.totalorder %s403, %s404
    %p413 = scmp.eq.s32.totalorder %s31, 0
    %p414 = por %p412, %p413
    %p415 = scmp.ne.s32.totalorder %s403, %s404
    %p416 = scmp.eq.s32.totalorder %s32, 1
    %p417 = por %p415, %p416
    %p419 = scmp.ne.s32.totalorder %s404, %s418
    %p420 = scmp.eq.s32.totalorder %s32, 0
    %p421 = por %p419, %p420
    %s423 = sadd.s32 %s422, 1
    %p426 = scmp.eq.s32.totalorder %s26, 1
    %p427 = scmp.ne.s32.totalorder %s422, %s424
    %p428 = scmp.eq.s32.totalorder %s26, 0
    %p429 = por %p427, %p428
    %p430 = scmp.ne.s32.totalorder %s422, %s424
    %p431 = scmp.eq.s32.totalorder %s31, 1
    %p432 = por %p430, %p431
    %p433 = scmp.ne.s32.totalorder %s424, %s425
    %p434 = scmp.eq.s32.totalorder %s31, 0
    %p435 = por %p433, %p434
    %p436 = scmp.ne.s32.totalorder %s424, %s425
    %p437 = scmp.eq.s32.totalorder %s32, 1
    %p438 = por %p436, %p437
    %p440 = scmp.ne.s32.totalorder %s425, %s439
    %p441 = scmp.eq.s32.totalorder %s32, 0
    %p442 = por %p440, %p441
    %s444 = sadd.s32 %s443, 1
    %p447 = scmp.eq.s32.totalorder %s26, 1
    %p448 = scmp.ne.s32.totalorder %s443, %s445
    %p449 = scmp.eq.s32.totalorder %s26, 0
    %p450 = por %p448, %p449
    %p451 = scmp.ne.s32.totalorder %s443, %s445
    %p452 = scmp.eq.s32.totalorder %s31, 1
    %p453 = por %p451, %p452
    %p454 = scmp.ne.s32.totalorder %s445, %s446
    %p455 = scmp.eq.s32.totalorder %s31, 0
    %p456 = por %p454, %p455
    %p457 = scmp.ne.s32.totalorder %s445, %s446
    %p458 = scmp.eq.s32.totalorder %s32, 1
    %p459 = por %p457, %p458
    %p461 = scmp.ne.s32.totalorder %s446, %s460
    %p462 = scmp.eq.s32.totalorder %s32, 0
    %p463 = por %p461, %p462
    %s464 = ssub.s32 %s26, %s33
    %p465 = scmp.eq.s32.totalorder %s464, 0
    %s467 = sadd.s32 %s466, 1
    %s468 = scalar_select %p465, %s466, %s467
    %p471 = pneg %p465
    %p472 = scmp.eq.s32.totalorder %s26, 1
    %p473 = por %p471, %p472
    %p474 = scmp.ne.s32.totalorder %s466, %s469
    %p475 = scmp.eq.s32.totalorder %s26, 0
    %p476 = por %p474, %p475
    %p477 = scmp.ne.s32.totalorder %s466, %s469
    %p478 = scmp.eq.s32.totalorder %s31, 1
    %p479 = por %p477, %p478
    %p480 = scmp.ne.s32.totalorder %s469, %s470
    %p481 = scmp.eq.s32.totalorder %s31, 0
    %p482 = por %p480, %p481
    %p483 = scmp.ne.s32.totalorder %s469, %s470
    %p484 = scmp.eq.s32.totalorder %s32, 1
    %p485 = por %p483, %p484
    %p487 = scmp.ne.s32.totalorder %s470, %s486
    %p488 = scmp.eq.s32.totalorder %s32, 0
    %p489 = por %p487, %p488
    %p490 = scmp.le.s32.totalorder 1, %s26
    %p491 = scmp.lt.s32.totalorder %s26, 3
    %p492 = pnand %p490, %p491
    %p493 = pneg %p492
    // Predicated region
    $region9: #{transformer_layer_forward.1} parent=5 // pred_check
      _
    $region10: #{transformer_layer_forward.1} parent=5 // pred_check_branch
      %495 = sbr.rel (%p492) target = $region12
    $region11: #{transformer_layer_forward.1} parent=5 // pred_region
      %s496 = ssub.s32 %s26, 1
      // Predicated region
      $region13: #{transformer_layer_forward.1} parent=11 // pred_check
        %p497 = pneg %p99
      $region14: #{transformer_layer_forward.1} parent=11 // pred_check_branch
        %499 = sbr.rel (%p497) target = $region16
      $region15: #{transformer_layer_forward.1} parent=11 // pred_region
        _
      $region16: #{transformer_layer_forward.1} parent=11 // pred_fallthru
        _
      // Predicated region
      $region17: #{transformer_layer_forward.1} parent=11 // pred_check
        %p500 = pneg %p120
      $region18: #{transformer_layer_forward.1} parent=11 // pred_check_branch
        %502 = sbr.rel (%p500) target = $region20
      $region19: #{transformer_layer_forward.1} parent=11 // pred_region
        _
      $region20: #{transformer_layer_forward.1} parent=11 // pred_fallthru
        _
      // Predicated region
      $region21: #{transformer_layer_forward.1} parent=11 // pred_check
        %p503 = pneg %p141
      $region22: #{transformer_layer_forward.1} parent=11 // pred_check_branch
        %505 = sbr.rel (%p503) target = $region24
      $region23: #{transformer_layer_forward.1} parent=11 // pred_region
        _
      $region24: #{transformer_layer_forward.1} parent=11 // pred_fallthru
        _
      // Predicated region
      $region25: #{transformer_layer_forward.1} parent=11 // pred_check
        %p506 = pneg %p162
      $region26: #{transformer_layer_forward.1} parent=11 // pred_check_branch
        %508 = sbr.rel (%p506) target = $region28
      $region27: #{transformer_layer_forward.1} parent=11 // pred_region
        _
      $region28: #{transformer_layer_forward.1} parent=11 // pred_fallthru
        _
      // Predicated region
      $region29: #{transformer_layer_forward.1} parent=11 // pred_check
        %p509 = pneg %p183
      $region30: #{transformer_layer_forward.1} parent=11 // pred_check_branch
        %511 = sbr.rel (%p509) target = $region32
      $region31: #{transformer_layer_forward.1} parent=11 // pred_region
        _
      $region32: #{transformer_layer_forward.1} parent=11 // pred_fallthru
        _
      // Predicated region
      $region33: #{transformer_layer_forward.1} parent=11 // pred_check
        %p512 = pneg %p204
      $region34: #{transformer_layer_forward.1} parent=11 // pred_check_branch
        %514 = sbr.rel (%p512) target = $region36
      $region35: #{transformer_layer_forward.1} parent=11 // pred_region
        _
      $region36: #{transformer_layer_forward.1} parent=11 // pred_fallthru
        _
      // Predicated region
      $region37: #{transformer_layer_forward.1} parent=11 // pred_check
        %p515 = pneg %p225
      $region38: #{transformer_layer_forward.1} parent=11 // pred_check_branch
        %517 = sbr.rel (%p515) target = $region40
      $region39: #{transformer_layer_forward.1} parent=11 // pred_region
        _
      $region40: #{transformer_layer_forward.1} parent=11 // pred_fallthru
        _
      // Predicated region
      $region41: #{transformer_layer_forward.1} parent=11 // pred_check
        %p518 = pneg %p246
      $region42: #{transformer_layer_forward.1} parent=11 // pred_check_branch
        %520 = sbr.rel (%p518) target = $region44
      $region43: #{transformer_layer_forward.1} parent=11 // pred_region
        _
      $region44: #{transformer_layer_forward.1} parent=11 // pred_fallthru
        _
      // Predicated region
      $region45: #{transformer_layer_forward.1} parent=11 // pred_check
        %p521 = pneg %p267
      $region46: #{transformer_layer_forward.1} parent=11 // pred_check_branch
        %523 = sbr.rel (%p521) target = $region48
      $region47: #{transformer_layer_forward.1} parent=11 // pred_region
        _
      $region48: #{transformer_layer_forward.1} parent=11 // pred_fallthru
        _
      // Predicated region
      $region49: #{transformer_layer_forward.1} parent=11 // pred_check
        %p524 = pneg %p288
      $region50: #{transformer_layer_forward.1} parent=11 // pred_check_branch
        %526 = sbr.rel (%p524) target = $region52
      $region51: #{transformer_layer_forward.1} parent=11 // pred_region
        _
      $region52: #{transformer_layer_forward.1} parent=11 // pred_fallthru
        _
      // Predicated region
      $region53: #{transformer_layer_forward.1} parent=11 // pred_check
        %p527 = pneg %p309
      $region54: #{transformer_layer_forward.1} parent=11 // pred_check_branch
        %529 = sbr.rel (%p527) target = $region56
      $region55: #{transformer_layer_forward.1} parent=11 // pred_region
        _
      $region56: #{transformer_layer_forward.1} parent=11 // pred_fallthru
        _
      // Predicated region
      $region57: #{transformer_layer_forward.1} parent=11 // pred_check
        %p530 = pneg %p330
      $region58: #{transformer_layer_forward.1} parent=11 // pred_check_branch
        %532 = sbr.rel (%p530) target = $region60
      $region59: #{transformer_layer_forward.1} parent=11 // pred_region
        _
      $region60: #{transformer_layer_forward.1} parent=11 // pred_fallthru
        _
      // Predicated region
      $region61: #{transformer_layer_forward.1} parent=11 // pred_check
        %p533 = pneg %p351
      $region62: #{transformer_layer_forward.1} parent=11 // pred_check_branch
        %535 = sbr.rel (%p533) target = $region64
      $region63: #{transformer_layer_forward.1} parent=11 // pred_region
        _
      $region64: #{transformer_layer_forward.1} parent=11 // pred_fallthru
        _
      // Predicated region
      $region65: #{transformer_layer_forward.1} parent=11 // pred_check
        %p536 = pneg %p372
      $region66: #{transformer_layer_forward.1} parent=11 // pred_check_branch
        %538 = sbr.rel (%p536) target = $region68
      $region67: #{transformer_layer_forward.1} parent=11 // pred_region
        _
      $region68: #{transformer_layer_forward.1} parent=11 // pred_fallthru
        _
      // Predicated region
      $region69: #{transformer_layer_forward.1} parent=11 // pred_check
        %p539 = pneg %p393
      $region70: #{transformer_layer_forward.1} parent=11 // pred_check_branch
        %541 = sbr.rel (%p539) target = $region72
      $region71: #{transformer_layer_forward.1} parent=11 // pred_region
        _
      $region72: #{transformer_layer_forward.1} parent=11 // pred_fallthru
        _
      // Predicated region
      $region73: #{transformer_layer_forward.1} parent=11 // pred_check
        %p542 = pneg %p414
      $region74: #{transformer_layer_forward.1} parent=11 // pred_check_branch
        %544 = sbr.rel (%p542) target = $region76
      $region75: #{transformer_layer_forward.1} parent=11 // pred_region
        _
      $region76: #{transformer_layer_forward.1} parent=11 // pred_fallthru
        _
      // Predicated region
      $region77: #{transformer_layer_forward.1} parent=11 // pred_check
        %p545 = pneg %p435
      $region78: #{transformer_layer_forward.1} parent=11 // pred_check_branch
        %547 = sbr.rel (%p545) target = $region80
      $region79: #{transformer_layer_forward.1} parent=11 // pred_region
        _
      $region80: #{transformer_layer_forward.1} parent=11 // pred_fallthru
        _
      // Predicated region
      $region81: #{transformer_layer_forward.1} parent=11 // pred_check
        %p548 = pneg %p456
      $region82: #{transformer_layer_forward.1} parent=11 // pred_check_branch
        %550 = sbr.rel (%p548) target = $region84
      $region83: #{transformer_layer_forward.1} parent=11 // pred_region
        _
      $region84: #{transformer_layer_forward.1} parent=11 // pred_fallthru
        _
    $region12: #{transformer_layer_forward.1} parent=5 // pred_fallthru
      _
    %p551 = scmp.lt.s32.totalorder %s26, 2
    // Predicated region
    $region85: #{transformer_layer_forward.1} parent=5 // pred_check
      %p552 = pneg %p551
    $region86: #{transformer_layer_forward.1} parent=5 // pred_check_branch
      %554 = sbr.rel (%p552) target = $region88
    $region87: #{transformer_layer_forward.1} parent=5 // pred_region
      // Predicated region
      $region89: #{transformer_layer_forward.1} parent=87 // pred_check
        %p555 = pneg %p46
      $region90: #{transformer_layer_forward.1} parent=87 // pred_check_branch
        %557 = sbr.rel (%p555) target = $region92
      $region91: #{transformer_layer_forward.1} parent=87 // pred_region
        %p558 = scmp.lt.s32.totalorder %s26, 1
        %s559 = scalar_select %p558, %s26, 1
        %s560 = smul.addr %s559, 8
        %s561 = scalar_lea.vmem %s0, %s560
      $region92: #{transformer_layer_forward.1} parent=87 // pred_fallthru
        _
      // Predicated region
      $region93: #{transformer_layer_forward.1} parent=87 // pred_check
        %p562 = pneg %p72
      $region94: #{transformer_layer_forward.1} parent=87 // pred_check_branch
        %564 = sbr.rel (%p562) target = $region96
      $region95: #{transformer_layer_forward.1} parent=87 // pred_region
        %p565 = scmp.lt.s32.totalorder %s26, 1
        %s566 = scalar_select %p565, %s26, 1
        %s567 = smul.addr %s566, 2
        %s568 = smul.addr %s567, 8
        %s569 = scalar_lea.vmem %s1, %s568
      $region96: #{transformer_layer_forward.1} parent=87 // pred_fallthru
        _
    $region88: #{transformer_layer_forward.1} parent=5 // pred_fallthru
      _
    %p570 = scmp.le.s32.totalorder 1, %s26
    %p571 = scmp.lt.s32.totalorder %s26, 3
    %p572 = pnand %p570, %p571
    %p573 = pneg %p572
    // Predicated region
    $region97: #{transformer_layer_forward.1} parent=5 // pred_check
      _
    $region98: #{transformer_layer_forward.1} parent=5 // pred_check_branch
      %575 = sbr.rel (%p572) target = $region100
    $region99: #{transformer_layer_forward.1} parent=5 // pred_region
      %s576 = ssub.s32 %s26, 1
      %p577 = scmp.lt.s32.totalorder %s31, 1
      %s578 = scalar_select %p577, %s31, 1
      %s579 = smul.addr %s578, 8
      %s580 = scalar_lea.vmem %s0, %s579
      %p581 = pneg %p52
      %p582 = pneg %p49
      %p583 = scmp.lt.s32.totalorder %s31, 1
      %s584 = scalar_select %p583, %s31, 1
      %s585 = smul.addr %s584, 2
      %s586 = smul.addr %s585, 8
      %s587 = scalar_lea.vmem %s1, %s586
      %p588 = pneg %p78
      %p589 = pneg %p75
      %p590 = pneg %p99
      %p591 = pneg %p96
      %p592 = pneg %p120
      %p593 = pneg %p117
      %p594 = pneg %p141
      %p595 = pneg %p138
      %p596 = pneg %p162
      %p597 = pneg %p159
      %p598 = pneg %p183
      %p599 = pneg %p180
      %p600 = pneg %p204
      %p601 = pneg %p201
      %p602 = pneg %p225
      %p603 = pneg %p222
      %p604 = pneg %p246
      %p605 = pneg %p243
      %p606 = pneg %p267
      %p607 = pneg %p264
      %p608 = pneg %p288
      %p609 = pneg %p285
      %p610 = pneg %p309
      %p611 = pneg %p306
      %p612 = pneg %p330
      %p613 = pneg %p327
      %p614 = pneg %p351
      %p615 = pneg %p348
      %p616 = pneg %p372
      %p617 = pneg %p369
      %p618 = pneg %p393
      %p619 = pneg %p390
      %p620 = pneg %p414
      %p621 = pneg %p411
      %p622 = pneg %p435
      %p623 = pneg %p432
      %p624 = pneg %p456
      %p625 = pneg %p453
      %p626 = pneg %p482
      %p627 = pneg %p479
      %p628 = scmp.lt.s32.totalorder %s31, 1
      %s629 = scalar_select %p628, %s31, 1
      %s630 = smul.addr %s629, 8
      %s631 = scalar_lea.vmem %s20, %s630
      %p632 = scmp.lt.s32.totalorder %s31, 1
      %s633 = scalar_select %p632, %s31, 1
      %s634 = smul.addr %s633, 8
      %s635 = scalar_lea.vmem %s0, %s634
      %p636 = scmp.lt.s32.totalorder %s31, 1
      %s637 = scalar_select %p636, %s31, 1
      %s638 = smul.addr %s637, 2
      %s639 = smul.addr %s638, 8
      %s640 = scalar_lea.vmem %s1, %s639
      %p641 = scmp.lt.s32.totalorder %s31, 1
      %s642 = scalar_select %p641, %s31, 1
      %s643 = smul.addr %s642, 8
      %s644 = scalar_lea.vmem %s20, %s643
      %v646 = vld [vmem:[%s635] sm:$0xff]
      %v647 = vld [vmem:[%s640] sm:$0xff]
      %v648 = vld [vmem:[%s640 + $0x8] sm:$0xff]
      %v649 = vld [vmem:[%s2] sm:$0x1]
      %v650 = vld [vmem:[%s3] sm:$0x1]
      %651 = vadd.xlane.f32.xlu0 %v646
      %v652 = vpop.xlane.xlu0 %651
      %v653 = vrcp.pop 128.0
      %v654 = vmul.f32 128.0, %v653
      %v655 = vsub.f32 1.0, %v654
      %v656 = vmul.f32 %v653, %v655
      %v657 = vadd.f32 %v653, %v656
      %vm658 = vweird.f32 %v653
      %v659 = vsel %vm658, %v653, %v657
      %v660 = vmul.f32 %v652, %v659
      %v661 = vsub.f32 %v646, %v660
      %v662 = vmul.f32 %v661, %v661
      %663 = vadd.xlane.f32.xlu0 %v662
      %v664 = vpop.xlane.xlu0 %663
      %v665 = vmul.f32 %v664, %v659
      %v666 = vadd.f32 %v665, 1e-05
      %v667 = vrsqrt.pop %v666
      %v668 = vmul.f32 %v667, %v666
      %v669 = vmul.f32 %v668, %v667
      %v670 = vmul.f32 0.5, %v669
      %v671 = vsub.f32 1.5, %v670
      %v672 = vmul.f32 %v667, %v671
      %vm673 = vweird.f32 %v666
      %vm674 = vweird.f32 %v667
      %vm675 = vmor %vm673, %vm674
      %v676 = vsel %vm675, %v667, %v672
      %v677 = vmul.f32 %v661, %v676
      %v679 = vperm.slane %v649, 0
      %v681 = vmul.f32 %v677, %v679
      %v683 = vperm.slane %v650, 0
      %v685 = vadd.f32 %v681, %v683
      %v686 = vpack.c.bf16 %v685, %v685
      %v687 = vld [vmem:[%s4] sm:$0xf]
      %v688 = vld [vmem:[%s4 + $0x4] sm:$0xf]
      %v689 = vld [vmem:[%s4 + $0x8] sm:$0xf]
      %v690 = vld [vmem:[%s4 + $0xc] sm:$0xf]
      %v691 = vld [vmem:[%s4 + $0x10] sm:$0xf]
      %v692 = vld [vmem:[%s4 + $0x14] sm:$0xf]
      %v693 = vld [vmem:[%s4 + $0x18] sm:$0xf]
      %v694 = vld [vmem:[%s4 + $0x1c] sm:$0xf]
      %v695 = vld [vmem:[%s4 + $0x20] sm:$0xf]
      %v696 = vld [vmem:[%s4 + $0x24] sm:$0xf]
      %v697 = vld [vmem:[%s4 + $0x28] sm:$0xf]
      %v698 = vld [vmem:[%s4 + $0x2c] sm:$0xf]
      %v699 = vld [vmem:[%s4 + $0x30] sm:$0xf]
      %v700 = vld [vmem:[%s4 + $0x34] sm:$0xf]
      %v701 = vld [vmem:[%s4 + $0x38] sm:$0xf]
      %v702 = vld [vmem:[%s4 + $0x3c] sm:$0xf]
      %v703 = vld [vmem:[%s5] sm:$0x1]
      %v705 = vperm.slane %v703, 0
      %v723 = vunpack.c.l.b16 %v687
      %v724 = vunpack.c.l.b16 %v688
      %v725 = vunpack.c.l.b16 %v689
      %v726 = vunpack.c.l.b16 %v690
      %v727 = vunpack.c.l.b16 %v691
      %v728 = vunpack.c.l.b16 %v692
      %v729 = vunpack.c.l.b16 %v693
      %v730 = vunpack.c.l.b16 %v694
      %v731 = vunpack.c.l.b16 %v695
      %v732 = vunpack.c.l.b16 %v696
      %v733 = vunpack.c.l.b16 %v697
      %v734 = vunpack.c.l.b16 %v698
      %v735 = vunpack.c.l.b16 %v699
      %v736 = vunpack.c.l.b16 %v700
      %v737 = vunpack.c.l.b16 %v701
      %v738 = vunpack.c.l.b16 %v702
      %v739 = vpack.c.b16 %v724, %v723
      %v740 = vpack.c.b16 %v726, %v725
      %v741 = vpack.c.b16 %v728, %v727
      %v742 = vpack.c.b16 %v730, %v729
      %v743 = vpack.c.b16 %v732, %v731
      %v744 = vpack.c.b16 %v734, %v733
      %v745 = vpack.c.b16 %v736, %v735
      %v746 = vpack.c.b16 %v738, %v737
      %755 = vmatpush.bf16.msra.mxu0 %v746
      %756 = vmatpush.bf16.msra.mxu0 %v745
      %757 = vmatpush.bf16.msra.mxu0 %v744
      %758 = vmatpush.bf16.msra.mxu0 %v743
      %759 = vmatpush.bf16.msra.mxu0 %v742
      %760 = vmatpush.bf16.msra.mxu0 %v741
      %761 = vmatpush.bf16.msra.mxu0 %v740
      %762 = vmatpush.bf16.msra.mxu0 %v739
      %763 = vmatmul.bf16.gmra.mxu0 %v686
      %v764 = vpop.f32.mrf.mxu0
      %v765 = vadd.f32 %v705, %v764
      %v766 = vpop.f32.mrf.mxu0
      %767 = vdwg.mxu0
      %s768 = scalar_lea.vmem %s4, 256
      %v769 = vld [vmem:[%s768] sm:$0xf]
      %v770 = vld [vmem:[%s768 + $0x4] sm:$0xf]
      %v771 = vld [vmem:[%s768 + $0x8] sm:$0xf]
      %v772 = vld [vmem:[%s768 + $0xc] sm:$0xf]
      %v773 = vld [vmem:[%s768 + $0x10] sm:$0xf]
      %v774 = vld [vmem:[%s768 + $0x14] sm:$0xf]
      %v775 = vld [vmem:[%s768 + $0x18] sm:$0xf]
      %v776 = vld [vmem:[%s768 + $0x1c] sm:$0xf]
      %v777 = vld [vmem:[%s768 + $0x20] sm:$0xf]
      %v778 = vld [vmem:[%s768 + $0x24] sm:$0xf]
      %v779 = vld [vmem:[%s768 + $0x28] sm:$0xf]
      %v780 = vld [vmem:[%s768 + $0x2c] sm:$0xf]
      %v781 = vld [vmem:[%s768 + $0x30] sm:$0xf]
      %v782 = vld [vmem:[%s768 + $0x34] sm:$0xf]
      %v783 = vld [vmem:[%s768 + $0x38] sm:$0xf]
      %v784 = vld [vmem:[%s768 + $0x3c] sm:$0xf]
      %s785 = scalar_lea.vmem %s5, 4
      %v786 = vld [vmem:[%s785] sm:$0x1]
      %v788 = vperm.slane %v786, 0
      %v806 = vunpack.c.l.b16 %v769
      %v807 = vunpack.c.l.b16 %v770
      %v808 = vunpack.c.l.b16 %v771
      %v809 = vunpack.c.l.b16 %v772
      %v810 = vunpack.c.l.b16 %v773
      %v811 = vunpack.c.l.b16 %v774
      %v812 = vunpack.c.l.b16 %v775
      %v813 = vunpack.c.l.b16 %v776
      %v814 = vunpack.c.l.b16 %v777
      %v815 = vunpack.c.l.b16 %v778
      %v816 = vunpack.c.l.b16 %v779
      %v817 = vunpack.c.l.b16 %v780
      %v818 = vunpack.c.l.b16 %v781
      %v819 = vunpack.c.l.b16 %v782
      %v820 = vunpack.c.l.b16 %v783
      %v821 = vunpack.c.l.b16 %v784
      %v822 = vpack.c.b16 %v807, %v806
      %v823 = vpack.c.b16 %v809, %v808
      %v824 = vpack.c.b16 %v811, %v810
      %v825 = vpack.c.b16 %v813, %v812
      %v826 = vpack.c.b16 %v815, %v814
      %v827 = vpack.c.b16 %v817, %v816
      %v828 = vpack.c.b16 %v819, %v818
      %v829 = vpack.c.b16 %v821, %v820
      %838 = vmatpush.bf16.msra.mxu0 %v829
      %839 = vmatpush.bf16.msra.mxu0 %v828
      %840 = vmatpush.bf16.msra.mxu0 %v827
      %841 = vmatpush.bf16.msra.mxu0 %v826
      %842 = vmatpush.bf16.msra.mxu0 %v825
      %843 = vmatpush.bf16.msra.mxu0 %v824
      %844 = vmatpush.bf16.msra.mxu0 %v823
      %845 = vmatpush.bf16.msra.mxu0 %v822
      %846 = vmatmul.bf16.gmra.mxu0 %v686
      %v847 = vpop.f32.mrf.mxu0
      %v848 = vadd.f32 %v788, %v847
      %v849 = vpop.f32.mrf.mxu0
      %850 = vdwg.mxu0
      %s851 = scalar_lea.vmem %s4, 512
      %v852 = vld [vmem:[%s851] sm:$0xf]
      %v853 = vld [vmem:[%s851 + $0x4] sm:$0xf]
      %v854 = vld [vmem:[%s851 + $0x8] sm:$0xf]
      %v855 = vld [vmem:[%s851 + $0xc] sm:$0xf]
      %v856 = vld [vmem:[%s851 + $0x10] sm:$0xf]
      %v857 = vld [vmem:[%s851 + $0x14] sm:$0xf]
      %v858 = vld [vmem:[%s851 + $0x18] sm:$0xf]
      %v859 = vld [vmem:[%s851 + $0x1c] sm:$0xf]
      %v860 = vld [vmem:[%s851 + $0x20] sm:$0xf]
      %v861 = vld [vmem:[%s851 + $0x24] sm:$0xf]
      %v862 = vld [vmem:[%s851 + $0x28] sm:$0xf]
      %v863 = vld [vmem:[%s851 + $0x2c] sm:$0xf]
      %v864 = vld [vmem:[%s851 + $0x30] sm:$0xf]
      %v865 = vld [vmem:[%s851 + $0x34] sm:$0xf]
      %v866 = vld [vmem:[%s851 + $0x38] sm:$0xf]
      %v867 = vld [vmem:[%s851 + $0x3c] sm:$0xf]
      %s868 = scalar_lea.vmem %s5, 8
      %v869 = vld [vmem:[%s868] sm:$0x1]
      %v871 = vperm.slane %v869, 0
      %v889 = vunpack.c.l.b16 %v852
      %v890 = vunpack.c.l.b16 %v853
      %v891 = vunpack.c.l.b16 %v854
      %v892 = vunpack.c.l.b16 %v855
      %v893 = vunpack.c.l.b16 %v856
      %v894 = vunpack.c.l.b16 %v857
      %v895 = vunpack.c.l.b16 %v858
      %v896 = vunpack.c.l.b16 %v859
      %v897 = vunpack.c.l.b16 %v860
      %v898 = vunpack.c.l.b16 %v861
      %v899 = vunpack.c.l.b16 %v862
      %v900 = vunpack.c.l.b16 %v863
      %v901 = vunpack.c.l.b16 %v864
      %v902 = vunpack.c.l.b16 %v865
      %v903 = vunpack.c.l.b16 %v866
      %v904 = vunpack.c.l.b16 %v867
      %v905 = vpack.c.b16 %v890, %v889
      %v906 = vpack.c.b16 %v892, %v891
      %v907 = vpack.c.b16 %v894, %v893
      %v908 = vpack.c.b16 %v896, %v895
      %v909 = vpack.c.b16 %v898, %v897
      %v910 = vpack.c.b16 %v900, %v899
      %v911 = vpack.c.b16 %v902, %v901
      %v912 = vpack.c.b16 %v904, %v903
      %921 = vmatpush.bf16.msra.mxu0 %v912
      %922 = vmatpush.bf16.msra.mxu0 %v911
      %923 = vmatpush.bf16.msra.mxu0 %v910
      %924 = vmatpush.bf16.msra.mxu0 %v909
      %925 = vmatpush.bf16.msra.mxu0 %v908
      %926 = vmatpush.bf16.msra.mxu0 %v907
      %927 = vmatpush.bf16.msra.mxu0 %v906
      %928 = vmatpush.bf16.msra.mxu0 %v905
      %929 = vmatmul.bf16.gmra.mxu0 %v686
      %v930 = vpop.f32.mrf.mxu0
      %v931 = vadd.f32 %v871, %v930
      %v932 = vpop.f32.mrf.mxu0
      %933 = vdwg.mxu0
      %v934 = vpack.c.bf16 %v765, %v765
      %v935 = vpack.c.bf16 %v848, %v848
      %vm936 = vcmask 261120
      %v938 = vsel %vm936, %v934, 0
      %v941 = vsel %vm936, %v935, 0
      %943 = vmatpush.bf16.xpose.msra.mxu0 0
      %944 = vmatpush.bf16.xpose.msra.mxu0 0
      %945 = vmatpush.bf16.xpose.msra.mxu0 0
      %946 = vmatpush.bf16.xpose.msra.mxu0 0
      %947 = vmatpush.bf16.xpose.msra.mxu0 0
      %948 = vmatpush.bf16.xpose.msra.mxu0 0
      %949 = vmatpush.bf16.xpose.msra.mxu0 0
      %950 = vmatpush.bf16.xpose.msra.mxu0 %v941
      %951 = vmatmul.bf16.gmra.mxu0 %v938
      %v952 = vpop.f32.mrf.mxu0
      %v953 = vadd.f32 0.0, %v952
      %v954 = vpop.f32.mrf.mxu0
      %955 = vdwg.mxu0
      %vm956 = vcmask 64512
      %v957 = vsel %vm956, %v953, -inf
      %958 = vmax.xlane.f32.xlu0 %v957
      %v959 = vpop.xlane.xlu0 %958
      %v960 = vsub.f32 %v953, %v959
      %v961 = vmul.f32 %v960, 1.442695
      %v962 = vpow.pop %v961
      %v963 = vsel %vm956, %v962, 0.0
      %964 = vadd.xlane.f32.xlu0 %v963
      %v965 = vpop.xlane.xlu0 %964
      %v966 = vrcp.pop %v965
      %v967 = vmul.f32 %v965, %v966
      %v968 = vsub.f32 1.0, %v967
      %v969 = vmul.f32 %v966, %v968
      %v970 = vadd.f32 %v966, %v969
      %vm971 = vweird.f32 %v965
      %vm972 = vweird.f32 %v966
      %vm973 = vmor %vm971, %vm972
      %v974 = vsel %vm973, %v966, %v970
      %v975 = vand.u32 2147483647, %v965
      %vm976 = vcmp.eq.f32.partialorder %v975, 8.507059e+37
      %v977 = vand.u32 %v965, 2147483648
      %v978 = vor.u32 1.1754944e-38, %v977
      %v979 = vsel %vm976, %v978, %v974
      %v980 = vmul.f32 %v962, %v979
      %v981 = vpack.c.bf16 %v980, %v980
      %v982 = vpack.c.bf16 %v931, %v931
      %v984 = vsel %vm956, %v981, 0
      %vm986 = vcmask 1043456
      %v988 = vsel %vm986, %v982, 0
      %990 = vmatpush.bf16.msra.mxu0 0
      %991 = vmatpush.bf16.msra.mxu0 0
      %992 = vmatpush.bf16.msra.mxu0 0
      %993 = vmatpush.bf16.msra.mxu0 0
      %994 = vmatpush.bf16.msra.mxu0 0
      %995 = vmatpush.bf16.msra.mxu0 0
      %996 = vmatpush.bf16.msra.mxu0 0
      %997 = vmatpush.bf16.msra.mxu0 %v988
      %998 = vmatmul.bf16.gmra.mxu0 %v984
      %v999 = vpop.f32.mrf.mxu0
      %v1000 = vadd.f32 0.0, %v999
      %v1001 = vpop.f32.mrf.mxu0
      %1002 = vdwg.mxu0
      %v1003 = vpack.c.bf16 %v1000, %v1000
      %v1004 = vld [vmem:[%s6] sm:$0xf]
      %v1005 = vld [vmem:[%s6 + $0x4] sm:$0xf]
      %v1006 = vld [vmem:[%s6 + $0x8] sm:$0xf]
      %v1007 = vld [vmem:[%s6 + $0xc] sm:$0xf]
      %s1008 = scalar_lea.vmem %s4, 64
      %v1009 = vld [vmem:[%s1008] sm:$0xf]
      %v1010 = vld [vmem:[%s1008 + $0x4] sm:$0xf]
      %v1011 = vld [vmem:[%s1008 + $0x8] sm:$0xf]
      %v1012 = vld [vmem:[%s1008 + $0xc] sm:$0xf]
      %v1013 = vld [vmem:[%s1008 + $0x10] sm:$0xf]
      %v1014 = vld [vmem:[%s1008 + $0x14] sm:$0xf]
      %v1015 = vld [vmem:[%s1008 + $0x18] sm:$0xf]
      %v1016 = vld [vmem:[%s1008 + $0x1c] sm:$0xf]
      %v1017 = vld [vmem:[%s1008 + $0x20] sm:$0xf]
      %v1018 = vld [vmem:[%s1008 + $0x24] sm:$0xf]
      %v1019 = vld [vmem:[%s1008 + $0x28] sm:$0xf]
      %v1020 = vld [vmem:[%s1008 + $0x2c] sm:$0xf]
      %v1021 = vld [vmem:[%s1008 + $0x30] sm:$0xf]
      %v1022 = vld [vmem:[%s1008 + $0x34] sm:$0xf]
      %v1023 = vld [vmem:[%s1008 + $0x38] sm:$0xf]
      %v1024 = vld [vmem:[%s1008 + $0x3c] sm:$0xf]
      %s1025 = scalar_lea.vmem %s5, 1
      %v1026 = vld [vmem:[%s1025] sm:$0x1]
      %v1028 = vperm.slane %v1026, 0
      %v1046 = vunpack.c.l.b16 %v1009
      %v1047 = vunpack.c.l.b16 %v1010
      %v1048 = vunpack.c.l.b16 %v1011
      %v1049 = vunpack.c.l.b16 %v1012
      %v1050 = vunpack.c.l.b16 %v1013
      %v1051 = vunpack.c.l.b16 %v1014
      %v1052 = vunpack.c.l.b16 %v1015
      %v1053 = vunpack.c.l.b16 %v1016
      %v1054 = vunpack.c.l.b16 %v1017
      %v1055 = vunpack.c.l.b16 %v1018
      %v1056 = vunpack.c.l.b16 %v1019
      %v1057 = vunpack.c.l.b16 %v1020
      %v1058 = vunpack.c.l.b16 %v1021
      %v1059 = vunpack.c.l.b16 %v1022
      %v1060 = vunpack.c.l.b16 %v1023
      %v1061 = vunpack.c.l.b16 %v1024
      %v1062 = vpack.c.b16 %v1047, %v1046
      %v1063 = vpack.c.b16 %v1049, %v1048
      %v1064 = vpack.c.b16 %v1051, %v1050
      %v1065 = vpack.c.b16 %v1053, %v1052
      %v1066 = vpack.c.b16 %v1055, %v1054
      %v1067 = vpack.c.b16 %v1057, %v1056
      %v1068 = vpack.c.b16 %v1059, %v1058
      %v1069 = vpack.c.b16 %v1061, %v1060
      %1078 = vmatpush.bf16.msra.mxu0 %v1069
      %1079 = vmatpush.bf16.msra.mxu0 %v1068
      %1080 = vmatpush.bf16.msra.mxu0 %v1067
      %1081 = vmatpush.bf16.msra.mxu0 %v1066
      %1082 = vmatpush.bf16.msra.mxu0 %v1065
      %1083 = vmatpush.bf16.msra.mxu0 %v1064
      %1084 = vmatpush.bf16.msra.mxu0 %v1063
      %1085 = vmatpush.bf16.msra.mxu0 %v1062
      %1086 = vmatmul.bf16.gmra.mxu0 %v686
      %v1087 = vpop.f32.mrf.mxu0
      %v1088 = vadd.f32 %v1028, %v1087
      %v1089 = vpop.f32.mrf.mxu0
      %1090 = vdwg.mxu0
      %s1091 = scalar_lea.vmem %s4, 320
      %v1092 = vld [vmem:[%s1091] sm:$0xf]
      %v1093 = vld [vmem:[%s1091 + $0x4] sm:$0xf]
      %v1094 = vld [vmem:[%s1091 + $0x8] sm:$0xf]
      %v1095 = vld [vmem:[%s1091 + $0xc] sm:$0xf]
      %v1096 = vld [vmem:[%s1091 + $0x10] sm:$0xf]
      %v1097 = vld [vmem:[%s1091 + $0x14] sm:$0xf]
      %v1098 = vld [vmem:[%s1091 + $0x18] sm:$0xf]
      %v1099 = vld [vmem:[%s1091 + $0x1c] sm:$0xf]
      %v1100 = vld [vmem:[%s1091 + $0x20] sm:$0xf]
      %v1101 = vld [vmem:[%s1091 + $0x24] sm:$0xf]
      %v1102 = vld [vmem:[%s1091 + $0x28] sm:$0xf]
      %v1103 = vld [vmem:[%s1091 + $0x2c] sm:$0xf]
      %v1104 = vld [vmem:[%s1091 + $0x30] sm:$0xf]
      %v1105 = vld [vmem:[%s1091 + $0x34] sm:$0xf]
      %v1106 = vld [vmem:[%s1091 + $0x38] sm:$0xf]
      %v1107 = vld [vmem:[%s1091 + $0x3c] sm:$0xf]
      %s1108 = scalar_lea.vmem %s5, 5
      %v1109 = vld [vmem:[%s1108] sm:$0x1]
      %v1111 = vperm.slane %v1109, 0
      %v1129 = vunpack.c.l.b16 %v1092
      %v1130 = vunpack.c.l.b16 %v1093
      %v1131 = vunpack.c.l.b16 %v1094
      %v1132 = vunpack.c.l.b16 %v1095
      %v1133 = vunpack.c.l.b16 %v1096
      %v1134 = vunpack.c.l.b16 %v1097
      %v1135 = vunpack.c.l.b16 %v1098
      %v1136 = vunpack.c.l.b16 %v1099
      %v1137 = vunpack.c.l.b16 %v1100
      %v1138 = vunpack.c.l.b16 %v1101
      %v1139 = vunpack.c.l.b16 %v1102
      %v1140 = vunpack.c.l.b16 %v1103
      %v1141 = vunpack.c.l.b16 %v1104
      %v1142 = vunpack.c.l.b16 %v1105
      %v1143 = vunpack.c.l.b16 %v1106
      %v1144 = vunpack.c.l.b16 %v1107
      %v1145 = vpack.c.b16 %v1130, %v1129
      %v1146 = vpack.c.b16 %v1132, %v1131
      %v1147 = vpack.c.b16 %v1134, %v1133
      %v1148 = vpack.c.b16 %v1136, %v1135
      %v1149 = vpack.c.b16 %v1138, %v1137
      %v1150 = vpack.c.b16 %v1140, %v1139
      %v1151 = vpack.c.b16 %v1142, %v1141
      %v1152 = vpack.c.b16 %v1144, %v1143
      %1161 = vmatpush.bf16.msra.mxu0 %v1152
      %1162 = vmatpush.bf16.msra.mxu0 %v1151
      %1163 = vmatpush.bf16.msra.mxu0 %v1150
      %1164 = vmatpush.bf16.msra.mxu0 %v1149
      %1165 = vmatpush.bf16.msra.mxu0 %v1148
      %1166 = vmatpush.bf16.msra.mxu0 %v1147
      %1167 = vmatpush.bf16.msra.mxu0 %v1146
      %1168 = vmatpush.bf16.msra.mxu0 %v1145
      %1169 = vmatmul.bf16.gmra.mxu0 %v686
      %v1170 = vpop.f32.mrf.mxu0
      %v1171 = vadd.f32 %v1111, %v1170
      %v1172 = vpop.f32.mrf.mxu0
      %1173 = vdwg.mxu0
      %s1174 = scalar_lea.vmem %s4, 576
      %v1175 = vld [vmem:[%s1174] sm:$0xf]
      %v1176 = vld [vmem:[%s1174 + $0x4] sm:$0xf]
      %v1177 = vld [vmem:[%s1174 + $0x8] sm:$0xf]
      %v1178 = vld [vmem:[%s1174 + $0xc] sm:$0xf]
      %v1179 = vld [vmem:[%s1174 + $0x10] sm:$0xf]
      %v1180 = vld [vmem:[%s1174 + $0x14] sm:$0xf]
      %v1181 = vld [vmem:[%s1174 + $0x18] sm:$0xf]
      %v1182 = vld [vmem:[%s1174 + $0x1c] sm:$0xf]
      %v1183 = vld [vmem:[%s1174 + $0x20] sm:$0xf]
      %v1184 = vld [vmem:[%s1174 + $0x24] sm:$0xf]
      %v1185 = vld [vmem:[%s1174 + $0x28] sm:$0xf]
      %v1186 = vld [vmem:[%s1174 + $0x2c] sm:$0xf]
      %v1187 = vld [vmem:[%s1174 + $0x30] sm:$0xf]
      %v1188 = vld [vmem:[%s1174 + $0x34] sm:$0xf]
      %v1189 = vld [vmem:[%s1174 + $0x38] sm:$0xf]
      %v1190 = vld [vmem:[%s1174 + $0x3c] sm:$0xf]
      %s1191 = scalar_lea.vmem %s5, 9
      %v1192 = vld [vmem:[%s1191] sm:$0x1]
      %v1194 = vperm.slane %v1192, 0
      %v1212 = vunpack.c.l.b16 %v1175
      %v1213 = vunpack.c.l.b16 %v1176
      %v1214 = vunpack.c.l.b16 %v1177
      %v1215 = vunpack.c.l.b16 %v1178
      %v1216 = vunpack.c.l.b16 %v1179
      %v1217 = vunpack.c.l.b16 %v1180
      %v1218 = vunpack.c.l.b16 %v1181
      %v1219 = vunpack.c.l.b16 %v1182
      %v1220 = vunpack.c.l.b16 %v1183
      %v1221 = vunpack.c.l.b16 %v1184
      %v1222 = vunpack.c.l.b16 %v1185
      %v1223 = vunpack.c.l.b16 %v1186
      %v1224 = vunpack.c.l.b16 %v1187
      %v1225 = vunpack.c.l.b16 %v1188
      %v1226 = vunpack.c.l.b16 %v1189
      %v1227 = vunpack.c.l.b16 %v1190
      %v1228 = vpack.c.b16 %v1213, %v1212
      %v1229 = vpack.c.b16 %v1215, %v1214
      %v1230 = vpack.c.b16 %v1217, %v1216
      %v1231 = vpack.c.b16 %v1219, %v1218
      %v1232 = vpack.c.b16 %v1221, %v1220
      %v1233 = vpack.c.b16 %v1223, %v1222
      %v1234 = vpack.c.b16 %v1225, %v1224
      %v1235 = vpack.c.b16 %v1227, %v1226
      %1244 = vmatpush.bf16.msra.mxu0 %v1235
      %1245 = vmatpush.bf16.msra.mxu0 %v1234
      %1246 = vmatpush.bf16.msra.mxu0 %v1233
      %1247 = vmatpush.bf16.msra.mxu0 %v1232
      %1248 = vmatpush.bf16.msra.mxu0 %v1231
      %1249 = vmatpush.bf16.msra.mxu0 %v1230
      %1250 = vmatpush.bf16.msra.mxu0 %v1229
      %1251 = vmatpush.bf16.msra.mxu0 %v1228
      %1252 = vmatmul.bf16.gmra.mxu0 %v686
      %v1253 = vpop.f32.mrf.mxu0
      %v1254 = vadd.f32 %v1194, %v1253
      %v1255 = vpop.f32.mrf.mxu0
      %1256 = vdwg.mxu0
      %v1257 = vpack.c.bf16 %v1088, %v1088
      %v1258 = vpack.c.bf16 %v1171, %v1171
      %v1260 = vsel %vm936, %v1257, 0
      %v1263 = vsel %vm936, %v1258, 0
      %1265 = vmatpush.bf16.xpose.msra.mxu0 0
      %1266 = vmatpush.bf16.xpose.msra.mxu0 0
      %1267 = vmatpush.bf16.xpose.msra.mxu0 0
      %1268 = vmatpush.bf16.xpose.msra.mxu0 0
      %1269 = vmatpush.bf16.xpose.msra.mxu0 0
      %1270 = vmatpush.bf16.xpose.msra.mxu0 0
      %1271 = vmatpush.bf16.xpose.msra.mxu0 0
      %1272 = vmatpush.bf16.xpose.msra.mxu0 %v1263
      %1273 = vmatmul.bf16.gmra.mxu0 %v1260
      %v1274 = vpop.f32.mrf.mxu0
      %v1275 = vadd.f32 0.0, %v1274
      %v1276 = vpop.f32.mrf.mxu0
      %1277 = vdwg.mxu0
      %v1278 = vsel %vm956, %v1275, -inf
      %1279 = vmax.xlane.f32.xlu0 %v1278
      %v1280 = vpop.xlane.xlu0 %1279
      %v1281 = vsub.f32 %v1275, %v1280
      %v1282 = vmul.f32 %v1281, 1.442695
      %v1283 = vpow.pop %v1282
      %v1284 = vsel %vm956, %v1283, 0.0
      %1285 = vadd.xlane.f32.xlu0 %v1284
      %v1286 = vpop.xlane.xlu0 %1285
      %v1287 = vrcp.pop %v1286
      %v1288 = vmul.f32 %v1286, %v1287
      %v1289 = vsub.f32 1.0, %v1288
      %v1290 = vmul.f32 %v1287, %v1289
      %v1291 = vadd.f32 %v1287, %v1290
      %vm1292 = vweird.f32 %v1286
      %vm1293 = vweird.f32 %v1287
      %vm1294 = vmor %vm1292, %vm1293
      %v1295 = vsel %vm1294, %v1287, %v1291
      %v1296 = vand.u32 2147483647, %v1286
      %vm1297 = vcmp.eq.f32.partialorder %v1296, 8.507059e+37
      %v1298 = vand.u32 %v1286, 2147483648
      %v1299 = vor.u32 1.1754944e-38, %v1298
      %v1300 = vsel %vm1297, %v1299, %v1295
      %v1301 = vmul.f32 %v1283, %v1300
      %v1302 = vpack.c.bf16 %v1301, %v1301
      %v1303 = vpack.c.bf16 %v1254, %v1254
      %v1305 = vsel %vm956, %v1302, 0
      %v1308 = vsel %vm986, %v1303, 0
      %1310 = vmatpush.bf16.msra.mxu0 0
      %1311 = vmatpush.bf16.msra.mxu0 0
      %1312 = vmatpush.bf16.msra.mxu0 0
      %1313 = vmatpush.bf16.msra.mxu0 0
      %1314 = vmatpush.bf16.msra.mxu0 0
      %1315 = vmatpush.bf16.msra.mxu0 0
      %1316 = vmatpush.bf16.msra.mxu0 0
      %1317 = vmatpush.bf16.msra.mxu0 %v1308
      %1318 = vmatmul.bf16.gmra.mxu0 %v1305
      %v1319 = vpop.f32.mrf.mxu0
      %v1320 = vadd.f32 0.0, %v1319
      %v1321 = vpop.f32.mrf.mxu0
      %1322 = vdwg.mxu0
      %v1323 = vpack.c.bf16 %v1320, %v1320
      %s1324 = scalar_lea.vmem %s6, 16
      %v1325 = vld [vmem:[%s1324] sm:$0xf]
      %v1326 = vld [vmem:[%s1324 + $0x4] sm:$0xf]
      %v1327 = vld [vmem:[%s1324 + $0x8] sm:$0xf]
      %v1328 = vld [vmem:[%s1324 + $0xc] sm:$0xf]
      %v1333 = vunpack.c.l.b16 %v1325
      %v1334 = vunpack.c.l.b16 %v1326
      %v1335 = vunpack.c.l.b16 %v1327
      %v1336 = vunpack.c.l.b16 %v1328
      %v1337 = vpack.c.b16 %v1334, %v1333
      %v1338 = vpack.c.b16 %v1336, %v1335
      %v1342 = vsel %vm936, %v1323, 0
      %1344 = vmatpush.bf16.msra.mxu0 0
      %1345 = vmatpush.bf16.msra.mxu0 0
      %1346 = vmatpush.bf16.msra.mxu0 0
      %1347 = vmatpush.bf16.msra.mxu0 0
      %1348 = vmatpush.bf16.msra.mxu0 0
      %1349 = vmatpush.bf16.msra.mxu0 0
      %1350 = vmatpush.bf16.msra.mxu0 %v1338
      %1351 = vmatpush.bf16.msra.mxu0 %v1337
      %1352 = vmatmul.bf16.gmra.mxu0 %v1342
      %v1353 = vpop.f32.mrf.mxu0
      %v1354 = vadd.f32 0.0, %v1353
      %v1355 = vpop.f32.mrf.mxu0
      %1356 = vdwg.mxu0
      %v1361 = vunpack.c.l.b16 %v1004
      %v1362 = vunpack.c.l.b16 %v1005
      %v1363 = vunpack.c.l.b16 %v1006
      %v1364 = vunpack.c.l.b16 %v1007
      %v1365 = vpack.c.b16 %v1362, %v1361
      %v1366 = vpack.c.b16 %v1364, %v1363
      %v1370 = vsel %vm936, %v1003, 0
      %1372 = vmatpush.bf16.msra.mxu0 0
      %1373 = vmatpush.bf16.msra.mxu0 0
      %1374 = vmatpush.bf16.msra.mxu0 0
      %1375 = vmatpush.bf16.msra.mxu0 0
      %1376 = vmatpush.bf16.msra.mxu0 0
      %1377 = vmatpush.bf16.msra.mxu0 0
      %1378 = vmatpush.bf16.msra.mxu0 %v1366
      %1379 = vmatpush.bf16.msra.mxu0 %v1365
      %1380 = vmatmul.bf16.gmra.mxu0 %v1370
      %v1381 = vpop.f32.mrf.mxu0
      %v1382 = vadd.f32 %v1354, %v1381
      %v1383 = vpop.f32.mrf.mxu0
      %1384 = vdwg.mxu0
      %s1385 = scalar_lea.vmem %s4, 128
      %v1386 = vld [vmem:[%s1385] sm:$0xf]
      %v1387 = vld [vmem:[%s1385 + $0x4] sm:$0xf]
      %v1388 = vld [vmem:[%s1385 + $0x8] sm:$0xf]
      %v1389 = vld [vmem:[%s1385 + $0xc] sm:$0xf]
      %v1390 = vld [vmem:[%s1385 + $0x10] sm:$0xf]
      %v1391 = vld [vmem:[%s1385 + $0x14] sm:$0xf]
      %v1392 = vld [vmem:[%s1385 + $0x18] sm:$0xf]
      %v1393 = vld [vmem:[%s1385 + $0x1c] sm:$0xf]
      %v1394 = vld [vmem:[%s1385 + $0x20] sm:$0xf]
      %v1395 = vld [vmem:[%s1385 + $0x24] sm:$0xf]
      %v1396 = vld [vmem:[%s1385 + $0x28] sm:$0xf]
      %v1397 = vld [vmem:[%s1385 + $0x2c] sm:$0xf]
      %v1398 = vld [vmem:[%s1385 + $0x30] sm:$0xf]
      %v1399 = vld [vmem:[%s1385 + $0x34] sm:$0xf]
      %v1400 = vld [vmem:[%s1385 + $0x38] sm:$0xf]
      %v1401 = vld [vmem:[%s1385 + $0x3c] sm:$0xf]
      %s1402 = scalar_lea.vmem %s5, 2
      %v1403 = vld [vmem:[%s1402] sm:$0x1]
      %v1405 = vperm.slane %v1403, 0
      %v1423 = vunpack.c.l.b16 %v1386
      %v1424 = vunpack.c.l.b16 %v1387
      %v1425 = vunpack.c.l.b16 %v1388
      %v1426 = vunpack.c.l.b16 %v1389
      %v1427 = vunpack.c.l.b16 %v1390
      %v1428 = vunpack.c.l.b16 %v1391
      %v1429 = vunpack.c.l.b16 %v1392
      %v1430 = vunpack.c.l.b16 %v1393
      %v1431 = vunpack.c.l.b16 %v1394
      %v1432 = vunpack.c.l.b16 %v1395
      %v1433 = vunpack.c.l.b16 %v1396
      %v1434 = vunpack.c.l.b16 %v1397
      %v1435 = vunpack.c.l.b16 %v1398
      %v1436 = vunpack.c.l.b16 %v1399
      %v1437 = vunpack.c.l.b16 %v1400
      %v1438 = vunpack.c.l.b16 %v1401
      %v1439 = vpack.c.b16 %v1424, %v1423
      %v1440 = vpack.c.b16 %v1426, %v1425
      %v1441 = vpack.c.b16 %v1428, %v1427
      %v1442 = vpack.c.b16 %v1430, %v1429
      %v1443 = vpack.c.b16 %v1432, %v1431
      %v1444 = vpack.c.b16 %v1434, %v1433
      %v1445 = vpack.c.b16 %v1436, %v1435
      %v1446 = vpack.c.b16 %v1438, %v1437
      %1455 = vmatpush.bf16.msra.mxu0 %v1446
      %1456 = vmatpush.bf16.msra.mxu0 %v1445
      %1457 = vmatpush.bf16.msra.mxu0 %v1444
      %1458 = vmatpush.bf16.msra.mxu0 %v1443
      %1459 = vmatpush.bf16.msra.mxu0 %v1442
      %1460 = vmatpush.bf16.msra.mxu0 %v1441
      %1461 = vmatpush.bf16.msra.mxu0 %v1440
      %1462 = vmatpush.bf16.msra.mxu0 %v1439
      %1463 = vmatmul.bf16.gmra.mxu0 %v686
      %v1464 = vpop.f32.mrf.mxu0
      %v1465 = vadd.f32 %v1405, %v1464
      %v1466 = vpop.f32.mrf.mxu0
      %1467 = vdwg.mxu0
      %s1468 = scalar_lea.vmem %s4, 384
      %v1469 = vld [vmem:[%s1468] sm:$0xf]
      %v1470 = vld [vmem:[%s1468 + $0x4] sm:$0xf]
      %v1471 = vld [vmem:[%s1468 + $0x8] sm:$0xf]
      %v1472 = vld [vmem:[%s1468 + $0xc] sm:$0xf]
      %v1473 = vld [vmem:[%s1468 + $0x10] sm:$0xf]
      %v1474 = vld [vmem:[%s1468 + $0x14] sm:$0xf]
      %v1475 = vld [vmem:[%s1468 + $0x18] sm:$0xf]
      %v1476 = vld [vmem:[%s1468 + $0x1c] sm:$0xf]
      %v1477 = vld [vmem:[%s1468 + $0x20] sm:$0xf]
      %v1478 = vld [vmem:[%s1468 + $0x24] sm:$0xf]
      %v1479 = vld [vmem:[%s1468 + $0x28] sm:$0xf]
      %v1480 = vld [vmem:[%s1468 + $0x2c] sm:$0xf]
      %v1481 = vld [vmem:[%s1468 + $0x30] sm:$0xf]
      %v1482 = vld [vmem:[%s1468 + $0x34] sm:$0xf]
      %v1483 = vld [vmem:[%s1468 + $0x38] sm:$0xf]
      %v1484 = vld [vmem:[%s1468 + $0x3c] sm:$0xf]
      %s1485 = scalar_lea.vmem %s5, 6
      %v1486 = vld [vmem:[%s1485] sm:$0x1]
      %v1488 = vperm.slane %v1486, 0
      %v1506 = vunpack.c.l.b16 %v1469
      %v1507 = vunpack.c.l.b16 %v1470
      %v1508 = vunpack.c.l.b16 %v1471
      %v1509 = vunpack.c.l.b16 %v1472
      %v1510 = vunpack.c.l.b16 %v1473
      %v1511 = vunpack.c.l.b16 %v1474
      %v1512 = vunpack.c.l.b16 %v1475
      %v1513 = vunpack.c.l.b16 %v1476
      %v1514 = vunpack.c.l.b16 %v1477
      %v1515 = vunpack.c.l.b16 %v1478
      %v1516 = vunpack.c.l.b16 %v1479
      %v1517 = vunpack.c.l.b16 %v1480
      %v1518 = vunpack.c.l.b16 %v1481
      %v1519 = vunpack.c.l.b16 %v1482
      %v1520 = vunpack.c.l.b16 %v1483
      %v1521 = vunpack.c.l.b16 %v1484
      %v1522 = vpack.c.b16 %v1507, %v1506
      %v1523 = vpack.c.b16 %v1509, %v1508
      %v1524 = vpack.c.b16 %v1511, %v1510
      %v1525 = vpack.c.b16 %v1513, %v1512
      %v1526 = vpack.c.b16 %v1515, %v1514
      %v1527 = vpack.c.b16 %v1517, %v1516
      %v1528 = vpack.c.b16 %v1519, %v1518
      %v1529 = vpack.c.b16 %v1521, %v1520
      %1538 = vmatpush.bf16.msra.mxu0 %v1529
      %1539 = vmatpush.bf16.msra.mxu0 %v1528
      %1540 = vmatpush.bf16.msra.mxu0 %v1527
      %1541 = vmatpush.bf16.msra.mxu0 %v1526
      %1542 = vmatpush.bf16.msra.mxu0 %v1525
      %1543 = vmatpush.bf16.msra.mxu0 %v1524
      %1544 = vmatpush.bf16.msra.mxu0 %v1523
      %1545 = vmatpush.bf16.msra.mxu0 %v1522
      %1546 = vmatmul.bf16.gmra.mxu0 %v686
      %v1547 = vpop.f32.mrf.mxu0
      %v1548 = vadd.f32 %v1488, %v1547
      %v1549 = vpop.f32.mrf.mxu0
      %1550 = vdwg.mxu0
      %s1551 = scalar_lea.vmem %s4, 640
      %v1552 = vld [vmem:[%s1551] sm:$0xf]
      %v1553 = vld [vmem:[%s1551 + $0x4] sm:$0xf]
      %v1554 = vld [vmem:[%s1551 + $0x8] sm:$0xf]
      %v1555 = vld [vmem:[%s1551 + $0xc] sm:$0xf]
      %v1556 = vld [vmem:[%s1551 + $0x10] sm:$0xf]
      %v1557 = vld [vmem:[%s1551 + $0x14] sm:$0xf]
      %v1558 = vld [vmem:[%s1551 + $0x18] sm:$0xf]
      %v1559 = vld [vmem:[%s1551 + $0x1c] sm:$0xf]
      %v1560 = vld [vmem:[%s1551 + $0x20] sm:$0xf]
      %v1561 = vld [vmem:[%s1551 + $0x24] sm:$0xf]
      %v1562 = vld [vmem:[%s1551 + $0x28] sm:$0xf]
      %v1563 = vld [vmem:[%s1551 + $0x2c] sm:$0xf]
      %v1564 = vld [vmem:[%s1551 + $0x30] sm:$0xf]
      %v1565 = vld [vmem:[%s1551 + $0x34] sm:$0xf]
      %v1566 = vld [vmem:[%s1551 + $0x38] sm:$0xf]
      %v1567 = vld [vmem:[%s1551 + $0x3c] sm:$0xf]
      %s1568 = scalar_lea.vmem %s5, 10
      %v1569 = vld [vmem:[%s1568] sm:$0x1]
      %v1571 = vperm.slane %v1569, 0
      %v1589 = vunpack.c.l.b16 %v1552
      %v1590 = vunpack.c.l.b16 %v1553
      %v1591 = vunpack.c.l.b16 %v1554
      %v1592 = vunpack.c.l.b16 %v1555
      %v1593 = vunpack.c.l.b16 %v1556
      %v1594 = vunpack.c.l.b16 %v1557
      %v1595 = vunpack.c.l.b16 %v1558
      %v1596 = vunpack.c.l.b16 %v1559
      %v1597 = vunpack.c.l.b16 %v1560
      %v1598 = vunpack.c.l.b16 %v1561
      %v1599 = vunpack.c.l.b16 %v1562
      %v1600 = vunpack.c.l.b16 %v1563
      %v1601 = vunpack.c.l.b16 %v1564
      %v1602 = vunpack.c.l.b16 %v1565
      %v1603 = vunpack.c.l.b16 %v1566
      %v1604 = vunpack.c.l.b16 %v1567
      %v1605 = vpack.c.b16 %v1590, %v1589
      %v1606 = vpack.c.b16 %v1592, %v1591
      %v1607 = vpack.c.b16 %v1594, %v1593
      %v1608 = vpack.c.b16 %v1596, %v1595
      %v1609 = vpack.c.b16 %v1598, %v1597
      %v1610 = vpack.c.b16 %v1600, %v1599
      %v1611 = vpack.c.b16 %v1602, %v1601
      %v1612 = vpack.c.b16 %v1604, %v1603
      %1621 = vmatpush.bf16.msra.mxu0 %v1612
      %1622 = vmatpush.bf16.msra.mxu0 %v1611
      %1623 = vmatpush.bf16.msra.mxu0 %v1610
      %1624 = vmatpush.bf16.msra.mxu0 %v1609
      %1625 = vmatpush.bf16.msra.mxu0 %v1608
      %1626 = vmatpush.bf16.msra.mxu0 %v1607
      %1627 = vmatpush.bf16.msra.mxu0 %v1606
      %1628 = vmatpush.bf16.msra.mxu0 %v1605
      %1629 = vmatmul.bf16.gmra.mxu0 %v686
      %v1630 = vpop.f32.mrf.mxu0
      %v1631 = vadd.f32 %v1571, %v1630
      %v1632 = vpop.f32.mrf.mxu0
      %1633 = vdwg.mxu0
      %v1634 = vpack.c.bf16 %v1465, %v1465
      %v1635 = vpack.c.bf16 %v1548, %v1548
      %v1637 = vsel %vm936, %v1634, 0
      %v1640 = vsel %vm936, %v1635, 0
      %1642 = vmatpush.bf16.xpose.msra.mxu0 0
      %1643 = vmatpush.bf16.xpose.msra.mxu0 0
      %1644 = vmatpush.bf16.xpose.msra.mxu0 0
      %1645 = vmatpush.bf16.xpose.msra.mxu0 0
      %1646 = vmatpush.bf16.xpose.msra.mxu0 0
      %1647 = vmatpush.bf16.xpose.msra.mxu0 0
      %1648 = vmatpush.bf16.xpose.msra.mxu0 0
      %1649 = vmatpush.bf16.xpose.msra.mxu0 %v1640
      %1650 = vmatmul.bf16.gmra.mxu0 %v1637
      %v1651 = vpop.f32.mrf.mxu0
      %v1652 = vadd.f32 0.0, %v1651
      %v1653 = vpop.f32.mrf.mxu0
      %1654 = vdwg.mxu0
      %v1655 = vsel %vm956, %v1652, -inf
      %1656 = vmax.xlane.f32.xlu0 %v1655
      %v1657 = vpop.xlane.xlu0 %1656
      %v1658 = vsub.f32 %v1652, %v1657
      %v1659 = vmul.f32 %v1658, 1.442695
      %v1660 = vpow.pop %v1659
      %v1661 = vsel %vm956, %v1660, 0.0
      %1662 = vadd.xlane.f32.xlu0 %v1661
      %v1663 = vpop.xlane.xlu0 %1662
      %v1664 = vrcp.pop %v1663
      %v1665 = vmul.f32 %v1663, %v1664
      %v1666 = vsub.f32 1.0, %v1665
      %v1667 = vmul.f32 %v1664, %v1666
      %v1668 = vadd.f32 %v1664, %v1667
      %vm1669 = vweird.f32 %v1663
      %vm1670 = vweird.f32 %v1664
      %vm1671 = vmor %vm1669, %vm1670
      %v1672 = vsel %vm1671, %v1664, %v1668
      %v1673 = vand.u32 2147483647, %v1663
      %vm1674 = vcmp.eq.f32.partialorder %v1673, 8.507059e+37
      %v1675 = vand.u32 %v1663, 2147483648
      %v1676 = vor.u32 1.1754944e-38, %v1675
      %v1677 = vsel %vm1674, %v1676, %v1672
      %v1678 = vmul.f32 %v1660, %v1677
      %v1679 = vpack.c.bf16 %v1678, %v1678
      %v1680 = vpack.c.bf16 %v1631, %v1631
      %v1682 = vsel %vm956, %v1679, 0
      %v1685 = vsel %vm986, %v1680, 0
      %1687 = vmatpush.bf16.msra.mxu0 0
      %1688 = vmatpush.bf16.msra.mxu0 0
      %1689 = vmatpush.bf16.msra.mxu0 0
      %1690 = vmatpush.bf16.msra.mxu0 0
      %1691 = vmatpush.bf16.msra.mxu0 0
      %1692 = vmatpush.bf16.msra.mxu0 0
      %1693 = vmatpush.bf16.msra.mxu0 0
      %1694 = vmatpush.bf16.msra.mxu0 %v1685
      %1695 = vmatmul.bf16.gmra.mxu0 %v1682
      %v1696 = vpop.f32.mrf.mxu0
      %v1697 = vadd.f32 0.0, %v1696
      %v1698 = vpop.f32.mrf.mxu0
      %1699 = vdwg.mxu0
      %v1700 = vpack.c.bf16 %v1697, %v1697
      %s1701 = scalar_lea.vmem %s6, 32
      %v1702 = vld [vmem:[%s1701] sm:$0xf]
      %v1703 = vld [vmem:[%s1701 + $0x4] sm:$0xf]
      %v1704 = vld [vmem:[%s1701 + $0x8] sm:$0xf]
      %v1705 = vld [vmem:[%s1701 + $0xc] sm:$0xf]
      %v1710 = vunpack.c.l.b16 %v1702
      %v1711 = vunpack.c.l.b16 %v1703
      %v1712 = vunpack.c.l.b16 %v1704
      %v1713 = vunpack.c.l.b16 %v1705
      %v1714 = vpack.c.b16 %v1711, %v1710
      %v1715 = vpack.c.b16 %v1713, %v1712
      %v1719 = vsel %vm936, %v1700, 0
      %1721 = vmatpush.bf16.msra.mxu0 0
      %1722 = vmatpush.bf16.msra.mxu0 0
      %1723 = vmatpush.bf16.msra.mxu0 0
      %1724 = vmatpush.bf16.msra.mxu0 0
      %1725 = vmatpush.bf16.msra.mxu0 0
      %1726 = vmatpush.bf16.msra.mxu0 0
      %1727 = vmatpush.bf16.msra.mxu0 %v1715
      %1728 = vmatpush.bf16.msra.mxu0 %v1714
      %1729 = vmatmul.bf16.gmra.mxu0 %v1719
      %v1730 = vpop.f32.mrf.mxu0
      %v1731 = vadd.f32 0.0, %v1730
      %v1732 = vpop.f32.mrf.mxu0
      %1733 = vdwg.mxu0
      %v1734 = vadd.f32 %v1382, %v1731
      %s1735 = scalar_lea.vmem %s4, 192
      %v1736 = vld [vmem:[%s1735] sm:$0xf]
      %v1737 = vld [vmem:[%s1735 + $0x4] sm:$0xf]
      %v1738 = vld [vmem:[%s1735 + $0x8] sm:$0xf]
      %v1739 = vld [vmem:[%s1735 + $0xc] sm:$0xf]
      %v1740 = vld [vmem:[%s1735 + $0x10] sm:$0xf]
      %v1741 = vld [vmem:[%s1735 + $0x14] sm:$0xf]
      %v1742 = vld [vmem:[%s1735 + $0x18] sm:$0xf]
      %v1743 = vld [vmem:[%s1735 + $0x1c] sm:$0xf]
      %v1744 = vld [vmem:[%s1735 + $0x20] sm:$0xf]
      %v1745 = vld [vmem:[%s1735 + $0x24] sm:$0xf]
      %v1746 = vld [vmem:[%s1735 + $0x28] sm:$0xf]
      %v1747 = vld [vmem:[%s1735 + $0x2c] sm:$0xf]
      %v1748 = vld [vmem:[%s1735 + $0x30] sm:$0xf]
      %v1749 = vld [vmem:[%s1735 + $0x34] sm:$0xf]
      %v1750 = vld [vmem:[%s1735 + $0x38] sm:$0xf]
      %v1751 = vld [vmem:[%s1735 + $0x3c] sm:$0xf]
      %s1752 = scalar_lea.vmem %s5, 3
      %v1753 = vld [vmem:[%s1752] sm:$0x1]
      %v1755 = vperm.slane %v1753, 0
      %v1773 = vunpack.c.l.b16 %v1736
      %v1774 = vunpack.c.l.b16 %v1737
      %v1775 = vunpack.c.l.b16 %v1738
      %v1776 = vunpack.c.l.b16 %v1739
      %v1777 = vunpack.c.l.b16 %v1740
      %v1778 = vunpack.c.l.b16 %v1741
      %v1779 = vunpack.c.l.b16 %v1742
      %v1780 = vunpack.c.l.b16 %v1743
      %v1781 = vunpack.c.l.b16 %v1744
      %v1782 = vunpack.c.l.b16 %v1745
      %v1783 = vunpack.c.l.b16 %v1746
      %v1784 = vunpack.c.l.b16 %v1747
      %v1785 = vunpack.c.l.b16 %v1748
      %v1786 = vunpack.c.l.b16 %v1749
      %v1787 = vunpack.c.l.b16 %v1750
      %v1788 = vunpack.c.l.b16 %v1751
      %v1789 = vpack.c.b16 %v1774, %v1773
      %v1790 = vpack.c.b16 %v1776, %v1775
      %v1791 = vpack.c.b16 %v1778, %v1777
      %v1792 = vpack.c.b16 %v1780, %v1779
      %v1793 = vpack.c.b16 %v1782, %v1781
      %v1794 = vpack.c.b16 %v1784, %v1783
      %v1795 = vpack.c.b16 %v1786, %v1785
      %v1796 = vpack.c.b16 %v1788, %v1787
      %1805 = vmatpush.bf16.msra.mxu0 %v1796
      %1806 = vmatpush.bf16.msra.mxu0 %v1795
      %1807 = vmatpush.bf16.msra.mxu0 %v1794
      %1808 = vmatpush.bf16.msra.mxu0 %v1793
      %1809 = vmatpush.bf16.msra.mxu0 %v1792
      %1810 = vmatpush.bf16.msra.mxu0 %v1791
      %1811 = vmatpush.bf16.msra.mxu0 %v1790
      %1812 = vmatpush.bf16.msra.mxu0 %v1789
      %1813 = vmatmul.bf16.gmra.mxu0 %v686
      %v1814 = vpop.f32.mrf.mxu0
      %v1815 = vadd.f32 %v1755, %v1814
      %v1816 = vpop.f32.mrf.mxu0
      %1817 = vdwg.mxu0
      %s1818 = scalar_lea.vmem %s4, 448
      %v1819 = vld [vmem:[%s1818] sm:$0xf]
      %v1820 = vld [vmem:[%s1818 + $0x4] sm:$0xf]
      %v1821 = vld [vmem:[%s1818 + $0x8] sm:$0xf]
      %v1822 = vld [vmem:[%s1818 + $0xc] sm:$0xf]
      %v1823 = vld [vmem:[%s1818 + $0x10] sm:$0xf]
      %v1824 = vld [vmem:[%s1818 + $0x14] sm:$0xf]
      %v1825 = vld [vmem:[%s1818 + $0x18] sm:$0xf]
      %v1826 = vld [vmem:[%s1818 + $0x1c] sm:$0xf]
      %v1827 = vld [vmem:[%s1818 + $0x20] sm:$0xf]
      %v1828 = vld [vmem:[%s1818 + $0x24] sm:$0xf]
      %v1829 = vld [vmem:[%s1818 + $0x28] sm:$0xf]
      %v1830 = vld [vmem:[%s1818 + $0x2c] sm:$0xf]
      %v1831 = vld [vmem:[%s1818 + $0x30] sm:$0xf]
      %v1832 = vld [vmem:[%s1818 + $0x34] sm:$0xf]
      %v1833 = vld [vmem:[%s1818 + $0x38] sm:$0xf]
      %v1834 = vld [vmem:[%s1818 + $0x3c] sm:$0xf]
      %s1835 = scalar_lea.vmem %s5, 7
      %v1836 = vld [vmem:[%s1835] sm:$0x1]
      %v1838 = vperm.slane %v1836, 0
      %v1856 = vunpack.c.l.b16 %v1819
      %v1857 = vunpack.c.l.b16 %v1820
      %v1858 = vunpack.c.l.b16 %v1821
      %v1859 = vunpack.c.l.b16 %v1822
      %v1860 = vunpack.c.l.b16 %v1823
      %v1861 = vunpack.c.l.b16 %v1824
      %v1862 = vunpack.c.l.b16 %v1825
      %v1863 = vunpack.c.l.b16 %v1826
      %v1864 = vunpack.c.l.b16 %v1827
      %v1865 = vunpack.c.l.b16 %v1828
      %v1866 = vunpack.c.l.b16 %v1829
      %v1867 = vunpack.c.l.b16 %v1830
      %v1868 = vunpack.c.l.b16 %v1831
      %v1869 = vunpack.c.l.b16 %v1832
      %v1870 = vunpack.c.l.b16 %v1833
      %v1871 = vunpack.c.l.b16 %v1834
      %v1872 = vpack.c.b16 %v1857, %v1856
      %v1873 = vpack.c.b16 %v1859, %v1858
      %v1874 = vpack.c.b16 %v1861, %v1860
      %v1875 = vpack.c.b16 %v1863, %v1862
      %v1876 = vpack.c.b16 %v1865, %v1864
      %v1877 = vpack.c.b16 %v1867, %v1866
      %v1878 = vpack.c.b16 %v1869, %v1868
      %v1879 = vpack.c.b16 %v1871, %v1870
      %1888 = vmatpush.bf16.msra.mxu0 %v1879
      %1889 = vmatpush.bf16.msra.mxu0 %v1878
      %1890 = vmatpush.bf16.msra.mxu0 %v1877
      %1891 = vmatpush.bf16.msra.mxu0 %v1876
      %1892 = vmatpush.bf16.msra.mxu0 %v1875
      %1893 = vmatpush.bf16.msra.mxu0 %v1874
      %1894 = vmatpush.bf16.msra.mxu0 %v1873
      %1895 = vmatpush.bf16.msra.mxu0 %v1872
      %1896 = vmatmul.bf16.gmra.mxu0 %v686
      %v1897 = vpop.f32.mrf.mxu0
      %v1898 = vadd.f32 %v1838, %v1897
      %v1899 = vpop.f32.mrf.mxu0
      %1900 = vdwg.mxu0
      %s1901 = scalar_lea.vmem %s4, 704
      %v1902 = vld [vmem:[%s1901] sm:$0xf]
      %v1903 = vld [vmem:[%s1901 + $0x4] sm:$0xf]
      %v1904 = vld [vmem:[%s1901 + $0x8] sm:$0xf]
      %v1905 = vld [vmem:[%s1901 + $0xc] sm:$0xf]
      %v1906 = vld [vmem:[%s1901 + $0x10] sm:$0xf]
      %v1907 = vld [vmem:[%s1901 + $0x14] sm:$0xf]
      %v1908 = vld [vmem:[%s1901 + $0x18] sm:$0xf]
      %v1909 = vld [vmem:[%s1901 + $0x1c] sm:$0xf]
      %v1910 = vld [vmem:[%s1901 + $0x20] sm:$0xf]
      %v1911 = vld [vmem:[%s1901 + $0x24] sm:$0xf]
      %v1912 = vld [vmem:[%s1901 + $0x28] sm:$0xf]
      %v1913 = vld [vmem:[%s1901 + $0x2c] sm:$0xf]
      %v1914 = vld [vmem:[%s1901 + $0x30] sm:$0xf]
      %v1915 = vld [vmem:[%s1901 + $0x34] sm:$0xf]
      %v1916 = vld [vmem:[%s1901 + $0x38] sm:$0xf]
      %v1917 = vld [vmem:[%s1901 + $0x3c] sm:$0xf]
      %s1918 = scalar_lea.vmem %s5, 11
      %v1919 = vld [vmem:[%s1918] sm:$0x1]
      %v1921 = vperm.slane %v1919, 0
      %v1939 = vunpack.c.l.b16 %v1902
      %v1940 = vunpack.c.l.b16 %v1903
      %v1941 = vunpack.c.l.b16 %v1904
      %v1942 = vunpack.c.l.b16 %v1905
      %v1943 = vunpack.c.l.b16 %v1906
      %v1944 = vunpack.c.l.b16 %v1907
      %v1945 = vunpack.c.l.b16 %v1908
      %v1946 = vunpack.c.l.b16 %v1909
      %v1947 = vunpack.c.l.b16 %v1910
      %v1948 = vunpack.c.l.b16 %v1911
      %v1949 = vunpack.c.l.b16 %v1912
      %v1950 = vunpack.c.l.b16 %v1913
      %v1951 = vunpack.c.l.b16 %v1914
      %v1952 = vunpack.c.l.b16 %v1915
      %v1953 = vunpack.c.l.b16 %v1916
      %v1954 = vunpack.c.l.b16 %v1917
      %v1955 = vpack.c.b16 %v1940, %v1939
      %v1956 = vpack.c.b16 %v1942, %v1941
      %v1957 = vpack.c.b16 %v1944, %v1943
      %v1958 = vpack.c.b16 %v1946, %v1945
      %v1959 = vpack.c.b16 %v1948, %v1947
      %v1960 = vpack.c.b16 %v1950, %v1949
      %v1961 = vpack.c.b16 %v1952, %v1951
      %v1962 = vpack.c.b16 %v1954, %v1953
      %1971 = vmatpush.bf16.msra.mxu0 %v1962
      %1972 = vmatpush.bf16.msra.mxu0 %v1961
      %1973 = vmatpush.bf16.msra.mxu0 %v1960
      %1974 = vmatpush.bf16.msra.mxu0 %v1959
      %1975 = vmatpush.bf16.msra.mxu0 %v1958
      %1976 = vmatpush.bf16.msra.mxu0 %v1957
      %1977 = vmatpush.bf16.msra.mxu0 %v1956
      %1978 = vmatpush.bf16.msra.mxu0 %v1955
      %1979 = vmatmul.bf16.gmra.mxu0 %v686
      %v1980 = vpop.f32.mrf.mxu0
      %v1981 = vadd.f32 %v1921, %v1980
      %v1982 = vpop.f32.mrf.mxu0
      %1983 = vdwg.mxu0
      %v1984 = vpack.c.bf16 %v1815, %v1815
      %v1985 = vpack.c.bf16 %v1898, %v1898
      %v1987 = vsel %vm936, %v1984, 0
      %v1990 = vsel %vm936, %v1985, 0
      %1992 = vmatpush.bf16.xpose.msra.mxu0 0
      %1993 = vmatpush.bf16.xpose.msra.mxu0 0
      %1994 = vmatpush.bf16.xpose.msra.mxu0 0
      %1995 = vmatpush.bf16.xpose.msra.mxu0 0
      %1996 = vmatpush.bf16.xpose.msra.mxu0 0
      %1997 = vmatpush.bf16.xpose.msra.mxu0 0
      %1998 = vmatpush.bf16.xpose.msra.mxu0 0
      %1999 = vmatpush.bf16.xpose.msra.mxu0 %v1990
      %2000 = vmatmul.bf16.gmra.mxu0 %v1987
      %v2001 = vpop.f32.mrf.mxu0
      %v2002 = vadd.f32 0.0, %v2001
      %v2003 = vpop.f32.mrf.mxu0
      %2004 = vdwg.mxu0
      %v2005 = vsel %vm956, %v2002, -inf
      %2006 = vmax.xlane.f32.xlu0 %v2005
      %v2007 = vpop.xlane.xlu0 %2006
      %v2008 = vsub.f32 %v2002, %v2007
      %v2009 = vmul.f32 %v2008, 1.442695
      %v2010 = vpow.pop %v2009
      %v2011 = vsel %vm956, %v2010, 0.0
      %2012 = vadd.xlane.f32.xlu0 %v2011
      %v2013 = vpop.xlane.xlu0 %2012
      %v2014 = vrcp.pop %v2013
      %v2015 = vmul.f32 %v2013, %v2014
      %v2016 = vsub.f32 1.0, %v2015
      %v2017 = vmul.f32 %v2014, %v2016
      %v2018 = vadd.f32 %v2014, %v2017
      %vm2019 = vweird.f32 %v2013
      %vm2020 = vweird.f32 %v2014
      %vm2021 = vmor %vm2019, %vm2020
      %v2022 = vsel %vm2021, %v2014, %v2018
      %v2023 = vand.u32 2147483647, %v2013
      %vm2024 = vcmp.eq.f32.partialorder %v2023, 8.507059e+37
      %v2025 = vand.u32 %v2013, 2147483648
      %v2026 = vor.u32 1.1754944e-38, %v2025
      %v2027 = vsel %vm2024, %v2026, %v2022
      %v2028 = vmul.f32 %v2010, %v2027
      %v2029 = vpack.c.bf16 %v2028, %v2028
      %v2030 = vpack.c.bf16 %v1981, %v1981
      %v2032 = vsel %vm956, %v2029, 0
      %v2035 = vsel %vm986, %v2030, 0
      %2037 = vmatpush.bf16.msra.mxu0 0
      %2038 = vmatpush.bf16.msra.mxu0 0
      %2039 = vmatpush.bf16.msra.mxu0 0
      %2040 = vmatpush.bf16.msra.mxu0 0
      %2041 = vmatpush.bf16.msra.mxu0 0
      %2042 = vmatpush.bf16.msra.mxu0 0
      %2043 = vmatpush.bf16.msra.mxu0 0
      %2044 = vmatpush.bf16.msra.mxu0 %v2035
      %2045 = vmatmul.bf16.gmra.mxu0 %v2032
      %v2046 = vpop.f32.mrf.mxu0
      %v2047 = vadd.f32 0.0, %v2046
      %v2048 = vpop.f32.mrf.mxu0
      %2049 = vdwg.mxu0
      %v2050 = vpack.c.bf16 %v2047, %v2047
      %s2051 = scalar_lea.vmem %s6, 48
      %v2052 = vld [vmem:[%s2051] sm:$0xf]
      %v2053 = vld [vmem:[%s2051 + $0x4] sm:$0xf]
      %v2054 = vld [vmem:[%s2051 + $0x8] sm:$0xf]
      %v2055 = vld [vmem:[%s2051 + $0xc] sm:$0xf]
      %v2060 = vunpack.c.l.b16 %v2052
      %v2061 = vunpack.c.l.b16 %v2053
      %v2062 = vunpack.c.l.b16 %v2054
      %v2063 = vunpack.c.l.b16 %v2055
      %v2064 = vpack.c.b16 %v2061, %v2060
      %v2065 = vpack.c.b16 %v2063, %v2062
      %v2069 = vsel %vm936, %v2050, 0
      %2071 = vmatpush.bf16.msra.mxu0 0
      %2072 = vmatpush.bf16.msra.mxu0 0
      %2073 = vmatpush.bf16.msra.mxu0 0
      %2074 = vmatpush.bf16.msra.mxu0 0
      %2075 = vmatpush.bf16.msra.mxu0 0
      %2076 = vmatpush.bf16.msra.mxu0 0
      %2077 = vmatpush.bf16.msra.mxu0 %v2065
      %2078 = vmatpush.bf16.msra.mxu0 %v2064
      %2079 = vmatmul.bf16.gmra.mxu0 %v2069
      %v2080 = vpop.f32.mrf.mxu0
      %v2081 = vadd.f32 0.0, %v2080
      %v2082 = vpop.f32.mrf.mxu0
      %2083 = vdwg.mxu0
      %v2084 = vadd.f32 %v1734, %v2081
      %v2085 = vld [vmem:[%s7] sm:$0x1]
      %v2087 = vperm.slane %v2085, 0
      %v2089 = vadd.f32 %v2084, %v2087
      %v2090 = vadd.f32 %v646, %v2089
      %v2091 = vld [vmem:[%s8] sm:$0x1]
      %v2092 = vld [vmem:[%s9] sm:$0x1]
      %2093 = vadd.xlane.f32.xlu0 %v2090
      %v2094 = vpop.xlane.xlu0 %2093
      %v2095 = vmul.f32 %v2094, %v659
      %v2096 = vsub.f32 %v2090, %v2095
      %v2097 = vmul.f32 %v2096, %v2096
      %2098 = vadd.xlane.f32.xlu0 %v2097
      %v2099 = vpop.xlane.xlu0 %2098
      %v2100 = vmul.f32 %v2099, %v659
      %v2101 = vadd.f32 %v2100, 1e-05
      %v2102 = vrsqrt.pop %v2101
      %v2103 = vmul.f32 %v2102, %v2101
      %v2104 = vmul.f32 %v2103, %v2102
      %v2105 = vmul.f32 0.5, %v2104
      %v2106 = vsub.f32 1.5, %v2105
      %v2107 = vmul.f32 %v2102, %v2106
      %vm2108 = vweird.f32 %v2101
      %vm2109 = vweird.f32 %v2102
      %vm2110 = vmor %vm2108, %vm2109
      %v2111 = vsel %vm2110, %v2102, %v2107
      %v2112 = vmul.f32 %v2096, %v2111
      %v2114 = vperm.slane %v2091, 0
      %v2116 = vmul.f32 %v2112, %v2114
      %v2118 = vperm.slane %v2092, 0
      %v2120 = vadd.f32 %v2116, %v2118
      %v2121 = vpack.c.bf16 %v2120, %v2120
      %v2122 = vpack.c.bf16 %v648, %v647
      %v2123 = vld [vmem:[%s10] sm:$0xf]
      %v2124 = vld [vmem:[%s10 + $0x4] sm:$0xf]
      %v2125 = vld [vmem:[%s10 + $0x8] sm:$0xf]
      %v2126 = vld [vmem:[%s10 + $0xc] sm:$0xf]
      %v2127 = vld [vmem:[%s10 + $0x10] sm:$0xf]
      %v2128 = vld [vmem:[%s10 + $0x14] sm:$0xf]
      %v2129 = vld [vmem:[%s10 + $0x18] sm:$0xf]
      %v2130 = vld [vmem:[%s10 + $0x1c] sm:$0xf]
      %v2131 = vld [vmem:[%s10 + $0x20] sm:$0xf]
      %v2132 = vld [vmem:[%s10 + $0x24] sm:$0xf]
      %v2133 = vld [vmem:[%s10 + $0x28] sm:$0xf]
      %v2134 = vld [vmem:[%s10 + $0x2c] sm:$0xf]
      %v2135 = vld [vmem:[%s10 + $0x30] sm:$0xf]
      %v2136 = vld [vmem:[%s10 + $0x34] sm:$0xf]
      %v2137 = vld [vmem:[%s10 + $0x38] sm:$0xf]
      %v2138 = vld [vmem:[%s10 + $0x3c] sm:$0xf]
      %v2139 = vld [vmem:[%s11] sm:$0x1]
      %v2141 = vperm.slane %v2139, 0
      %v2159 = vunpack.c.l.b16 %v2123
      %v2160 = vunpack.c.l.b16 %v2124
      %v2161 = vunpack.c.l.b16 %v2125
      %v2162 = vunpack.c.l.b16 %v2126
      %v2163 = vunpack.c.l.b16 %v2127
      %v2164 = vunpack.c.l.b16 %v2128
      %v2165 = vunpack.c.l.b16 %v2129
      %v2166 = vunpack.c.l.b16 %v2130
      %v2167 = vunpack.c.l.b16 %v2131
      %v2168 = vunpack.c.l.b16 %v2132
      %v2169 = vunpack.c.l.b16 %v2133
      %v2170 = vunpack.c.l.b16 %v2134
      %v2171 = vunpack.c.l.b16 %v2135
      %v2172 = vunpack.c.l.b16 %v2136
      %v2173 = vunpack.c.l.b16 %v2137
      %v2174 = vunpack.c.l.b16 %v2138
      %v2175 = vpack.c.b16 %v2160, %v2159
      %v2176 = vpack.c.b16 %v2162, %v2161
      %v2177 = vpack.c.b16 %v2164, %v2163
      %v2178 = vpack.c.b16 %v2166, %v2165
      %v2179 = vpack.c.b16 %v2168, %v2167
      %v2180 = vpack.c.b16 %v2170, %v2169
      %v2181 = vpack.c.b16 %v2172, %v2171
      %v2182 = vpack.c.b16 %v2174, %v2173
      %2191 = vmatpush.bf16.msra.mxu0 %v2182
      %2192 = vmatpush.bf16.msra.mxu0 %v2181
      %2193 = vmatpush.bf16.msra.mxu0 %v2180
      %2194 = vmatpush.bf16.msra.mxu0 %v2179
      %2195 = vmatpush.bf16.msra.mxu0 %v2178
      %2196 = vmatpush.bf16.msra.mxu0 %v2177
      %2197 = vmatpush.bf16.msra.mxu0 %v2176
      %2198 = vmatpush.bf16.msra.mxu0 %v2175
      %2199 = vmatmul.bf16.gmra.mxu0 %v2121
      %v2200 = vpop.f32.mrf.mxu0
      %v2201 = vadd.f32 %v2141, %v2200
      %v2202 = vpop.f32.mrf.mxu0
      %2203 = vdwg.mxu0
      %s2204 = scalar_lea.vmem %s10, 256
      %v2205 = vld [vmem:[%s2204] sm:$0xf]
      %v2206 = vld [vmem:[%s2204 + $0x4] sm:$0xf]
      %v2207 = vld [vmem:[%s2204 + $0x8] sm:$0xf]
      %v2208 = vld [vmem:[%s2204 + $0xc] sm:$0xf]
      %v2209 = vld [vmem:[%s2204 + $0x10] sm:$0xf]
      %v2210 = vld [vmem:[%s2204 + $0x14] sm:$0xf]
      %v2211 = vld [vmem:[%s2204 + $0x18] sm:$0xf]
      %v2212 = vld [vmem:[%s2204 + $0x1c] sm:$0xf]
      %v2213 = vld [vmem:[%s2204 + $0x20] sm:$0xf]
      %v2214 = vld [vmem:[%s2204 + $0x24] sm:$0xf]
      %v2215 = vld [vmem:[%s2204 + $0x28] sm:$0xf]
      %v2216 = vld [vmem:[%s2204 + $0x2c] sm:$0xf]
      %v2217 = vld [vmem:[%s2204 + $0x30] sm:$0xf]
      %v2218 = vld [vmem:[%s2204 + $0x34] sm:$0xf]
      %v2219 = vld [vmem:[%s2204 + $0x38] sm:$0xf]
      %v2220 = vld [vmem:[%s2204 + $0x3c] sm:$0xf]
      %s2221 = scalar_lea.vmem %s11, 4
      %v2222 = vld [vmem:[%s2221] sm:$0x1]
      %v2224 = vperm.slane %v2222, 0
      %v2242 = vunpack.c.l.b16 %v2205
      %v2243 = vunpack.c.l.b16 %v2206
      %v2244 = vunpack.c.l.b16 %v2207
      %v2245 = vunpack.c.l.b16 %v2208
      %v2246 = vunpack.c.l.b16 %v2209
      %v2247 = vunpack.c.l.b16 %v2210
      %v2248 = vunpack.c.l.b16 %v2211
      %v2249 = vunpack.c.l.b16 %v2212
      %v2250 = vunpack.c.l.b16 %v2213
      %v2251 = vunpack.c.l.b16 %v2214
      %v2252 = vunpack.c.l.b16 %v2215
      %v2253 = vunpack.c.l.b16 %v2216
      %v2254 = vunpack.c.l.b16 %v2217
      %v2255 = vunpack.c.l.b16 %v2218
      %v2256 = vunpack.c.l.b16 %v2219
      %v2257 = vunpack.c.l.b16 %v2220
      %v2258 = vpack.c.b16 %v2243, %v2242
      %v2259 = vpack.c.b16 %v2245, %v2244
      %v2260 = vpack.c.b16 %v2247, %v2246
      %v2261 = vpack.c.b16 %v2249, %v2248
      %v2262 = vpack.c.b16 %v2251, %v2250
      %v2263 = vpack.c.b16 %v2253, %v2252
      %v2264 = vpack.c.b16 %v2255, %v2254
      %v2265 = vpack.c.b16 %v2257, %v2256
      %2274 = vmatpush.bf16.msra.mxu0 %v2265
      %2275 = vmatpush.bf16.msra.mxu0 %v2264
      %2276 = vmatpush.bf16.msra.mxu0 %v2263
      %2277 = vmatpush.bf16.msra.mxu0 %v2262
      %2278 = vmatpush.bf16.msra.mxu0 %v2261
      %2279 = vmatpush.bf16.msra.mxu0 %v2260
      %2280 = vmatpush.bf16.msra.mxu0 %v2259
      %2281 = vmatpush.bf16.msra.mxu0 %v2258
      %2282 = vmatmul.bf16.gmra.mxu0 %v2122
      %v2283 = vpop.f32.mrf.mxu0
      %v2284 = vadd.f32 %v2224, %v2283
      %v2285 = vpop.f32.mrf.mxu0
      %v2286 = vadd.f32 %v2224, %v2285
      %2287 = vdwg.mxu0
      %s2288 = scalar_lea.vmem %s10, 512
      %v2289 = vld [vmem:[%s2288] sm:$0xf]
      %v2290 = vld [vmem:[%s2288 + $0x4] sm:$0xf]
      %v2291 = vld [vmem:[%s2288 + $0x8] sm:$0xf]
      %v2292 = vld [vmem:[%s2288 + $0xc] sm:$0xf]
      %v2293 = vld [vmem:[%s2288 + $0x10] sm:$0xf]
      %v2294 = vld [vmem:[%s2288 + $0x14] sm:$0xf]
      %v2295 = vld [vmem:[%s2288 + $0x18] sm:$0xf]
      %v2296 = vld [vmem:[%s2288 + $0x1c] sm:$0xf]
      %v2297 = vld [vmem:[%s2288 + $0x20] sm:$0xf]
      %v2298 = vld [vmem:[%s2288 + $0x24] sm:$0xf]
      %v2299 = vld [vmem:[%s2288 + $0x28] sm:$0xf]
      %v2300 = vld [vmem:[%s2288 + $0x2c] sm:$0xf]
      %v2301 = vld [vmem:[%s2288 + $0x30] sm:$0xf]
      %v2302 = vld [vmem:[%s2288 + $0x34] sm:$0xf]
      %v2303 = vld [vmem:[%s2288 + $0x38] sm:$0xf]
      %v2304 = vld [vmem:[%s2288 + $0x3c] sm:$0xf]
      %s2305 = scalar_lea.vmem %s11, 8
      %v2306 = vld [vmem:[%s2305] sm:$0x1]
      %v2308 = vperm.slane %v2306, 0
      %v2326 = vunpack.c.l.b16 %v2289
      %v2327 = vunpack.c.l.b16 %v2290
      %v2328 = vunpack.c.l.b16 %v2291
      %v2329 = vunpack.c.l.b16 %v2292
      %v2330 = vunpack.c.l.b16 %v2293
      %v2331 = vunpack.c.l.b16 %v2294
      %v2332 = vunpack.c.l.b16 %v2295
      %v2333 = vunpack.c.l.b16 %v2296
      %v2334 = vunpack.c.l.b16 %v2297
      %v2335 = vunpack.c.l.b16 %v2298
      %v2336 = vunpack.c.l.b16 %v2299
      %v2337 = vunpack.c.l.b16 %v2300
      %v2338 = vunpack.c.l.b16 %v2301
      %v2339 = vunpack.c.l.b16 %v2302
      %v2340 = vunpack.c.l.b16 %v2303
      %v2341 = vunpack.c.l.b16 %v2304
      %v2342 = vpack.c.b16 %v2327, %v2326
      %v2343 = vpack.c.b16 %v2329, %v2328
      %v2344 = vpack.c.b16 %v2331, %v2330
      %v2345 = vpack.c.b16 %v2333, %v2332
      %v2346 = vpack.c.b16 %v2335, %v2334
      %v2347 = vpack.c.b16 %v2337, %v2336
      %v2348 = vpack.c.b16 %v2339, %v2338
      %v2349 = vpack.c.b16 %v2341, %v2340
      %2358 = vmatpush.bf16.msra.mxu0 %v2349
      %2359 = vmatpush.bf16.msra.mxu0 %v2348
      %2360 = vmatpush.bf16.msra.mxu0 %v2347
      %2361 = vmatpush.bf16.msra.mxu0 %v2346
      %2362 = vmatpush.bf16.msra.mxu0 %v2345
      %2363 = vmatpush.bf16.msra.mxu0 %v2344
      %2364 = vmatpush.bf16.msra.mxu0 %v2343
      %2365 = vmatpush.bf16.msra.mxu0 %v2342
      %2366 = vmatmul.bf16.gmra.mxu0 %v2122
      %v2367 = vpop.f32.mrf.mxu0
      %v2368 = vadd.f32 %v2308, %v2367
      %v2369 = vpop.f32.mrf.mxu0
      %v2370 = vadd.f32 %v2308, %v2369
      %2371 = vdwg.mxu0
      %v2372 = vpack.c.bf16 %v2201, %v2201
      %v2373 = vpack.c.bf16 %v2284, %v2284
      %v2374 = vpack.c.bf16 %v2286, %v2286
      %v2377 = vunpack.c.l.b16 %v2373
      %v2378 = vunpack.c.l.b16 %v2374
      %v2379 = vpack.c.b16 %v2378, %v2377
      %v2381 = vsel %vm936, %v2372, 0
      %v2384 = vsel %vm936, %v2379, 0
      %2386 = vmatpush.bf16.xpose.msra.mxu0 0
      %2387 = vmatpush.bf16.xpose.msra.mxu0 0
      %2388 = vmatpush.bf16.xpose.msra.mxu0 0
      %2389 = vmatpush.bf16.xpose.msra.mxu0 0
      %2390 = vmatpush.bf16.xpose.msra.mxu0 0
      %2391 = vmatpush.bf16.xpose.msra.mxu0 0
      %2392 = vmatpush.bf16.xpose.msra.mxu0 0
      %2393 = vmatpush.bf16.xpose.msra.mxu0 %v2384
      %2394 = vmatmul.bf16.gmra.mxu0 %v2381
      %v2395 = vpop.f32.mrf.mxu0
      %v2396 = vadd.f32 0.0, %v2395
      %v2397 = vpop.f32.mrf.mxu0
      %2398 = vdwg.mxu0
      %vm2399 = vcmask 130048
      %v2400 = vsel %vm2399, %v2396, -inf
      %2401 = vmax.xlane.f32.xlu0 %v2400
      %v2402 = vpop.xlane.xlu0 %2401
      %v2403 = vsub.f32 %v2396, %v2402
      %v2404 = vmul.f32 %v2403, 1.442695
      %v2405 = vpow.pop %v2404
      %v2406 = vsel %vm2399, %v2405, 0.0
      %2407 = vadd.xlane.f32.xlu0 %v2406
      %v2408 = vpop.xlane.xlu0 %2407
      %v2409 = vrcp.pop %v2408
      %v2410 = vmul.f32 %v2408, %v2409
      %v2411 = vsub.f32 1.0, %v2410
      %v2412 = vmul.f32 %v2409, %v2411
      %v2413 = vadd.f32 %v2409, %v2412
      %vm2414 = vweird.f32 %v2408
      %vm2415 = vweird.f32 %v2409
      %vm2416 = vmor %vm2414, %vm2415
      %v2417 = vsel %vm2416, %v2409, %v2413
      %v2418 = vand.u32 2147483647, %v2408
      %vm2419 = vcmp.eq.f32.partialorder %v2418, 8.507059e+37
      %v2420 = vand.u32 %v2408, 2147483648
      %v2421 = vor.u32 1.1754944e-38, %v2420
      %v2422 = vsel %vm2419, %v2421, %v2417
      %v2423 = vmul.f32 %v2405, %v2422
      %v2424 = vpack.c.bf16 %v2423, %v2423
      %v2425 = vpack.c.bf16 %v2368, %v2368
      %v2426 = vpack.c.bf16 %v2370, %v2370
      %v2429 = vunpack.c.l.b16 %v2425
      %v2430 = vunpack.c.l.b16 %v2426
      %v2431 = vpack.c.b16 %v2430, %v2429
      %v2434 = vsel %vm2399, %v2424, 0
      %2436 = vmatpush.bf16.msra.mxu0 0
      %2437 = vmatpush.bf16.msra.mxu0 0
      %2438 = vmatpush.bf16.msra.mxu0 0
      %2439 = vmatpush.bf16.msra.mxu0 0
      %2440 = vmatpush.bf16.msra.mxu0 0
      %2441 = vmatpush.bf16.msra.mxu0 0
      %2442 = vmatpush.bf16.msra.mxu0 0
      %2443 = vmatpush.bf16.msra.mxu0 %v2431
      %2444 = vmatmul.bf16.gmra.mxu0 %v2434
      %v2445 = vpop.f32.mrf.mxu0
      %v2446 = vadd.f32 0.0, %v2445
      %v2447 = vpop.f32.mrf.mxu0
      %2448 = vdwg.mxu0
      %v2449 = vpack.c.bf16 %v2446, %v2446
      %v2450 = vld [vmem:[%s12] sm:$0xf]
      %v2451 = vld [vmem:[%s12 + $0x4] sm:$0xf]
      %v2452 = vld [vmem:[%s12 + $0x8] sm:$0xf]
      %v2453 = vld [vmem:[%s12 + $0xc] sm:$0xf]
      %s2454 = scalar_lea.vmem %s10, 64
      %v2455 = vld [vmem:[%s2454] sm:$0xf]
      %v2456 = vld [vmem:[%s2454 + $0x4] sm:$0xf]
      %v2457 = vld [vmem:[%s2454 + $0x8] sm:$0xf]
      %v2458 = vld [vmem:[%s2454 + $0xc] sm:$0xf]
      %v2459 = vld [vmem:[%s2454 + $0x10] sm:$0xf]
      %v2460 = vld [vmem:[%s2454 + $0x14] sm:$0xf]
      %v2461 = vld [vmem:[%s2454 + $0x18] sm:$0xf]
      %v2462 = vld [vmem:[%s2454 + $0x1c] sm:$0xf]
      %v2463 = vld [vmem:[%s2454 + $0x20] sm:$0xf]
      %v2464 = vld [vmem:[%s2454 + $0x24] sm:$0xf]
      %v2465 = vld [vmem:[%s2454 + $0x28] sm:$0xf]
      %v2466 = vld [vmem:[%s2454 + $0x2c] sm:$0xf]
      %v2467 = vld [vmem:[%s2454 + $0x30] sm:$0xf]
      %v2468 = vld [vmem:[%s2454 + $0x34] sm:$0xf]
      %v2469 = vld [vmem:[%s2454 + $0x38] sm:$0xf]
      %v2470 = vld [vmem:[%s2454 + $0x3c] sm:$0xf]
      %s2471 = scalar_lea.vmem %s11, 1
      %v2472 = vld [vmem:[%s2471] sm:$0x1]
      %v2474 = vperm.slane %v2472, 0
      %v2492 = vunpack.c.l.b16 %v2455
      %v2493 = vunpack.c.l.b16 %v2456
      %v2494 = vunpack.c.l.b16 %v2457
      %v2495 = vunpack.c.l.b16 %v2458
      %v2496 = vunpack.c.l.b16 %v2459
      %v2497 = vunpack.c.l.b16 %v2460
      %v2498 = vunpack.c.l.b16 %v2461
      %v2499 = vunpack.c.l.b16 %v2462
      %v2500 = vunpack.c.l.b16 %v2463
      %v2501 = vunpack.c.l.b16 %v2464
      %v2502 = vunpack.c.l.b16 %v2465
      %v2503 = vunpack.c.l.b16 %v2466
      %v2504 = vunpack.c.l.b16 %v2467
      %v2505 = vunpack.c.l.b16 %v2468
      %v2506 = vunpack.c.l.b16 %v2469
      %v2507 = vunpack.c.l.b16 %v2470
      %v2508 = vpack.c.b16 %v2493, %v2492
      %v2509 = vpack.c.b16 %v2495, %v2494
      %v2510 = vpack.c.b16 %v2497, %v2496
      %v2511 = vpack.c.b16 %v2499, %v2498
      %v2512 = vpack.c.b16 %v2501, %v2500
      %v2513 = vpack.c.b16 %v2503, %v2502
      %v2514 = vpack.c.b16 %v2505, %v2504
      %v2515 = vpack.c.b16 %v2507, %v2506
      %2524 = vmatpush.bf16.msra.mxu0 %v2515
      %2525 = vmatpush.bf16.msra.mxu0 %v2514
      %2526 = vmatpush.bf16.msra.mxu0 %v2513
      %2527 = vmatpush.bf16.msra.mxu0 %v2512
      %2528 = vmatpush.bf16.msra.mxu0 %v2511
      %2529 = vmatpush.bf16.msra.mxu0 %v2510
      %2530 = vmatpush.bf16.msra.mxu0 %v2509
      %2531 = vmatpush.bf16.msra.mxu0 %v2508
      %2532 = vmatmul.bf16.gmra.mxu0 %v2121
      %v2533 = vpop.f32.mrf.mxu0
      %v2534 = vadd.f32 %v2474, %v2533
      %v2535 = vpop.f32.mrf.mxu0
      %2536 = vdwg.mxu0
      %s2537 = scalar_lea.vmem %s10, 320
      %v2538 = vld [vmem:[%s2537] sm:$0xf]
      %v2539 = vld [vmem:[%s2537 + $0x4] sm:$0xf]
      %v2540 = vld [vmem:[%s2537 + $0x8] sm:$0xf]
      %v2541 = vld [vmem:[%s2537 + $0xc] sm:$0xf]
      %v2542 = vld [vmem:[%s2537 + $0x10] sm:$0xf]
      %v2543 = vld [vmem:[%s2537 + $0x14] sm:$0xf]
      %v2544 = vld [vmem:[%s2537 + $0x18] sm:$0xf]
      %v2545 = vld [vmem:[%s2537 + $0x1c] sm:$0xf]
      %v2546 = vld [vmem:[%s2537 + $0x20] sm:$0xf]
      %v2547 = vld [vmem:[%s2537 + $0x24] sm:$0xf]
      %v2548 = vld [vmem:[%s2537 + $0x28] sm:$0xf]
      %v2549 = vld [vmem:[%s2537 + $0x2c] sm:$0xf]
      %v2550 = vld [vmem:[%s2537 + $0x30] sm:$0xf]
      %v2551 = vld [vmem:[%s2537 + $0x34] sm:$0xf]
      %v2552 = vld [vmem:[%s2537 + $0x38] sm:$0xf]
      %v2553 = vld [vmem:[%s2537 + $0x3c] sm:$0xf]
      %s2554 = scalar_lea.vmem %s11, 5
      %v2555 = vld [vmem:[%s2554] sm:$0x1]
      %v2557 = vperm.slane %v2555, 0
      %v2575 = vunpack.c.l.b16 %v2538
      %v2576 = vunpack.c.l.b16 %v2539
      %v2577 = vunpack.c.l.b16 %v2540
      %v2578 = vunpack.c.l.b16 %v2541
      %v2579 = vunpack.c.l.b16 %v2542
      %v2580 = vunpack.c.l.b16 %v2543
      %v2581 = vunpack.c.l.b16 %v2544
      %v2582 = vunpack.c.l.b16 %v2545
      %v2583 = vunpack.c.l.b16 %v2546
      %v2584 = vunpack.c.l.b16 %v2547
      %v2585 = vunpack.c.l.b16 %v2548
      %v2586 = vunpack.c.l.b16 %v2549
      %v2587 = vunpack.c.l.b16 %v2550
      %v2588 = vunpack.c.l.b16 %v2551
      %v2589 = vunpack.c.l.b16 %v2552
      %v2590 = vunpack.c.l.b16 %v2553
      %v2591 = vpack.c.b16 %v2576, %v2575
      %v2592 = vpack.c.b16 %v2578, %v2577
      %v2593 = vpack.c.b16 %v2580, %v2579
      %v2594 = vpack.c.b16 %v2582, %v2581
      %v2595 = vpack.c.b16 %v2584, %v2583
      %v2596 = vpack.c.b16 %v2586, %v2585
      %v2597 = vpack.c.b16 %v2588, %v2587
      %v2598 = vpack.c.b16 %v2590, %v2589
      %2607 = vmatpush.bf16.msra.mxu0 %v2598
      %2608 = vmatpush.bf16.msra.mxu0 %v2597
      %2609 = vmatpush.bf16.msra.mxu0 %v2596
      %2610 = vmatpush.bf16.msra.mxu0 %v2595
      %2611 = vmatpush.bf16.msra.mxu0 %v2594
      %2612 = vmatpush.bf16.msra.mxu0 %v2593
      %2613 = vmatpush.bf16.msra.mxu0 %v2592
      %2614 = vmatpush.bf16.msra.mxu0 %v2591
      %2615 = vmatmul.bf16.gmra.mxu0 %v2122
      %v2616 = vpop.f32.mrf.mxu0
      %v2617 = vadd.f32 %v2557, %v2616
      %v2618 = vpop.f32.mrf.mxu0
      %v2619 = vadd.f32 %v2557, %v2618
      %2620 = vdwg.mxu0
      %s2621 = scalar_lea.vmem %s10, 576
      %v2622 = vld [vmem:[%s2621] sm:$0xf]
      %v2623 = vld [vmem:[%s2621 + $0x4] sm:$0xf]
      %v2624 = vld [vmem:[%s2621 + $0x8] sm:$0xf]
      %v2625 = vld [vmem:[%s2621 + $0xc] sm:$0xf]
      %v2626 = vld [vmem:[%s2621 + $0x10] sm:$0xf]
      %v2627 = vld [vmem:[%s2621 + $0x14] sm:$0xf]
      %v2628 = vld [vmem:[%s2621 + $0x18] sm:$0xf]
      %v2629 = vld [vmem:[%s2621 + $0x1c] sm:$0xf]
      %v2630 = vld [vmem:[%s2621 + $0x20] sm:$0xf]
      %v2631 = vld [vmem:[%s2621 + $0x24] sm:$0xf]
      %v2632 = vld [vmem:[%s2621 + $0x28] sm:$0xf]
      %v2633 = vld [vmem:[%s2621 + $0x2c] sm:$0xf]
      %v2634 = vld [vmem:[%s2621 + $0x30] sm:$0xf]
      %v2635 = vld [vmem:[%s2621 + $0x34] sm:$0xf]
      %v2636 = vld [vmem:[%s2621 + $0x38] sm:$0xf]
      %v2637 = vld [vmem:[%s2621 + $0x3c] sm:$0xf]
      %s2638 = scalar_lea.vmem %s11, 9
      %v2639 = vld [vmem:[%s2638] sm:$0x1]
      %v2641 = vperm.slane %v2639, 0
      %v2659 = vunpack.c.l.b16 %v2622
      %v2660 = vunpack.c.l.b16 %v2623
      %v2661 = vunpack.c.l.b16 %v2624
      %v2662 = vunpack.c.l.b16 %v2625
      %v2663 = vunpack.c.l.b16 %v2626
      %v2664 = vunpack.c.l.b16 %v2627
      %v2665 = vunpack.c.l.b16 %v2628
      %v2666 = vunpack.c.l.b16 %v2629
      %v2667 = vunpack.c.l.b16 %v2630
      %v2668 = vunpack.c.l.b16 %v2631
      %v2669 = vunpack.c.l.b16 %v2632
      %v2670 = vunpack.c.l.b16 %v2633
      %v2671 = vunpack.c.l.b16 %v2634
      %v2672 = vunpack.c.l.b16 %v2635
      %v2673 = vunpack.c.l.b16 %v2636
      %v2674 = vunpack.c.l.b16 %v2637
      %v2675 = vpack.c.b16 %v2660, %v2659
      %v2676 = vpack.c.b16 %v2662, %v2661
      %v2677 = vpack.c.b16 %v2664, %v2663
      %v2678 = vpack.c.b16 %v2666, %v2665
      %v2679 = vpack.c.b16 %v2668, %v2667
      %v2680 = vpack.c.b16 %v2670, %v2669
      %v2681 = vpack.c.b16 %v2672, %v2671
      %v2682 = vpack.c.b16 %v2674, %v2673
      %2691 = vmatpush.bf16.msra.mxu0 %v2682
      %2692 = vmatpush.bf16.msra.mxu0 %v2681
      %2693 = vmatpush.bf16.msra.mxu0 %v2680
      %2694 = vmatpush.bf16.msra.mxu0 %v2679
      %2695 = vmatpush.bf16.msra.mxu0 %v2678
      %2696 = vmatpush.bf16.msra.mxu0 %v2677
      %2697 = vmatpush.bf16.msra.mxu0 %v2676
      %2698 = vmatpush.bf16.msra.mxu0 %v2675
      %2699 = vmatmul.bf16.gmra.mxu0 %v2122
      %v2700 = vpop.f32.mrf.mxu0
      %v2701 = vadd.f32 %v2641, %v2700
      %v2702 = vpop.f32.mrf.mxu0
      %v2703 = vadd.f32 %v2641, %v2702
      %2704 = vdwg.mxu0
      %v2705 = vpack.c.bf16 %v2534, %v2534
      %v2706 = vpack.c.bf16 %v2617, %v2617
      %v2707 = vpack.c.bf16 %v2619, %v2619
      %v2710 = vunpack.c.l.b16 %v2706
      %v2711 = vunpack.c.l.b16 %v2707
      %v2712 = vpack.c.b16 %v2711, %v2710
      %v2714 = vsel %vm936, %v2705, 0
      %v2717 = vsel %vm936, %v2712, 0
      %2719 = vmatpush.bf16.xpose.msra.mxu0 0
      %2720 = vmatpush.bf16.xpose.msra.mxu0 0
      %2721 = vmatpush.bf16.xpose.msra.mxu0 0
      %2722 = vmatpush.bf16.xpose.msra.mxu0 0
      %2723 = vmatpush.bf16.xpose.msra.mxu0 0
      %2724 = vmatpush.bf16.xpose.msra.mxu0 0
      %2725 = vmatpush.bf16.xpose.msra.mxu0 0
      %2726 = vmatpush.bf16.xpose.msra.mxu0 %v2717
      %2727 = vmatmul.bf16.gmra.mxu0 %v2714
      %v2728 = vpop.f32.mrf.mxu0
      %v2729 = vadd.f32 0.0, %v2728
      %v2730 = vpop.f32.mrf.mxu0
      %2731 = vdwg.mxu0
      %v2732 = vsel %vm2399, %v2729, -inf
      %2733 = vmax.xlane.f32.xlu0 %v2732
      %v2734 = vpop.xlane.xlu0 %2733
      %v2735 = vsub.f32 %v2729, %v2734
      %v2736 = vmul.f32 %v2735, 1.442695
      %v2737 = vpow.pop %v2736
      %v2738 = vsel %vm2399, %v2737, 0.0
      %2739 = vadd.xlane.f32.xlu0 %v2738
      %v2740 = vpop.xlane.xlu0 %2739
      %v2741 = vrcp.pop %v2740
      %v2742 = vmul.f32 %v2740, %v2741
      %v2743 = vsub.f32 1.0, %v2742
      %v2744 = vmul.f32 %v2741, %v2743
      %v2745 = vadd.f32 %v2741, %v2744
      %vm2746 = vweird.f32 %v2740
      %vm2747 = vweird.f32 %v2741
      %vm2748 = vmor %vm2746, %vm2747
      %v2749 = vsel %vm2748, %v2741, %v2745
      %v2750 = vand.u32 2147483647, %v2740
      %vm2751 = vcmp.eq.f32.partialorder %v2750, 8.507059e+37
      %v2752 = vand.u32 %v2740, 2147483648
      %v2753 = vor.u32 1.1754944e-38, %v2752
      %v2754 = vsel %vm2751, %v2753, %v2749
      %v2755 = vmul.f32 %v2737, %v2754
      %v2756 = vpack.c.bf16 %v2755, %v2755
      %v2757 = vpack.c.bf16 %v2701, %v2701
      %v2758 = vpack.c.bf16 %v2703, %v2703
      %v2761 = vunpack.c.l.b16 %v2757
      %v2762 = vunpack.c.l.b16 %v2758
      %v2763 = vpack.c.b16 %v2762, %v2761
      %v2766 = vsel %vm2399, %v2756, 0
      %2768 = vmatpush.bf16.msra.mxu0 0
      %2769 = vmatpush.bf16.msra.mxu0 0
      %2770 = vmatpush.bf16.msra.mxu0 0
      %2771 = vmatpush.bf16.msra.mxu0 0
      %2772 = vmatpush.bf16.msra.mxu0 0
      %2773 = vmatpush.bf16.msra.mxu0 0
      %2774 = vmatpush.bf16.msra.mxu0 0
      %2775 = vmatpush.bf16.msra.mxu0 %v2763
      %2776 = vmatmul.bf16.gmra.mxu0 %v2766
      %v2777 = vpop.f32.mrf.mxu0
      %v2778 = vadd.f32 0.0, %v2777
      %v2779 = vpop.f32.mrf.mxu0
      %2780 = vdwg.mxu0
      %v2781 = vpack.c.bf16 %v2778, %v2778
      %s2782 = scalar_lea.vmem %s12, 16
      %v2783 = vld [vmem:[%s2782] sm:$0xf]
      %v2784 = vld [vmem:[%s2782 + $0x4] sm:$0xf]
      %v2785 = vld [vmem:[%s2782 + $0x8] sm:$0xf]
      %v2786 = vld [vmem:[%s2782 + $0xc] sm:$0xf]
      %v2791 = vunpack.c.l.b16 %v2783
      %v2792 = vunpack.c.l.b16 %v2784
      %v2793 = vunpack.c.l.b16 %v2785
      %v2794 = vunpack.c.l.b16 %v2786
      %v2795 = vpack.c.b16 %v2792, %v2791
      %v2796 = vpack.c.b16 %v2794, %v2793
      %v2800 = vsel %vm936, %v2781, 0
      %2802 = vmatpush.bf16.msra.mxu0 0
      %2803 = vmatpush.bf16.msra.mxu0 0
      %2804 = vmatpush.bf16.msra.mxu0 0
      %2805 = vmatpush.bf16.msra.mxu0 0
      %2806 = vmatpush.bf16.msra.mxu0 0
      %2807 = vmatpush.bf16.msra.mxu0 0
      %2808 = vmatpush.bf16.msra.mxu0 %v2796
      %2809 = vmatpush.bf16.msra.mxu0 %v2795
      %2810 = vmatmul.bf16.gmra.mxu0 %v2800
      %v2811 = vpop.f32.mrf.mxu0
      %v2812 = vadd.f32 0.0, %v2811
      %v2813 = vpop.f32.mrf.mxu0
      %2814 = vdwg.mxu0
      %v2819 = vunpack.c.l.b16 %v2450
      %v2820 = vunpack.c.l.b16 %v2451
      %v2821 = vunpack.c.l.b16 %v2452
      %v2822 = vunpack.c.l.b16 %v2453
      %v2823 = vpack.c.b16 %v2820, %v2819
      %v2824 = vpack.c.b16 %v2822, %v2821
      %v2828 = vsel %vm936, %v2449, 0
      %2830 = vmatpush.bf16.msra.mxu0 0
      %2831 = vmatpush.bf16.msra.mxu0 0
      %2832 = vmatpush.bf16.msra.mxu0 0
      %2833 = vmatpush.bf16.msra.mxu0 0
      %2834 = vmatpush.bf16.msra.mxu0 0
      %2835 = vmatpush.bf16.msra.mxu0 0
      %2836 = vmatpush.bf16.msra.mxu0 %v2824
      %2837 = vmatpush.bf16.msra.mxu0 %v2823
      %2838 = vmatmul.bf16.gmra.mxu0 %v2828
      %v2839 = vpop.f32.mrf.mxu0
      %v2840 = vadd.f32 %v2812, %v2839
      %v2841 = vpop.f32.mrf.mxu0
      %2842 = vdwg.mxu0
      %s2843 = scalar_lea.vmem %s10, 128
      %v2844 = vld [vmem:[%s2843] sm:$0xf]
      %v2845 = vld [vmem:[%s2843 + $0x4] sm:$0xf]
      %v2846 = vld [vmem:[%s2843 + $0x8] sm:$0xf]
      %v2847 = vld [vmem:[%s2843 + $0xc] sm:$0xf]
      %v2848 = vld [vmem:[%s2843 + $0x10] sm:$0xf]
      %v2849 = vld [vmem:[%s2843 + $0x14] sm:$0xf]
      %v2850 = vld [vmem:[%s2843 + $0x18] sm:$0xf]
      %v2851 = vld [vmem:[%s2843 + $0x1c] sm:$0xf]
      %v2852 = vld [vmem:[%s2843 + $0x20] sm:$0xf]
      %v2853 = vld [vmem:[%s2843 + $0x24] sm:$0xf]
      %v2854 = vld [vmem:[%s2843 + $0x28] sm:$0xf]
      %v2855 = vld [vmem:[%s2843 + $0x2c] sm:$0xf]
      %v2856 = vld [vmem:[%s2843 + $0x30] sm:$0xf]
      %v2857 = vld [vmem:[%s2843 + $0x34] sm:$0xf]
      %v2858 = vld [vmem:[%s2843 + $0x38] sm:$0xf]
      %v2859 = vld [vmem:[%s2843 + $0x3c] sm:$0xf]
      %s2860 = scalar_lea.vmem %s11, 2
      %v2861 = vld [vmem:[%s2860] sm:$0x1]
      %v2863 = vperm.slane %v2861, 0
      %v2881 = vunpack.c.l.b16 %v2844
      %v2882 = vunpack.c.l.b16 %v2845
      %v2883 = vunpack.c.l.b16 %v2846
      %v2884 = vunpack.c.l.b16 %v2847
      %v2885 = vunpack.c.l.b16 %v2848
      %v2886 = vunpack.c.l.b16 %v2849
      %v2887 = vunpack.c.l.b16 %v2850
      %v2888 = vunpack.c.l.b16 %v2851
      %v2889 = vunpack.c.l.b16 %v2852
      %v2890 = vunpack.c.l.b16 %v2853
      %v2891 = vunpack.c.l.b16 %v2854
      %v2892 = vunpack.c.l.b16 %v2855
      %v2893 = vunpack.c.l.b16 %v2856
      %v2894 = vunpack.c.l.b16 %v2857
      %v2895 = vunpack.c.l.b16 %v2858
      %v2896 = vunpack.c.l.b16 %v2859
      %v2897 = vpack.c.b16 %v2882, %v2881
      %v2898 = vpack.c.b16 %v2884, %v2883
      %v2899 = vpack.c.b16 %v2886, %v2885
      %v2900 = vpack.c.b16 %v2888, %v2887
      %v2901 = vpack.c.b16 %v2890, %v2889
      %v2902 = vpack.c.b16 %v2892, %v2891
      %v2903 = vpack.c.b16 %v2894, %v2893
      %v2904 = vpack.c.b16 %v2896, %v2895
      %2913 = vmatpush.bf16.msra.mxu0 %v2904
      %2914 = vmatpush.bf16.msra.mxu0 %v2903
      %2915 = vmatpush.bf16.msra.mxu0 %v2902
      %2916 = vmatpush.bf16.msra.mxu0 %v2901
      %2917 = vmatpush.bf16.msra.mxu0 %v2900
      %2918 = vmatpush.bf16.msra.mxu0 %v2899
      %2919 = vmatpush.bf16.msra.mxu0 %v2898
      %2920 = vmatpush.bf16.msra.mxu0 %v2897
      %2921 = vmatmul.bf16.gmra.mxu0 %v2121
      %v2922 = vpop.f32.mrf.mxu0
      %v2923 = vadd.f32 %v2863, %v2922
      %v2924 = vpop.f32.mrf.mxu0
      %2925 = vdwg.mxu0
      %s2926 = scalar_lea.vmem %s10, 384
      %v2927 = vld [vmem:[%s2926] sm:$0xf]
      %v2928 = vld [vmem:[%s2926 + $0x4] sm:$0xf]
      %v2929 = vld [vmem:[%s2926 + $0x8] sm:$0xf]
      %v2930 = vld [vmem:[%s2926 + $0xc] sm:$0xf]
      %v2931 = vld [vmem:[%s2926 + $0x10] sm:$0xf]
      %v2932 = vld [vmem:[%s2926 + $0x14] sm:$0xf]
      %v2933 = vld [vmem:[%s2926 + $0x18] sm:$0xf]
      %v2934 = vld [vmem:[%s2926 + $0x1c] sm:$0xf]
      %v2935 = vld [vmem:[%s2926 + $0x20] sm:$0xf]
      %v2936 = vld [vmem:[%s2926 + $0x24] sm:$0xf]
      %v2937 = vld [vmem:[%s2926 + $0x28] sm:$0xf]
      %v2938 = vld [vmem:[%s2926 + $0x2c] sm:$0xf]
      %v2939 = vld [vmem:[%s2926 + $0x30] sm:$0xf]
      %v2940 = vld [vmem:[%s2926 + $0x34] sm:$0xf]
      %v2941 = vld [vmem:[%s2926 + $0x38] sm:$0xf]
      %v2942 = vld [vmem:[%s2926 + $0x3c] sm:$0xf]
      %s2943 = scalar_lea.vmem %s11, 6
      %v2944 = vld [vmem:[%s2943] sm:$0x1]
      %v2946 = vperm.slane %v2944, 0
      %v2964 = vunpack.c.l.b16 %v2927
      %v2965 = vunpack.c.l.b16 %v2928
      %v2966 = vunpack.c.l.b16 %v2929
      %v2967 = vunpack.c.l.b16 %v2930
      %v2968 = vunpack.c.l.b16 %v2931
      %v2969 = vunpack.c.l.b16 %v2932
      %v2970 = vunpack.c.l.b16 %v2933
      %v2971 = vunpack.c.l.b16 %v2934
      %v2972 = vunpack.c.l.b16 %v2935
      %v2973 = vunpack.c.l.b16 %v2936
      %v2974 = vunpack.c.l.b16 %v2937
      %v2975 = vunpack.c.l.b16 %v2938
      %v2976 = vunpack.c.l.b16 %v2939
      %v2977 = vunpack.c.l.b16 %v2940
      %v2978 = vunpack.c.l.b16 %v2941
      %v2979 = vunpack.c.l.b16 %v2942
      %v2980 = vpack.c.b16 %v2965, %v2964
      %v2981 = vpack.c.b16 %v2967, %v2966
      %v2982 = vpack.c.b16 %v2969, %v2968
      %v2983 = vpack.c.b16 %v2971, %v2970
      %v2984 = vpack.c.b16 %v2973, %v2972
      %v2985 = vpack.c.b16 %v2975, %v2974
      %v2986 = vpack.c.b16 %v2977, %v2976
      %v2987 = vpack.c.b16 %v2979, %v2978
      %2996 = vmatpush.bf16.msra.mxu0 %v2987
      %2997 = vmatpush.bf16.msra.mxu0 %v2986
      %2998 = vmatpush.bf16.msra.mxu0 %v2985
      %2999 = vmatpush.bf16.msra.mxu0 %v2984
      %3000 = vmatpush.bf16.msra.mxu0 %v2983
      %3001 = vmatpush.bf16.msra.mxu0 %v2982
      %3002 = vmatpush.bf16.msra.mxu0 %v2981
      %3003 = vmatpush.bf16.msra.mxu0 %v2980
      %3004 = vmatmul.bf16.gmra.mxu0 %v2122
      %v3005 = vpop.f32.mrf.mxu0
      %v3006 = vadd.f32 %v2946, %v3005
      %v3007 = vpop.f32.mrf.mxu0
      %v3008 = vadd.f32 %v2946, %v3007
      %3009 = vdwg.mxu0
      %s3010 = scalar_lea.vmem %s10, 640
      %v3011 = vld [vmem:[%s3010] sm:$0xf]
      %v3012 = vld [vmem:[%s3010 + $0x4] sm:$0xf]
      %v3013 = vld [vmem:[%s3010 + $0x8] sm:$0xf]
      %v3014 = vld [vmem:[%s3010 + $0xc] sm:$0xf]
      %v3015 = vld [vmem:[%s3010 + $0x10] sm:$0xf]
      %v3016 = vld [vmem:[%s3010 + $0x14] sm:$0xf]
      %v3017 = vld [vmem:[%s3010 + $0x18] sm:$0xf]
      %v3018 = vld [vmem:[%s3010 + $0x1c] sm:$0xf]
      %v3019 = vld [vmem:[%s3010 + $0x20] sm:$0xf]
      %v3020 = vld [vmem:[%s3010 + $0x24] sm:$0xf]
      %v3021 = vld [vmem:[%s3010 + $0x28] sm:$0xf]
      %v3022 = vld [vmem:[%s3010 + $0x2c] sm:$0xf]
      %v3023 = vld [vmem:[%s3010 + $0x30] sm:$0xf]
      %v3024 = vld [vmem:[%s3010 + $0x34] sm:$0xf]
      %v3025 = vld [vmem:[%s3010 + $0x38] sm:$0xf]
      %v3026 = vld [vmem:[%s3010 + $0x3c] sm:$0xf]
      %s3027 = scalar_lea.vmem %s11, 10
      %v3028 = vld [vmem:[%s3027] sm:$0x1]
      %v3030 = vperm.slane %v3028, 0
      %v3048 = vunpack.c.l.b16 %v3011
      %v3049 = vunpack.c.l.b16 %v3012
      %v3050 = vunpack.c.l.b16 %v3013
      %v3051 = vunpack.c.l.b16 %v3014
      %v3052 = vunpack.c.l.b16 %v3015
      %v3053 = vunpack.c.l.b16 %v3016
      %v3054 = vunpack.c.l.b16 %v3017
      %v3055 = vunpack.c.l.b16 %v3018
      %v3056 = vunpack.c.l.b16 %v3019
      %v3057 = vunpack.c.l.b16 %v3020
      %v3058 = vunpack.c.l.b16 %v3021
      %v3059 = vunpack.c.l.b16 %v3022
      %v3060 = vunpack.c.l.b16 %v3023
      %v3061 = vunpack.c.l.b16 %v3024
      %v3062 = vunpack.c.l.b16 %v3025
      %v3063 = vunpack.c.l.b16 %v3026
      %v3064 = vpack.c.b16 %v3049, %v3048
      %v3065 = vpack.c.b16 %v3051, %v3050
      %v3066 = vpack.c.b16 %v3053, %v3052
      %v3067 = vpack.c.b16 %v3055, %v3054
      %v3068 = vpack.c.b16 %v3057, %v3056
      %v3069 = vpack.c.b16 %v3059, %v3058
      %v3070 = vpack.c.b16 %v3061, %v3060
      %v3071 = vpack.c.b16 %v3063, %v3062
      %3080 = vmatpush.bf16.msra.mxu0 %v3071
      %3081 = vmatpush.bf16.msra.mxu0 %v3070
      %3082 = vmatpush.bf16.msra.mxu0 %v3069
      %3083 = vmatpush.bf16.msra.mxu0 %v3068
      %3084 = vmatpush.bf16.msra.mxu0 %v3067
      %3085 = vmatpush.bf16.msra.mxu0 %v3066
      %3086 = vmatpush.bf16.msra.mxu0 %v3065
      %3087 = vmatpush.bf16.msra.mxu0 %v3064
      %3088 = vmatmul.bf16.gmra.mxu0 %v2122
      %v3089 = vpop.f32.mrf.mxu0
      %v3090 = vadd.f32 %v3030, %v3089
      %v3091 = vpop.f32.mrf.mxu0
      %v3092 = vadd.f32 %v3030, %v3091
      %3093 = vdwg.mxu0
      %v3094 = vpack.c.bf16 %v2923, %v2923
      %v3095 = vpack.c.bf16 %v3006, %v3006
      %v3096 = vpack.c.bf16 %v3008, %v3008
      %v3099 = vunpack.c.l.b16 %v3095
      %v3100 = vunpack.c.l.b16 %v3096
      %v3101 = vpack.c.b16 %v3100, %v3099
      %v3103 = vsel %vm936, %v3094, 0
      %v3106 = vsel %vm936, %v3101, 0
      %3108 = vmatpush.bf16.xpose.msra.mxu0 0
      %3109 = vmatpush.bf16.xpose.msra.mxu0 0
      %3110 = vmatpush.bf16.xpose.msra.mxu0 0
      %3111 = vmatpush.bf16.xpose.msra.mxu0 0
      %3112 = vmatpush.bf16.xpose.msra.mxu0 0
      %3113 = vmatpush.bf16.xpose.msra.mxu0 0
      %3114 = vmatpush.bf16.xpose.msra.mxu0 0
      %3115 = vmatpush.bf16.xpose.msra.mxu0 %v3106
      %3116 = vmatmul.bf16.gmra.mxu0 %v3103
      %v3117 = vpop.f32.mrf.mxu0
      %v3118 = vadd.f32 0.0, %v3117
      %v3119 = vpop.f32.mrf.mxu0
      %3120 = vdwg.mxu0
      %v3121 = vsel %vm2399, %v3118, -inf
      %3122 = vmax.xlane.f32.xlu0 %v3121
      %v3123 = vpop.xlane.xlu0 %3122
      %v3124 = vsub.f32 %v3118, %v3123
      %v3125 = vmul.f32 %v3124, 1.442695
      %v3126 = vpow.pop %v3125
      %v3127 = vsel %vm2399, %v3126, 0.0
      %3128 = vadd.xlane.f32.xlu0 %v3127
      %v3129 = vpop.xlane.xlu0 %3128
      %v3130 = vrcp.pop %v3129
      %v3131 = vmul.f32 %v3129, %v3130
      %v3132 = vsub.f32 1.0, %v3131
      %v3133 = vmul.f32 %v3130, %v3132
      %v3134 = vadd.f32 %v3130, %v3133
      %vm3135 = vweird.f32 %v3129
      %vm3136 = vweird.f32 %v3130
      %vm3137 = vmor %vm3135, %vm3136
      %v3138 = vsel %vm3137, %v3130, %v3134
      %v3139 = vand.u32 2147483647, %v3129
      %vm3140 = vcmp.eq.f32.partialorder %v3139, 8.507059e+37
      %v3141 = vand.u32 %v3129, 2147483648
      %v3142 = vor.u32 1.1754944e-38, %v3141
      %v3143 = vsel %vm3140, %v3142, %v3138
      %v3144 = vmul.f32 %v3126, %v3143
      %v3145 = vpack.c.bf16 %v3144, %v3144
      %v3146 = vpack.c.bf16 %v3090, %v3090
      %v3147 = vpack.c.bf16 %v3092, %v3092
      %v3150 = vunpack.c.l.b16 %v3146
      %v3151 = vunpack.c.l.b16 %v3147
      %v3152 = vpack.c.b16 %v3151, %v3150
      %v3155 = vsel %vm2399, %v3145, 0
      %3157 = vmatpush.bf16.msra.mxu0 0
      %3158 = vmatpush.bf16.msra.mxu0 0
      %3159 = vmatpush.bf16.msra.mxu0 0
      %3160 = vmatpush.bf16.msra.mxu0 0
      %3161 = vmatpush.bf16.msra.mxu0 0
      %3162 = vmatpush.bf16.msra.mxu0 0
      %3163 = vmatpush.bf16.msra.mxu0 0
      %3164 = vmatpush.bf16.msra.mxu0 %v3152
      %3165 = vmatmul.bf16.gmra.mxu0 %v3155
      %v3166 = vpop.f32.mrf.mxu0
      %v3167 = vadd.f32 0.0, %v3166
      %v3168 = vpop.f32.mrf.mxu0
      %3169 = vdwg.mxu0
      %v3170 = vpack.c.bf16 %v3167, %v3167
      %s3171 = scalar_lea.vmem %s12, 32
      %v3172 = vld [vmem:[%s3171] sm:$0xf]
      %v3173 = vld [vmem:[%s3171 + $0x4] sm:$0xf]
      %v3174 = vld [vmem:[%s3171 + $0x8] sm:$0xf]
      %v3175 = vld [vmem:[%s3171 + $0xc] sm:$0xf]
      %v3180 = vunpack.c.l.b16 %v3172
      %v3181 = vunpack.c.l.b16 %v3173
      %v3182 = vunpack.c.l.b16 %v3174
      %v3183 = vunpack.c.l.b16 %v3175
      %v3184 = vpack.c.b16 %v3181, %v3180
      %v3185 = vpack.c.b16 %v3183, %v3182
      %v3189 = vsel %vm936, %v3170, 0
      %3191 = vmatpush.bf16.msra.mxu0 0
      %3192 = vmatpush.bf16.msra.mxu0 0
      %3193 = vmatpush.bf16.msra.mxu0 0
      %3194 = vmatpush.bf16.msra.mxu0 0
      %3195 = vmatpush.bf16.msra.mxu0 0
      %3196 = vmatpush.bf16.msra.mxu0 0
      %3197 = vmatpush.bf16.msra.mxu0 %v3185
      %3198 = vmatpush.bf16.msra.mxu0 %v3184
      %3199 = vmatmul.bf16.gmra.mxu0 %v3189
      %v3200 = vpop.f32.mrf.mxu0
      %v3201 = vadd.f32 0.0, %v3200
      %v3202 = vpop.f32.mrf.mxu0
      %3203 = vdwg.mxu0
      %v3204 = vadd.f32 %v2840, %v3201
      %s3205 = scalar_lea.vmem %s10, 192
      %v3206 = vld [vmem:[%s3205] sm:$0xf]
      %v3207 = vld [vmem:[%s3205 + $0x4] sm:$0xf]
      %v3208 = vld [vmem:[%s3205 + $0x8] sm:$0xf]
      %v3209 = vld [vmem:[%s3205 + $0xc] sm:$0xf]
      %v3210 = vld [vmem:[%s3205 + $0x10] sm:$0xf]
      %v3211 = vld [vmem:[%s3205 + $0x14] sm:$0xf]
      %v3212 = vld [vmem:[%s3205 + $0x18] sm:$0xf]
      %v3213 = vld [vmem:[%s3205 + $0x1c] sm:$0xf]
      %v3214 = vld [vmem:[%s3205 + $0x20] sm:$0xf]
      %v3215 = vld [vmem:[%s3205 + $0x24] sm:$0xf]
      %v3216 = vld [vmem:[%s3205 + $0x28] sm:$0xf]
      %v3217 = vld [vmem:[%s3205 + $0x2c] sm:$0xf]
      %v3218 = vld [vmem:[%s3205 + $0x30] sm:$0xf]
      %v3219 = vld [vmem:[%s3205 + $0x34] sm:$0xf]
      %v3220 = vld [vmem:[%s3205 + $0x38] sm:$0xf]
      %v3221 = vld [vmem:[%s3205 + $0x3c] sm:$0xf]
      %s3222 = scalar_lea.vmem %s11, 3
      %v3223 = vld [vmem:[%s3222] sm:$0x1]
      %v3225 = vperm.slane %v3223, 0
      %v3243 = vunpack.c.l.b16 %v3206
      %v3244 = vunpack.c.l.b16 %v3207
      %v3245 = vunpack.c.l.b16 %v3208
      %v3246 = vunpack.c.l.b16 %v3209
      %v3247 = vunpack.c.l.b16 %v3210
      %v3248 = vunpack.c.l.b16 %v3211
      %v3249 = vunpack.c.l.b16 %v3212
      %v3250 = vunpack.c.l.b16 %v3213
      %v3251 = vunpack.c.l.b16 %v3214
      %v3252 = vunpack.c.l.b16 %v3215
      %v3253 = vunpack.c.l.b16 %v3216
      %v3254 = vunpack.c.l.b16 %v3217
      %v3255 = vunpack.c.l.b16 %v3218
      %v3256 = vunpack.c.l.b16 %v3219
      %v3257 = vunpack.c.l.b16 %v3220
      %v3258 = vunpack.c.l.b16 %v3221
      %v3259 = vpack.c.b16 %v3244, %v3243
      %v3260 = vpack.c.b16 %v3246, %v3245
      %v3261 = vpack.c.b16 %v3248, %v3247
      %v3262 = vpack.c.b16 %v3250, %v3249
      %v3263 = vpack.c.b16 %v3252, %v3251
      %v3264 = vpack.c.b16 %v3254, %v3253
      %v3265 = vpack.c.b16 %v3256, %v3255
      %v3266 = vpack.c.b16 %v3258, %v3257
      %3275 = vmatpush.bf16.msra.mxu0 %v3266
      %3276 = vmatpush.bf16.msra.mxu0 %v3265
      %3277 = vmatpush.bf16.msra.mxu0 %v3264
      %3278 = vmatpush.bf16.msra.mxu0 %v3263
      %3279 = vmatpush.bf16.msra.mxu0 %v3262
      %3280 = vmatpush.bf16.msra.mxu0 %v3261
      %3281 = vmatpush.bf16.msra.mxu0 %v3260
      %3282 = vmatpush.bf16.msra.mxu0 %v3259
      %3283 = vmatmul.bf16.gmra.mxu0 %v2121
      %v3284 = vpop.f32.mrf.mxu0
      %v3285 = vadd.f32 %v3225, %v3284
      %v3286 = vpop.f32.mrf.mxu0
      %3287 = vdwg.mxu0
      %s3288 = scalar_lea.vmem %s10, 448
      %v3289 = vld [vmem:[%s3288] sm:$0xf]
      %v3290 = vld [vmem:[%s3288 + $0x4] sm:$0xf]
      %v3291 = vld [vmem:[%s3288 + $0x8] sm:$0xf]
      %v3292 = vld [vmem:[%s3288 + $0xc] sm:$0xf]
      %v3293 = vld [vmem:[%s3288 + $0x10] sm:$0xf]
      %v3294 = vld [vmem:[%s3288 + $0x14] sm:$0xf]
      %v3295 = vld [vmem:[%s3288 + $0x18] sm:$0xf]
      %v3296 = vld [vmem:[%s3288 + $0x1c] sm:$0xf]
      %v3297 = vld [vmem:[%s3288 + $0x20] sm:$0xf]
      %v3298 = vld [vmem:[%s3288 + $0x24] sm:$0xf]
      %v3299 = vld [vmem:[%s3288 + $0x28] sm:$0xf]
      %v3300 = vld [vmem:[%s3288 + $0x2c] sm:$0xf]
      %v3301 = vld [vmem:[%s3288 + $0x30] sm:$0xf]
      %v3302 = vld [vmem:[%s3288 + $0x34] sm:$0xf]
      %v3303 = vld [vmem:[%s3288 + $0x38] sm:$0xf]
      %v3304 = vld [vmem:[%s3288 + $0x3c] sm:$0xf]
      %s3305 = scalar_lea.vmem %s11, 7
      %v3306 = vld [vmem:[%s3305] sm:$0x1]
      %v3308 = vperm.slane %v3306, 0
      %v3326 = vunpack.c.l.b16 %v3289
      %v3327 = vunpack.c.l.b16 %v3290
      %v3328 = vunpack.c.l.b16 %v3291
      %v3329 = vunpack.c.l.b16 %v3292
      %v3330 = vunpack.c.l.b16 %v3293
      %v3331 = vunpack.c.l.b16 %v3294
      %v3332 = vunpack.c.l.b16 %v3295
      %v3333 = vunpack.c.l.b16 %v3296
      %v3334 = vunpack.c.l.b16 %v3297
      %v3335 = vunpack.c.l.b16 %v3298
      %v3336 = vunpack.c.l.b16 %v3299
      %v3337 = vunpack.c.l.b16 %v3300
      %v3338 = vunpack.c.l.b16 %v3301
      %v3339 = vunpack.c.l.b16 %v3302
      %v3340 = vunpack.c.l.b16 %v3303
      %v3341 = vunpack.c.l.b16 %v3304
      %v3342 = vpack.c.b16 %v3327, %v3326
      %v3343 = vpack.c.b16 %v3329, %v3328
      %v3344 = vpack.c.b16 %v3331, %v3330
      %v3345 = vpack.c.b16 %v3333, %v3332
      %v3346 = vpack.c.b16 %v3335, %v3334
      %v3347 = vpack.c.b16 %v3337, %v3336
      %v3348 = vpack.c.b16 %v3339, %v3338
      %v3349 = vpack.c.b16 %v3341, %v3340
      %3358 = vmatpush.bf16.msra.mxu0 %v3349
      %3359 = vmatpush.bf16.msra.mxu0 %v3348
      %3360 = vmatpush.bf16.msra.mxu0 %v3347
      %3361 = vmatpush.bf16.msra.mxu0 %v3346
      %3362 = vmatpush.bf16.msra.mxu0 %v3345
      %3363 = vmatpush.bf16.msra.mxu0 %v3344
      %3364 = vmatpush.bf16.msra.mxu0 %v3343
      %3365 = vmatpush.bf16.msra.mxu0 %v3342
      %3366 = vmatmul.bf16.gmra.mxu0 %v2122
      %v3367 = vpop.f32.mrf.mxu0
      %v3368 = vadd.f32 %v3308, %v3367
      %v3369 = vpop.f32.mrf.mxu0
      %v3370 = vadd.f32 %v3308, %v3369
      %3371 = vdwg.mxu0
      %s3372 = scalar_lea.vmem %s10, 704
      %v3373 = vld [vmem:[%s3372] sm:$0xf]
      %v3374 = vld [vmem:[%s3372 + $0x4] sm:$0xf]
      %v3375 = vld [vmem:[%s3372 + $0x8] sm:$0xf]
      %v3376 = vld [vmem:[%s3372 + $0xc] sm:$0xf]
      %v3377 = vld [vmem:[%s3372 + $0x10] sm:$0xf]
      %v3378 = vld [vmem:[%s3372 + $0x14] sm:$0xf]
      %v3379 = vld [vmem:[%s3372 + $0x18] sm:$0xf]
      %v3380 = vld [vmem:[%s3372 + $0x1c] sm:$0xf]
      %v3381 = vld [vmem:[%s3372 + $0x20] sm:$0xf]
      %v3382 = vld [vmem:[%s3372 + $0x24] sm:$0xf]
      %v3383 = vld [vmem:[%s3372 + $0x28] sm:$0xf]
      %v3384 = vld [vmem:[%s3372 + $0x2c] sm:$0xf]
      %v3385 = vld [vmem:[%s3372 + $0x30] sm:$0xf]
      %v3386 = vld [vmem:[%s3372 + $0x34] sm:$0xf]
      %v3387 = vld [vmem:[%s3372 + $0x38] sm:$0xf]
      %v3388 = vld [vmem:[%s3372 + $0x3c] sm:$0xf]
      %s3389 = scalar_lea.vmem %s11, 11
      %v3390 = vld [vmem:[%s3389] sm:$0x1]
      %v3392 = vperm.slane %v3390, 0
      %v3410 = vunpack.c.l.b16 %v3373
      %v3411 = vunpack.c.l.b16 %v3374
      %v3412 = vunpack.c.l.b16 %v3375
      %v3413 = vunpack.c.l.b16 %v3376
      %v3414 = vunpack.c.l.b16 %v3377
      %v3415 = vunpack.c.l.b16 %v3378
      %v3416 = vunpack.c.l.b16 %v3379
      %v3417 = vunpack.c.l.b16 %v3380
      %v3418 = vunpack.c.l.b16 %v3381
      %v3419 = vunpack.c.l.b16 %v3382
      %v3420 = vunpack.c.l.b16 %v3383
      %v3421 = vunpack.c.l.b16 %v3384
      %v3422 = vunpack.c.l.b16 %v3385
      %v3423 = vunpack.c.l.b16 %v3386
      %v3424 = vunpack.c.l.b16 %v3387
      %v3425 = vunpack.c.l.b16 %v3388
      %v3426 = vpack.c.b16 %v3411, %v3410
      %v3427 = vpack.c.b16 %v3413, %v3412
      %v3428 = vpack.c.b16 %v3415, %v3414
      %v3429 = vpack.c.b16 %v3417, %v3416
      %v3430 = vpack.c.b16 %v3419, %v3418
      %v3431 = vpack.c.b16 %v3421, %v3420
      %v3432 = vpack.c.b16 %v3423, %v3422
      %v3433 = vpack.c.b16 %v3425, %v3424
      %3442 = vmatpush.bf16.msra.mxu0 %v3433
      %3443 = vmatpush.bf16.msra.mxu0 %v3432
      %3444 = vmatpush.bf16.msra.mxu0 %v3431
      %3445 = vmatpush.bf16.msra.mxu0 %v3430
      %3446 = vmatpush.bf16.msra.mxu0 %v3429
      %3447 = vmatpush.bf16.msra.mxu0 %v3428
      %3448 = vmatpush.bf16.msra.mxu0 %v3427
      %3449 = vmatpush.bf16.msra.mxu0 %v3426
      %3450 = vmatmul.bf16.gmra.mxu0 %v2122
      %v3451 = vpop.f32.mrf.mxu0
      %v3452 = vadd.f32 %v3392, %v3451
      %v3453 = vpop.f32.mrf.mxu0
      %v3454 = vadd.f32 %v3392, %v3453
      %3455 = vdwg.mxu0
      %v3456 = vpack.c.bf16 %v3285, %v3285
      %v3457 = vpack.c.bf16 %v3368, %v3368
      %v3458 = vpack.c.bf16 %v3370, %v3370
      %v3461 = vunpack.c.l.b16 %v3457
      %v3462 = vunpack.c.l.b16 %v3458
      %v3463 = vpack.c.b16 %v3462, %v3461
      %v3465 = vsel %vm936, %v3456, 0
      %v3468 = vsel %vm936, %v3463, 0
      %3470 = vmatpush.bf16.xpose.msra.mxu0 0
      %3471 = vmatpush.bf16.xpose.msra.mxu0 0
      %3472 = vmatpush.bf16.xpose.msra.mxu0 0
      %3473 = vmatpush.bf16.xpose.msra.mxu0 0
      %3474 = vmatpush.bf16.xpose.msra.mxu0 0
      %3475 = vmatpush.bf16.xpose.msra.mxu0 0
      %3476 = vmatpush.bf16.xpose.msra.mxu0 0
      %3477 = vmatpush.bf16.xpose.msra.mxu0 %v3468
      %3478 = vmatmul.bf16.gmra.mxu0 %v3465
      %v3479 = vpop.f32.mrf.mxu0
      %v3480 = vadd.f32 0.0, %v3479
      %v3481 = vpop.f32.mrf.mxu0
      %3482 = vdwg.mxu0
      %v3483 = vsel %vm2399, %v3480, -inf
      %3484 = vmax.xlane.f32.xlu0 %v3483
      %v3485 = vpop.xlane.xlu0 %3484
      %v3486 = vsub.f32 %v3480, %v3485
      %v3487 = vmul.f32 %v3486, 1.442695
      %v3488 = vpow.pop %v3487
      %v3489 = vsel %vm2399, %v3488, 0.0
      %3490 = vadd.xlane.f32.xlu0 %v3489
      %v3491 = vpop.xlane.xlu0 %3490
      %v3492 = vrcp.pop %v3491
      %v3493 = vmul.f32 %v3491, %v3492
      %v3494 = vsub.f32 1.0, %v3493
      %v3495 = vmul.f32 %v3492, %v3494
      %v3496 = vadd.f32 %v3492, %v3495
      %vm3497 = vweird.f32 %v3491
      %vm3498 = vweird.f32 %v3492
      %vm3499 = vmor %vm3497, %vm3498
      %v3500 = vsel %vm3499, %v3492, %v3496
      %v3501 = vand.u32 2147483647, %v3491
      %vm3502 = vcmp.eq.f32.partialorder %v3501, 8.507059e+37
      %v3503 = vand.u32 %v3491, 2147483648
      %v3504 = vor.u32 1.1754944e-38, %v3503
      %v3505 = vsel %vm3502, %v3504, %v3500
      %v3506 = vmul.f32 %v3488, %v3505
      %v3507 = vpack.c.bf16 %v3506, %v3506
      %v3508 = vpack.c.bf16 %v3452, %v3452
      %v3509 = vpack.c.bf16 %v3454, %v3454
      %v3512 = vunpack.c.l.b16 %v3508
      %v3513 = vunpack.c.l.b16 %v3509
      %v3514 = vpack.c.b16 %v3513, %v3512
      %v3517 = vsel %vm2399, %v3507, 0
      %3519 = vmatpush.bf16.msra.mxu0 0
      %3520 = vmatpush.bf16.msra.mxu0 0
      %3521 = vmatpush.bf16.msra.mxu0 0
      %3522 = vmatpush.bf16.msra.mxu0 0
      %3523 = vmatpush.bf16.msra.mxu0 0
      %3524 = vmatpush.bf16.msra.mxu0 0
      %3525 = vmatpush.bf16.msra.mxu0 0
      %3526 = vmatpush.bf16.msra.mxu0 %v3514
      %3527 = vmatmul.bf16.gmra.mxu0 %v3517
      %v3528 = vpop.f32.mrf.mxu0
      %v3529 = vadd.f32 0.0, %v3528
      %v3530 = vpop.f32.mrf.mxu0
      %3531 = vdwg.mxu0
      %v3532 = vpack.c.bf16 %v3529, %v3529
      %s3533 = scalar_lea.vmem %s12, 48
      %v3534 = vld [vmem:[%s3533] sm:$0xf]
      %v3535 = vld [vmem:[%s3533 + $0x4] sm:$0xf]
      %v3536 = vld [vmem:[%s3533 + $0x8] sm:$0xf]
      %v3537 = vld [vmem:[%s3533 + $0xc] sm:$0xf]
      %v3542 = vunpack.c.l.b16 %v3534
      %v3543 = vunpack.c.l.b16 %v3535
      %v3544 = vunpack.c.l.b16 %v3536
      %v3545 = vunpack.c.l.b16 %v3537
      %v3546 = vpack.c.b16 %v3543, %v3542
      %v3547 = vpack.c.b16 %v3545, %v3544
      %v3551 = vsel %vm936, %v3532, 0
      %3553 = vmatpush.bf16.msra.mxu0 0
      %3554 = vmatpush.bf16.msra.mxu0 0
      %3555 = vmatpush.bf16.msra.mxu0 0
      %3556 = vmatpush.bf16.msra.mxu0 0
      %3557 = vmatpush.bf16.msra.mxu0 0
      %3558 = vmatpush.bf16.msra.mxu0 0
      %3559 = vmatpush.bf16.msra.mxu0 %v3547
      %3560 = vmatpush.bf16.msra.mxu0 %v3546
      %3561 = vmatmul.bf16.gmra.mxu0 %v3551
      %v3562 = vpop.f32.mrf.mxu0
      %v3563 = vadd.f32 0.0, %v3562
      %v3564 = vpop.f32.mrf.mxu0
      %3565 = vdwg.mxu0
      %v3566 = vadd.f32 %v3204, %v3563
      %v3567 = vld [vmem:[%s13] sm:$0x1]
      %v3569 = vperm.slane %v3567, 0
      %v3571 = vadd.f32 %v3566, %v3569
      %v3572 = vadd.f32 %v2090, %v3571
      %v3573 = vld [vmem:[%s14] sm:$0x1]
      %v3574 = vld [vmem:[%s15] sm:$0x1]
      %3575 = vadd.xlane.f32.xlu0 %v3572
      %v3576 = vpop.xlane.xlu0 %3575
      %v3577 = vmul.f32 %v3576, %v659
      %v3578 = vsub.f32 %v3572, %v3577
      %v3579 = vmul.f32 %v3578, %v3578
      %3580 = vadd.xlane.f32.xlu0 %v3579
      %v3581 = vpop.xlane.xlu0 %3580
      %v3582 = vmul.f32 %v3581, %v659
      %v3583 = vadd.f32 %v3582, 1e-05
      %v3584 = vrsqrt.pop %v3583
      %v3585 = vmul.f32 %v3584, %v3583
      %v3586 = vmul.f32 %v3585, %v3584
      %v3587 = vmul.f32 0.5, %v3586
      %v3588 = vsub.f32 1.5, %v3587
      %v3589 = vmul.f32 %v3584, %v3588
      %vm3590 = vweird.f32 %v3583
      %vm3591 = vweird.f32 %v3584
      %vm3592 = vmor %vm3590, %vm3591
      %v3593 = vsel %vm3592, %v3584, %v3589
      %v3594 = vmul.f32 %v3578, %v3593
      %v3596 = vperm.slane %v3573, 0
      %v3598 = vmul.f32 %v3594, %v3596
      %v3600 = vperm.slane %v3574, 0
      %v3602 = vadd.f32 %v3598, %v3600
      %v3603 = vpack.c.bf16 %v3602, %v3602
      %v3604 = vld [vmem:[%s16] sm:$0xff]
      %v3605 = vld [vmem:[%s16 + $0x8] sm:$0xff]
      %v3606 = vld [vmem:[%s16 + $0x10] sm:$0xff]
      %v3607 = vld [vmem:[%s16 + $0x18] sm:$0xff]
      %v3608 = vld [vmem:[%s16 + $0x20] sm:$0xff]
      %v3609 = vld [vmem:[%s16 + $0x28] sm:$0xff]
      %v3610 = vld [vmem:[%s16 + $0x30] sm:$0xff]
      %v3611 = vld [vmem:[%s16 + $0x38] sm:$0xff]
      %v3612 = vld [vmem:[%s16 + $0x40] sm:$0xff]
      %v3613 = vld [vmem:[%s16 + $0x48] sm:$0xff]
      %v3614 = vld [vmem:[%s16 + $0x50] sm:$0xff]
      %v3615 = vld [vmem:[%s16 + $0x58] sm:$0xff]
      %v3616 = vld [vmem:[%s16 + $0x60] sm:$0xff]
      %v3617 = vld [vmem:[%s16 + $0x68] sm:$0xff]
      %v3618 = vld [vmem:[%s16 + $0x70] sm:$0xff]
      %v3619 = vld [vmem:[%s16 + $0x78] sm:$0xff]
      %v3620 = vld [vmem:[%s17] sm:$0x3]
      %v3622 = vperm.slane %v3620, 0
      %v3623 = vperm.slane %v3620, 1
      %v3642 = vunpack.c.l.b16 %v3604
      %v3643 = vunpack.c.h.b16 %v3604
      %v3644 = vunpack.c.l.b16 %v3605
      %v3645 = vunpack.c.h.b16 %v3605
      %v3646 = vunpack.c.l.b16 %v3606
      %v3647 = vunpack.c.h.b16 %v3606
      %v3648 = vunpack.c.l.b16 %v3607
      %v3649 = vunpack.c.h.b16 %v3607
      %v3650 = vunpack.c.l.b16 %v3608
      %v3651 = vunpack.c.h.b16 %v3608
      %v3652 = vunpack.c.l.b16 %v3609
      %v3653 = vunpack.c.h.b16 %v3609
      %v3654 = vunpack.c.l.b16 %v3610
      %v3655 = vunpack.c.h.b16 %v3610
      %v3656 = vunpack.c.l.b16 %v3611
      %v3657 = vunpack.c.h.b16 %v3611
      %v3658 = vunpack.c.l.b16 %v3612
      %v3659 = vunpack.c.h.b16 %v3612
      %v3660 = vunpack.c.l.b16 %v3613
      %v3661 = vunpack.c.h.b16 %v3613
      %v3662 = vunpack.c.l.b16 %v3614
      %v3663 = vunpack.c.h.b16 %v3614
      %v3664 = vunpack.c.l.b16 %v3615
      %v3665 = vunpack.c.h.b16 %v3615
      %v3666 = vunpack.c.l.b16 %v3616
      %v3667 = vunpack.c.h.b16 %v3616
      %v3668 = vunpack.c.l.b16 %v3617
      %v3669 = vunpack.c.h.b16 %v3617
      %v3670 = vunpack.c.l.b16 %v3618
      %v3671 = vunpack.c.h.b16 %v3618
      %v3672 = vunpack.c.l.b16 %v3619
      %v3673 = vunpack.c.h.b16 %v3619
      %v3674 = vpack.c.b16 %v3644, %v3642
      %v3675 = vpack.c.b16 %v3645, %v3643
      %v3676 = vpack.c.b16 %v3648, %v3646
      %v3677 = vpack.c.b16 %v3649, %v3647
      %v3678 = vpack.c.b16 %v3652, %v3650
      %v3679 = vpack.c.b16 %v3653, %v3651
      %v3680 = vpack.c.b16 %v3656, %v3654
      %v3681 = vpack.c.b16 %v3657, %v3655
      %v3682 = vpack.c.b16 %v3660, %v3658
      %v3683 = vpack.c.b16 %v3661, %v3659
      %v3684 = vpack.c.b16 %v3664, %v3662
      %v3685 = vpack.c.b16 %v3665, %v3663
      %v3686 = vpack.c.b16 %v3668, %v3666
      %v3687 = vpack.c.b16 %v3669, %v3667
      %v3688 = vpack.c.b16 %v3672, %v3670
      %v3689 = vpack.c.b16 %v3673, %v3671
      %3706 = vmatpush.bf16.msra.mxu0 %v3688
      %3707 = vmatpush.bf16.msra.mxu0 %v3686
      %3708 = vmatpush.bf16.msra.mxu0 %v3684
      %3709 = vmatpush.bf16.msra.mxu0 %v3682
      %3710 = vmatpush.bf16.msra.mxu0 %v3680
      %3711 = vmatpush.bf16.msra.mxu0 %v3678
      %3712 = vmatpush.bf16.msra.mxu0 %v3676
      %3713 = vmatpush.bf16.msra.mxu0 %v3674
      %3714 = vmatmul.bf16.gmra.mxu0 %v3603
      %v3715 = vpop.f32.mrf.mxu0
      %v3716 = vadd.f32 %v3622, %v3715
      %v3717 = vpop.f32.mrf.mxu0
      %3718 = vdwg.mxu0
      %3719 = vmatpush.bf16.msra.mxu0 %v3689
      %3720 = vmatpush.bf16.msra.mxu0 %v3687
      %3721 = vmatpush.bf16.msra.mxu0 %v3685
      %3722 = vmatpush.bf16.msra.mxu0 %v3683
      %3723 = vmatpush.bf16.msra.mxu0 %v3681
      %3724 = vmatpush.bf16.msra.mxu0 %v3679
      %3725 = vmatpush.bf16.msra.mxu0 %v3677
      %3726 = vmatpush.bf16.msra.mxu0 %v3675
      %3727 = vmatmul.bf16.gmra.mxu0 %v3603
      %v3728 = vpop.f32.mrf.mxu0
      %v3729 = vadd.f32 %v3623, %v3728
      %v3730 = vpop.f32.mrf.mxu0
      %3731 = vdwg.mxu0
      %v3732 = vmax.f32 %v3716, 0.0
      %v3733 = vmax.f32 %v3729, 0.0
      %v3734 = vpack.c.bf16 %v3732, %v3732
      %v3735 = vpack.c.bf16 %v3733, %v3733
      %v3736 = vld [vmem:[%s18] sm:$0xf]
      %v3737 = vld [vmem:[%s18 + $0x4] sm:$0xf]
      %v3738 = vld [vmem:[%s18 + $0x8] sm:$0xf]
      %v3739 = vld [vmem:[%s18 + $0xc] sm:$0xf]
      %v3740 = vld [vmem:[%s18 + $0x10] sm:$0xf]
      %v3741 = vld [vmem:[%s18 + $0x14] sm:$0xf]
      %v3742 = vld [vmem:[%s18 + $0x18] sm:$0xf]
      %v3743 = vld [vmem:[%s18 + $0x1c] sm:$0xf]
      %v3744 = vld [vmem:[%s18 + $0x20] sm:$0xf]
      %v3745 = vld [vmem:[%s18 + $0x24] sm:$0xf]
      %v3746 = vld [vmem:[%s18 + $0x28] sm:$0xf]
      %v3747 = vld [vmem:[%s18 + $0x2c] sm:$0xf]
      %v3748 = vld [vmem:[%s18 + $0x30] sm:$0xf]
      %v3749 = vld [vmem:[%s18 + $0x34] sm:$0xf]
      %v3750 = vld [vmem:[%s18 + $0x38] sm:$0xf]
      %v3751 = vld [vmem:[%s18 + $0x3c] sm:$0xf]
      %v3752 = vld [vmem:[%s18 + $0x40] sm:$0xf]
      %v3753 = vld [vmem:[%s18 + $0x44] sm:$0xf]
      %v3754 = vld [vmem:[%s18 + $0x48] sm:$0xf]
      %v3755 = vld [vmem:[%s18 + $0x4c] sm:$0xf]
      %v3756 = vld [vmem:[%s18 + $0x50] sm:$0xf]
      %v3757 = vld [vmem:[%s18 + $0x54] sm:$0xf]
      %v3758 = vld [vmem:[%s18 + $0x58] sm:$0xf]
      %v3759 = vld [vmem:[%s18 + $0x5c] sm:$0xf]
      %v3760 = vld [vmem:[%s18 + $0x60] sm:$0xf]
      %v3761 = vld [vmem:[%s18 + $0x64] sm:$0xf]
      %v3762 = vld [vmem:[%s18 + $0x68] sm:$0xf]
      %v3763 = vld [vmem:[%s18 + $0x6c] sm:$0xf]
      %v3764 = vld [vmem:[%s18 + $0x70] sm:$0xf]
      %v3765 = vld [vmem:[%s18 + $0x74] sm:$0xf]
      %v3766 = vld [vmem:[%s18 + $0x78] sm:$0xf]
      %v3767 = vld [vmem:[%s18 + $0x7c] sm:$0xf]
      %v3768 = vld [vmem:[%s19] sm:$0x1]
      %v3770 = vperm.slane %v3768, 0
      %v3804 = vunpack.c.l.b16 %v3736
      %v3805 = vunpack.c.l.b16 %v3737
      %v3806 = vunpack.c.l.b16 %v3738
      %v3807 = vunpack.c.l.b16 %v3739
      %v3808 = vunpack.c.l.b16 %v3740
      %v3809 = vunpack.c.l.b16 %v3741
      %v3810 = vunpack.c.l.b16 %v3742
      %v3811 = vunpack.c.l.b16 %v3743
      %v3812 = vunpack.c.l.b16 %v3744
      %v3813 = vunpack.c.l.b16 %v3745
      %v3814 = vunpack.c.l.b16 %v3746
      %v3815 = vunpack.c.l.b16 %v3747
      %v3816 = vunpack.c.l.b16 %v3748
      %v3817 = vunpack.c.l.b16 %v3749
      %v3818 = vunpack.c.l.b16 %v3750
      %v3819 = vunpack.c.l.b16 %v3751
      %v3820 = vunpack.c.l.b16 %v3752
      %v3821 = vunpack.c.l.b16 %v3753
      %v3822 = vunpack.c.l.b16 %v3754
      %v3823 = vunpack.c.l.b16 %v3755
      %v3824 = vunpack.c.l.b16 %v3756
      %v3825 = vunpack.c.l.b16 %v3757
      %v3826 = vunpack.c.l.b16 %v3758
      %v3827 = vunpack.c.l.b16 %v3759
      %v3828 = vunpack.c.l.b16 %v3760
      %v3829 = vunpack.c.l.b16 %v3761
      %v3830 = vunpack.c.l.b16 %v3762
      %v3831 = vunpack.c.l.b16 %v3763
      %v3832 = vunpack.c.l.b16 %v3764
      %v3833 = vunpack.c.l.b16 %v3765
      %v3834 = vunpack.c.l.b16 %v3766
      %v3835 = vunpack.c.l.b16 %v3767
      %v3836 = vpack.c.b16 %v3805, %v3804
      %v3837 = vpack.c.b16 %v3807, %v3806
      %v3838 = vpack.c.b16 %v3809, %v3808
      %v3839 = vpack.c.b16 %v3811, %v3810
      %v3840 = vpack.c.b16 %v3813, %v3812
      %v3841 = vpack.c.b16 %v3815, %v3814
      %v3842 = vpack.c.b16 %v3817, %v3816
      %v3843 = vpack.c.b16 %v3819, %v3818
      %v3844 = vpack.c.b16 %v3821, %v3820
      %v3845 = vpack.c.b16 %v3823, %v3822
      %v3846 = vpack.c.b16 %v3825, %v3824
      %v3847 = vpack.c.b16 %v3827, %v3826
      %v3848 = vpack.c.b16 %v3829, %v3828
      %v3849 = vpack.c.b16 %v3831, %v3830
      %v3850 = vpack.c.b16 %v3833, %v3832
      %v3851 = vpack.c.b16 %v3835, %v3834
      %3868 = vmatpush.bf16.msra.mxu0 %v3843
      %3869 = vmatpush.bf16.msra.mxu0 %v3842
      %3870 = vmatpush.bf16.msra.mxu0 %v3841
      %3871 = vmatpush.bf16.msra.mxu0 %v3840
      %3872 = vmatpush.bf16.msra.mxu0 %v3839
      %3873 = vmatpush.bf16.msra.mxu0 %v3838
      %3874 = vmatpush.bf16.msra.mxu0 %v3837
      %3875 = vmatpush.bf16.msra.mxu0 %v3836
      %3876 = vmatmul.bf16.gmra.mxu0 %v3734
      %v3877 = vpop.f32.mrf.mxu0
      %v3878 = vadd.f32 %v3770, %v3877
      %v3879 = vpop.f32.mrf.mxu0
      %3880 = vdwg.mxu0
      %3881 = vmatpush.bf16.msra.mxu0 %v3851
      %3882 = vmatpush.bf16.msra.mxu0 %v3850
      %3883 = vmatpush.bf16.msra.mxu0 %v3849
      %3884 = vmatpush.bf16.msra.mxu0 %v3848
      %3885 = vmatpush.bf16.msra.mxu0 %v3847
      %3886 = vmatpush.bf16.msra.mxu0 %v3846
      %3887 = vmatpush.bf16.msra.mxu0 %v3845
      %3888 = vmatpush.bf16.msra.mxu0 %v3844
      %3889 = vmatmul.bf16.gmra.mxu0 %v3735
      %v3890 = vpop.f32.mrf.mxu0
      %v3891 = vadd.f32 %v3878, %v3890
      %v3892 = vpop.f32.mrf.mxu0
      %3893 = vdwg.mxu0
      %v3894 = vadd.f32 %v3572, %v3891
      %3895 = vst [vmem:[%s644] sm:$0xff] %v3894
      %p3896 = scmp.lt.s32.totalorder %s31, 1
      %s3897 = scalar_select %p3896, %s31, 1
      %s3898 = smul.addr %s3897, 8
      %s3899 = scalar_lea.vmem %s20, %s3898
      // Predicated region
      $region101: #{transformer_layer_forward.1} parent=99 // pred_check
        %p3900 = pneg %p479
      $region102: #{transformer_layer_forward.1} parent=99 // pred_check_branch
        %3902 = sbr.rel (%p3900) target = $region104
      $region103: #{transformer_layer_forward.1} parent=99 // pred_region
        _
      $region104: #{transformer_layer_forward.1} parent=99 // pred_fallthru
        _
    $region100: #{transformer_layer_forward.1} parent=5 // pred_fallthru
      _
    %p3903 = scmp.le.s32.totalorder 2, %s26
    // Predicated region
    $region105: #{transformer_layer_forward.1} parent=5 // pred_check
      %p3904 = pneg %p3903
    $region106: #{transformer_layer_forward.1} parent=5 // pred_check_branch
      %3906 = sbr.rel (%p3904) target = $region108
    $region107: #{transformer_layer_forward.1} parent=5 // pred_region
      %s3907 = ssub.s32 %s26, 2
      // Predicated region
      $region109: #{transformer_layer_forward.1} parent=107 // pred_check
        %p3908 = pneg %p485
      $region110: #{transformer_layer_forward.1} parent=107 // pred_check_branch
        %3910 = sbr.rel (%p3908) target = $region112
      $region111: #{transformer_layer_forward.1} parent=107 // pred_region
        %p3911 = scmp.lt.s32.totalorder %s32, 1
        %s3912 = scalar_select %p3911, %s32, 1
        %s3913 = smul.addr %s3912, 8
        %s3914 = scalar_lea.vmem %s20, %s3913
      $region112: #{transformer_layer_forward.1} parent=107 // pred_fallthru
        _
    $region108: #{transformer_layer_forward.1} parent=5 // pred_fallthru
      _
  $region6: #{transformer_layer_forward.1} parent=0 // loop_footer
    %s30 = sadd.s32 1, %s26
  $region7: #{transformer_layer_forward.1} parent=0 // loop_footer_branch
    %25 = sbr.rel target = $region3
  $region8: #{transformer_layer_forward.1} parent=0 // loop_exit
    _

</llo_original>
